<compile_context>
chip_gen: v6e
topology: v6e:2x2x1
jax: 0.10.0
libtpu: 0.0.40
codegen_flags: <defaults>
</compile_context>

<pallas_src>
import numpy as np
import jax
import jax.numpy as jnp
from jax.experimental import pallas as pl
from jax.experimental.pallas import tpu as pltpu


# ----------------------------- Pallas kernel --------------------------------
def _gru_step(xg_t, h_prev, whh, bhh, H):
    # PyTorch nn.GRU cell, gate order [r | z | n]:
    #   r = sigmoid(Wir x + bir + Whr h + bhr)
    #   z = sigmoid(Wiz x + biz + Whz h + bhz)
    #   n = tanh  (Win x + bin + r * (Whn h + bhn))
    #   h' = (1 - z) * n + z * h
    # xg_t already contains (W_ih x + b_ih) for this timestep.
    hg = jnp.dot(h_prev, whh, preferred_element_type=jnp.float32) + bhh
    r = jax.nn.sigmoid(xg_t[:, 0:H] + hg[:, 0:H])
    z = jax.nn.sigmoid(xg_t[:, H:2 * H] + hg[:, H:2 * H])
    n = jnp.tanh(xg_t[:, 2 * H:3 * H] + r * hg[:, 2 * H:3 * H])
    return (1.0 - z) * n + z * h_prev


def _attention_sent_rnn_kernel(x_ref, h0_ref, mask_ref,
                               wih_ref, bih_ref,
                               whhf_ref, bhhf_ref, whhb_ref, bhhb_ref,
                               wsent_ref, bsent_ref, wproj_ref,
                               wfin_ref, bfin_ref,
                               logp_ref, state_ref, attn_ref,
                               outf_ref, outb_ref):
    Bp = mask_ref.shape[0]          # padded batch (multiple of 8)
    L = mask_ref.shape[1]           # sequence length (static)
    H = h0_ref.shape[2]             # sent_gru hidden size
    gblk = wih_ref.shape[1] // 2    # 128-lane-aligned gate-block stride

    # ---- 1. bulk input projection, both directions fused: (L*Bp, 2*gblk) ---
    xg = (jnp.dot(x_ref[...], wih_ref[...], preferred_element_type=jnp.float32)
          + bih_ref[...])

    # ---- 2. bidirectional GRU recurrence (fully unrolled, static slices) ---
    whhf = whhf_ref[...]
    bhhf = bhhf_ref[...]
    whhb = whhb_ref[...]
    bhhb = bhhb_ref[...]
    h_f = h0_ref[0, :, :]
    h_b = h0_ref[1, :, :]
    for t in range(L):
        tb = L - 1 - t
        h_f = _gru_step(xg[t * Bp:(t + 1) * Bp, 0:3 * H], h_f, whhf, bhhf, H)
        h_b = _gru_step(xg[tb * Bp:(tb + 1) * Bp, gblk:gblk + 3 * H],
                        h_b, whhb, bhhb, H)
        outf_ref[t * Bp:(t + 1) * Bp, :] = h_f
        outb_ref[tb * Bp:(tb + 1) * Bp, :] = h_b
    state_ref[0, :, :] = h_f
    state_ref[1, :, :] = h_b

    # ---- 3. attention scores: tanh(out @ W_sent + b_sent) . w_proj ---------
    out2d = jnp.concatenate([outf_ref[...], outb_ref[...]], axis=-1)  # (L*Bp, 2H)
    sq = jnp.tanh(
        jnp.dot(out2d, wsent_ref[...], preferred_element_type=jnp.float32)
        + bsent_ref[...])
    contrib = sq * wproj_ref[...]                                     # (L*Bp, 2H)
    cols = [jnp.sum(contrib[t * Bp:(t + 1) * Bp, :], axis=-1, keepdims=True)
            for t in range(L)]
    scores = jnp.concatenate(cols, axis=-1)                           # (Bp, L)

    # ---- 4. softmax over the sequence, mask, L1 re-normalize ---------------
    m = jnp.max(scores, axis=-1, keepdims=True)
    e = jnp.exp(scores - m)
    p = e / jnp.sum(e, axis=-1, keepdims=True)
    p = p * mask_ref[...]
    denom = jnp.maximum(jnp.sum(jnp.abs(p), axis=-1, keepdims=True), 1e-12)
    attn = p / denom
    attn_ref[...] = attn

    # ---- 5. attention-weighted sum + final linear + log_softmax ------------
    acc = attn[:, 0:1] * out2d[0:Bp, :]
    for t in range(1, L):
        acc = acc + attn[:, t:t + 1] * out2d[t * Bp:(t + 1) * Bp, :]
    logits = (jnp.dot(acc, wfin_ref[...], preferred_element_type=jnp.float32)
              + bfin_ref[...])                                        # (Bp, Cp)
    # TODO(synk): nn.Dropout(0.1) on final_map is identity in eval mode.
    mx = jnp.max(logits, axis=-1, keepdims=True)
    sh = logits - mx
    logp_ref[...] = sh - jnp.log(jnp.sum(jnp.exp(sh), axis=-1, keepdims=True))


_VMEM = pl.BlockSpec(memory_space=pltpu.MemorySpace.VMEM)


# ------------------------------- wrapper -------------------------------------
@jax.jit
def attention_sent_rnn_pallas(params, word_attention_vectors, state_sent,
                              sent_mask):
    L, B, D = word_attention_vectors.shape      # D = 2 * sent_gru_hidden
    H = state_sent.shape[-1]
    C = params["b_fin"].shape[-1]
    Bp = ((B + 7) // 8) * 8                     # pad batch to full sublanes
    Cp = 128                                    # lane-dense final-linear output
    G = 3 * H
    gblk = ((G + 127) // 128) * 128             # 128-lane-aligned gate blocks

    # pad batch rows (pad rows are inert: mask=0, results sliced off below)
    x_p = jnp.zeros((L, Bp, D), jnp.float32).at[:, :B, :].set(
        word_attention_vectors)
    x2d = x_p.reshape(L * Bp, D)
    h0_p = jnp.zeros((2, Bp, H), jnp.float32).at[:, :B, :].set(state_sent)
    mask_p = jnp.zeros((Bp, L), jnp.float32).at[:B, :].set(sent_mask)

    # fuse fwd/bwd input-gate weights at 128-lane-aligned offsets
    wih = jnp.zeros((D, 2 * gblk), jnp.float32)
    wih = wih.at[:, 0:G].set(params["wih_f"]).at[:, gblk:gblk + G].set(
        params["wih_b"])
    bih = jnp.zeros((1, 2 * gblk), jnp.float32)
    bih = bih.at[:, 0:G].set(params["bih_f"]).at[:, gblk:gblk + G].set(
        params["bih_b"])

    # pad final linear to 128 lanes; pad-class bias -1e9 -> exp underflows to 0
    wfin_p = jnp.zeros((D, Cp), jnp.float32).at[:, :C].set(params["w_fin"])
    bfin_p = jnp.full((1, Cp), -1e9, jnp.float32).at[:, :C].set(params["b_fin"])

    logp, state, attn = pl.pallas_call(
        _attention_sent_rnn_kernel,
        out_shape=(jax.ShapeDtypeStruct((Bp, Cp), jnp.float32),
                   jax.ShapeDtypeStruct((2, Bp, H), jnp.float32),
                   jax.ShapeDtypeStruct((Bp, L), jnp.float32)),
        in_specs=[_VMEM] * 14,
        out_specs=(_VMEM, _VMEM, _VMEM),
        scratch_shapes=[pltpu.VMEM((L * Bp, H), jnp.float32),   # fwd GRU outputs
                        pltpu.VMEM((L * Bp, H), jnp.float32)],  # bwd GRU outputs
    )(x2d, h0_p, mask_p,
      wih, bih,
      params["whh_f"], params["bhh_f"], params["whh_b"], params["bhh_b"],
      params["w_sent"], params["b_sent"], params["w_proj"],
      wfin_p, bfin_p)

    return logp[:B, :C], state[:, :B, :], attn[:B, :]


# --------------------- pure-JAX reference (for checking) ---------------------
def attention_sent_rnn_ref(params, x, h0, mask):
    L, B, D = x.shape
    H = h0.shape[-1]

    def run_dir(wih, bih, whh, bhh, h_init, reverse):
        outs = [None] * L
        h = h_init
        order = range(L - 1, -1, -1) if reverse else range(L)
        for t in order:
            xg = x[t] @ wih + bih
            hg = h @ whh + bhh
            r = jax.nn.sigmoid(xg[:, :H] + hg[:, :H])
            z = jax.nn.sigmoid(xg[:, H:2 * H] + hg[:, H:2 * H])
            n = jnp.tanh(xg[:, 2 * H:] + r * hg[:, 2 * H:])
            h = (1.0 - z) * n + z * h
            outs[t] = h
        return jnp.stack(outs, 0), h

    out_f, hf = run_dir(params["wih_f"], params["bih_f"], params["whh_f"],
                        params["bhh_f"], h0[0], False)
    out_b, hb = run_dir(params["wih_b"], params["bih_b"], params["whh_b"],
                        params["bhh_b"], h0[1], True)
    out = jnp.concatenate([out_f, out_b], axis=-1)              # (L, B, 2H)

    sq = jnp.tanh(out @ params["w_sent"] + params["b_sent"])    # batch_matmul_bias
    scores = jnp.sum(sq * params["w_proj"], axis=-1)            # batch_matmul + squeeze
    attn = jax.nn.softmax(scores.T, axis=1)                     # softmax, dim=1
    attn = attn * mask
    attn = attn / jnp.maximum(jnp.sum(jnp.abs(attn), axis=1, keepdims=True),
                              1e-12)                            # F.normalize p=1
    vec = jnp.einsum("bl,lbd->bd", attn, out)                   # attention_mul
    logits = vec @ params["w_fin"] + params["b_fin"]            # final_linear
    logp = jax.nn.log_softmax(logits, axis=1)
    return logp, jnp.stack([hf, hb], 0), attn


# ---------------------------- deterministic params ---------------------------
def init_params(key, H, D, C):
    ks = jax.random.split(key, 13)
    u = lambda k, shape, s=0.1: jax.random.uniform(k, shape, jnp.float32, -s, s)
    return {
        "wih_f": u(ks[0], (D, 3 * H)), "bih_f": u(ks[1], (1, 3 * H)),
        "whh_f": u(ks[2], (H, 3 * H)), "bhh_f": u(ks[3], (1, 3 * H)),
        "wih_b": u(ks[4], (D, 3 * H)), "bih_b": u(ks[5], (1, 3 * H)),
        "whh_b": u(ks[6], (H, 3 * H)), "bhh_b": u(ks[7], (1, 3 * H)),
        "w_sent": u(ks[8], (D, D)),    "b_sent": u(ks[9], (1, D)),
        "w_proj": u(ks[10], (1, D)),
        "w_fin": u(ks[11], (D, C)),    "b_fin": u(ks[12], (1, C)),
    }


if __name__ == "__main__":
    key = jax.random.PRNGKey(0)
    H = 32              # params.sent_gru (== word_gru_hidden)
    D = 2 * H           # bidirectional word-level feature dim (GRU input)
    C = 3               # params.num_class
    L, B = 8, 2         # number of sentences per doc, batch size

    kp, kx, kh = jax.random.split(key, 3)
    params = init_params(kp, H, D, C)
    word_attention_vectors = jax.random.normal(kx, (L, B, D), jnp.float32) * 0.5
    state_sent = jax.random.normal(kh, (2, B, H), jnp.float32) * 0.1
    sent_mask = jnp.array([[1, 1, 1, 1, 1, 1, 0, 0],
                           [1, 1, 1, 1, 1, 1, 1, 1]], jnp.float32)

    logp, state, attn = attention_sent_rnn_pallas(
        params, word_attention_vectors, state_sent, sent_mask)
    logp, state, attn = jax.block_until_ready((logp, state, attn))

    logp_r, state_r, attn_r = attention_sent_rnn_ref(
        params, word_attention_vectors, state_sent, sent_mask)
    logp_r, state_r, attn_r = jax.block_until_ready((logp_r, state_r, attn_r))

    assert logp.shape == (B, C), logp.shape
    assert state.shape == (2, B, H), state.shape
    assert attn.shape == (B, L), attn.shape
    for a in (logp, state, attn):
        assert np.all(np.isfinite(np.asarray(a)))

    np.testing.assert_allclose(np.asarray(logp), np.asarray(logp_r),
                               rtol=5e-3, atol=5e-3)
    np.testing.assert_allclose(np.asarray(state), np.asarray(state_r),
                               rtol=5e-3, atol=5e-3)
    np.testing.assert_allclose(np.asarray(attn), np.asarray(attn_r),
                               rtol=5e-3, atol=5e-3)
    print("KERNEL_OK")
</pallas_src>

<mosaic_0001>
module attributes {stable_mosaic.version = 11 : i64} {
  func.func @_attention_sent_rnn_kernel(%arg0: memref<64x64xf32, #tpu.memory_space<vmem>>, %arg1: memref<2x8x32xf32, #tpu.memory_space<vmem>>, %arg2: memref<8x8xf32, #tpu.memory_space<vmem>>, %arg3: memref<64x256xf32, #tpu.memory_space<vmem>>, %arg4: memref<1x256xf32, #tpu.memory_space<vmem>>, %arg5: memref<32x96xf32, #tpu.memory_space<vmem>>, %arg6: memref<1x96xf32, #tpu.memory_space<vmem>>, %arg7: memref<32x96xf32, #tpu.memory_space<vmem>>, %arg8: memref<1x96xf32, #tpu.memory_space<vmem>>, %arg9: memref<64x64xf32, #tpu.memory_space<vmem>>, %arg10: memref<1x64xf32, #tpu.memory_space<vmem>>, %arg11: memref<1x64xf32, #tpu.memory_space<vmem>>, %arg12: memref<64x128xf32, #tpu.memory_space<vmem>>, %arg13: memref<1x128xf32, #tpu.memory_space<vmem>>, %arg14: memref<8x128xf32, #tpu.memory_space<vmem>>, %arg15: memref<2x8x32xf32, #tpu.memory_space<vmem>>, %arg16: memref<8x8xf32, #tpu.memory_space<vmem>>, %arg17: memref<64x32xf32, #tpu.memory_space<vmem>>, %arg18: memref<64x32xf32, #tpu.memory_space<vmem>>) attributes {dimension_semantics = [], scalar_prefetch = 0 : i64, scratch_operands = 2 : i64, tpu.core_type = #tpu.core_type<tc>} {
    %c0 = arith.constant 0 : index
    %c0_0 = arith.constant 0 : index
    %0 = vector.load %arg0[%c0, %c0_0] : memref<64x64xf32, #tpu.memory_space<vmem>>, vector<64x64xf32>
    %c0_1 = arith.constant 0 : index
    %c0_2 = arith.constant 0 : index
    %1 = vector.load %arg3[%c0_1, %c0_2] : memref<64x256xf32, #tpu.memory_space<vmem>>, vector<64x256xf32>
    %cst = arith.constant dense<0.000000e+00> : vector<64x256xf32>
    %2 = tpu.matmul %0, %1, %cst {dimension_numbers = #tpu.dot_dimension_numbers<[1], [0], [0], [1], [0, 0, 1, 1], [], []>} : vector<64x64xf32>, vector<64x256xf32>, vector<64x256xf32> -> vector<64x256xf32>
    %c0_3 = arith.constant 0 : index
    %c0_4 = arith.constant 0 : index
    %3 = vector.load %arg4[%c0_3, %c0_4] : memref<1x256xf32, #tpu.memory_space<vmem>>, vector<1x256xf32>
    %4 = vector.broadcast %3 : vector<1x256xf32> to vector<64x256xf32>
    %5 = arith.addf %2, %4 : vector<64x256xf32>
    %c0_5 = arith.constant 0 : index
    %c0_6 = arith.constant 0 : index
    %6 = vector.load %arg5[%c0_5, %c0_6] : memref<32x96xf32, #tpu.memory_space<vmem>>, vector<32x96xf32>
    %c0_7 = arith.constant 0 : index
    %c0_8 = arith.constant 0 : index
    %7 = vector.load %arg6[%c0_7, %c0_8] : memref<1x96xf32, #tpu.memory_space<vmem>>, vector<1x96xf32>
    %c0_9 = arith.constant 0 : index
    %c0_10 = arith.constant 0 : index
    %8 = vector.load %arg7[%c0_9, %c0_10] : memref<32x96xf32, #tpu.memory_space<vmem>>, vector<32x96xf32>
    %c0_11 = arith.constant 0 : index
    %c0_12 = arith.constant 0 : index
    %9 = vector.load %arg8[%c0_11, %c0_12] : memref<1x96xf32, #tpu.memory_space<vmem>>, vector<1x96xf32>
    %c0_13 = arith.constant 0 : index
    %c0_14 = arith.constant 0 : index
    %c0_15 = arith.constant 0 : index
    %10 = vector.load %arg1[%c0_13, %c0_14, %c0_15] : memref<2x8x32xf32, #tpu.memory_space<vmem>>, vector<1x8x32xf32>
    %11 = vector.shape_cast %10 : vector<1x8x32xf32> to vector<8x32xf32>
    %c1 = arith.constant 1 : index
    %c0_16 = arith.constant 0 : index
    %c0_17 = arith.constant 0 : index
    %12 = vector.load %arg1[%c1, %c0_16, %c0_17] : memref<2x8x32xf32, #tpu.memory_space<vmem>>, vector<1x8x32xf32>
    %13 = vector.shape_cast %12 : vector<1x8x32xf32> to vector<8x32xf32>
    %14 = vector.extract_strided_slice %5 {offsets = [0, 0], sizes = [8, 96], strides = [1, 1]} : vector<64x256xf32> to vector<8x96xf32>
    %cst_18 = arith.constant dense<0.000000e+00> : vector<8x96xf32>
    %15 = tpu.matmul %11, %6, %cst_18 {dimension_numbers = #tpu.dot_dimension_numbers<[1], [0], [0], [1], [0, 0, 1, 1], [], []>} : vector<8x32xf32>, vector<32x96xf32>, vector<8x96xf32> -> vector<8x96xf32>
    %16 = vector.broadcast %7 : vector<1x96xf32> to vector<8x96xf32>
    %17 = arith.addf %15, %16 : vector<8x96xf32>
    %18 = vector.extract_strided_slice %14 {offsets = [0, 0], sizes = [8, 32], strides = [1, 1]} : vector<8x96xf32> to vector<8x32xf32>
    %19 = vector.extract_strided_slice %17 {offsets = [0, 0], sizes = [8, 32], strides = [1, 1]} : vector<8x96xf32> to vector<8x32xf32>
    %20 = arith.addf %18, %19 : vector<8x32xf32>
    %21 = arith.negf %20 : vector<8x32xf32>
    %22 = math.exp %21 : vector<8x32xf32>
    %cst_19 = arith.constant 1.000000e+00 : f32
    %23 = vector.broadcast %cst_19 : f32 to vector<8x32xf32>
    %24 = arith.addf %23, %22 : vector<8x32xf32>
    %25 = arith.divf %23, %24 : vector<8x32xf32>
    %26 = vector.extract_strided_slice %14 {offsets = [0, 32], sizes = [8, 32], strides = [1, 1]} : vector<8x96xf32> to vector<8x32xf32>
    %27 = vector.extract_strided_slice %17 {offsets = [0, 32], sizes = [8, 32], strides = [1, 1]} : vector<8x96xf32> to vector<8x32xf32>
    %28 = arith.addf %26, %27 : vector<8x32xf32>
    %29 = arith.negf %28 : vector<8x32xf32>
    %30 = math.exp %29 : vector<8x32xf32>
    %cst_20 = arith.constant 1.000000e+00 : f32
    %31 = vector.broadcast %cst_20 : f32 to vector<8x32xf32>
    %32 = arith.addf %31, %30 : vector<8x32xf32>
    %33 = arith.divf %31, %32 : vector<8x32xf32>
    %34 = vector.extract_strided_slice %14 {offsets = [0, 64], sizes = [8, 32], strides = [1, 1]} : vector<8x96xf32> to vector<8x32xf32>
    %35 = vector.extract_strided_slice %17 {offsets = [0, 64], sizes = [8, 32], strides = [1, 1]} : vector<8x96xf32> to vector<8x32xf32>
    %36 = arith.mulf %25, %35 : vector<8x32xf32>
    %37 = arith.addf %34, %36 : vector<8x32xf32>
    %38 = math.tanh %37 : vector<8x32xf32>
    %cst_21 = arith.constant 1.000000e+00 : f32
    %39 = vector.broadcast %cst_21 : f32 to vector<8x32xf32>
    %40 = arith.subf %39, %33 : vector<8x32xf32>
    %41 = arith.mulf %40, %38 : vector<8x32xf32>
    %42 = arith.mulf %33, %11 : vector<8x32xf32>
    %43 = arith.addf %41, %42 : vector<8x32xf32>
    %44 = vector.extract_strided_slice %5 {offsets = [56, 128], sizes = [8, 96], strides = [1, 1]} : vector<64x256xf32> to vector<8x96xf32>
    %cst_22 = arith.constant dense<0.000000e+00> : vector<8x96xf32>
    %45 = tpu.matmul %13, %8, %cst_22 {dimension_numbers = #tpu.dot_dimension_numbers<[1], [0], [0], [1], [0, 0, 1, 1], [], []>} : vector<8x32xf32>, vector<32x96xf32>, vector<8x96xf32> -> vector<8x96xf32>
    %46 = vector.broadcast %9 : vector<1x96xf32> to vector<8x96xf32>
    %47 = arith.addf %45, %46 : vector<8x96xf32>
    %48 = vector.extract_strided_slice %44 {offsets = [0, 0], sizes = [8, 32], strides = [1, 1]} : vector<8x96xf32> to vector<8x32xf32>
    %49 = vector.extract_strided_slice %47 {offsets = [0, 0], sizes = [8, 32], strides = [1, 1]} : vector<8x96xf32> to vector<8x32xf32>
    %50 = arith.addf %48, %49 : vector<8x32xf32>
    %51 = arith.negf %50 : vector<8x32xf32>
    %52 = math.exp %51 : vector<8x32xf32>
    %cst_23 = arith.constant 1.000000e+00 : f32
    %53 = vector.broadcast %cst_23 : f32 to vector<8x32xf32>
    %54 = arith.addf %53, %52 : vector<8x32xf32>
    %55 = arith.divf %53, %54 : vector<8x32xf32>
    %56 = vector.extract_strided_slice %44 {offsets = [0, 32], sizes = [8, 32], strides = [1, 1]} : vector<8x96xf32> to vector<8x32xf32>
    %57 = vector.extract_strided_slice %47 {offsets = [0, 32], sizes = [8, 32], strides = [1, 1]} : vector<8x96xf32> to vector<8x32xf32>
    %58 = arith.addf %56, %57 : vector<8x32xf32>
    %59 = arith.negf %58 : vector<8x32xf32>
    %60 = math.exp %59 : vector<8x32xf32>
    %cst_24 = arith.constant 1.000000e+00 : f32
    %61 = vector.broadcast %cst_24 : f32 to vector<8x32xf32>
    %62 = arith.addf %61, %60 : vector<8x32xf32>
    %63 = arith.divf %61, %62 : vector<8x32xf32>
    %64 = vector.extract_strided_slice %44 {offsets = [0, 64], sizes = [8, 32], strides = [1, 1]} : vector<8x96xf32> to vector<8x32xf32>
    %65 = vector.extract_strided_slice %47 {offsets = [0, 64], sizes = [8, 32], strides = [1, 1]} : vector<8x96xf32> to vector<8x32xf32>
    %66 = arith.mulf %55, %65 : vector<8x32xf32>
    %67 = arith.addf %64, %66 : vector<8x32xf32>
    %68 = math.tanh %67 : vector<8x32xf32>
    %cst_25 = arith.constant 1.000000e+00 : f32
    %69 = vector.broadcast %cst_25 : f32 to vector<8x32xf32>
    %70 = arith.subf %69, %63 : vector<8x32xf32>
    %71 = arith.mulf %70, %68 : vector<8x32xf32>
    %72 = arith.mulf %63, %13 : vector<8x32xf32>
    %73 = arith.addf %71, %72 : vector<8x32xf32>
    %c0_26 = arith.constant 0 : index
    %c0_27 = arith.constant 0 : index
    %74 = vector.load %arg17[%c0_26, %c0_27] : memref<64x32xf32, #tpu.memory_space<vmem>>, vector<8x32xf32>
    tpu.vector_store %arg17[%c0_26, %c0_27], %43 {strides = array<i32>} : memref<64x32xf32, #tpu.memory_space<vmem>>, vector<8x32xf32>,
    %c56 = arith.constant 56 : index
    %c0_28 = arith.constant 0 : index
    %75 = vector.load %arg18[%c56, %c0_28] : memref<64x32xf32, #tpu.memory_space<vmem>>, vector<8x32xf32>
    tpu.vector_store %arg18[%c56, %c0_28], %73 {strides = array<i32>} : memref<64x32xf32, #tpu.memory_space<vmem>>, vector<8x32xf32>,
    %76 = vector.extract_strided_slice %5 {offsets = [8, 0], sizes = [8, 96], strides = [1, 1]} : vector<64x256xf32> to vector<8x96xf32>
    %cst_29 = arith.constant dense<0.000000e+00> : vector<8x96xf32>
    %77 = tpu.matmul %43, %6, %cst_29 {dimension_numbers = #tpu.dot_dimension_numbers<[1], [0], [0], [1], [0, 0, 1, 1], [], []>} : vector<8x32xf32>, vector<32x96xf32>, vector<8x96xf32> -> vector<8x96xf32>
    %78 = vector.broadcast %7 : vector<1x96xf32> to vector<8x96xf32>
    %79 = arith.addf %77, %78 : vector<8x96xf32>
    %80 = vector.extract_strided_slice %76 {offsets = [0, 0], sizes = [8, 32], strides = [1, 1]} : vector<8x96xf32> to vector<8x32xf32>
    %81 = vector.extract_strided_slice %79 {offsets = [0, 0], sizes = [8, 32], strides = [1, 1]} : vector<8x96xf32> to vector<8x32xf32>
    %82 = arith.addf %80, %81 : vector<8x32xf32>
    %83 = arith.negf %82 : vector<8x32xf32>
    %84 = math.exp %83 : vector<8x32xf32>
    %cst_30 = arith.constant 1.000000e+00 : f32
    %85 = vector.broadcast %cst_30 : f32 to vector<8x32xf32>
    %86 = arith.addf %85, %84 : vector<8x32xf32>
    %87 = arith.divf %85, %86 : vector<8x32xf32>
    %88 = vector.extract_strided_slice %76 {offsets = [0, 32], sizes = [8, 32], strides = [1, 1]} : vector<8x96xf32> to vector<8x32xf32>
    %89 = vector.extract_strided_slice %79 {offsets = [0, 32], sizes = [8, 32], strides = [1, 1]} : vector<8x96xf32> to vector<8x32xf32>
    %90 = arith.addf %88, %89 : vector<8x32xf32>
    %91 = arith.negf %90 : vector<8x32xf32>
    %92 = math.exp %91 : vector<8x32xf32>
    %cst_31 = arith.constant 1.000000e+00 : f32
    %93 = vector.broadcast %cst_31 : f32 to vector<8x32xf32>
    %94 = arith.addf %93, %92 : vector<8x32xf32>
    %95 = arith.divf %93, %94 : vector<8x32xf32>
    %96 = vector.extract_strided_slice %76 {offsets = [0, 64], sizes = [8, 32], strides = [1, 1]} : vector<8x96xf32> to vector<8x32xf32>
    %97 = vector.extract_strided_slice %79 {offsets = [0, 64], sizes = [8, 32], strides = [1, 1]} : vector<8x96xf32> to vector<8x32xf32>
    %98 = arith.mulf %87, %97 : vector<8x32xf32>
    %99 = arith.addf %96, %98 : vector<8x32xf32>
    %100 = math.tanh %99 : vector<8x32xf32>
    %cst_32 = arith.constant 1.000000e+00 : f32
    %101 = vector.broadcast %cst_32 : f32 to vector<8x32xf32>
    %102 = arith.subf %101, %95 : vector<8x32xf32>
    %103 = arith.mulf %102, %100 : vector<8x32xf32>
    %104 = arith.mulf %95, %43 : vector<8x32xf32>
    %105 = arith.addf %103, %104 : vector<8x32xf32>
    %106 = vector.extract_strided_slice %5 {offsets = [48, 128], sizes = [8, 96], strides = [1, 1]} : vector<64x256xf32> to vector<8x96xf32>
    %cst_33 = arith.constant dense<0.000000e+00> : vector<8x96xf32>
    %107 = tpu.matmul %73, %8, %cst_33 {dimension_numbers = #tpu.dot_dimension_numbers<[1], [0], [0], [1], [0, 0, 1, 1], [], []>} : vector<8x32xf32>, vector<32x96xf32>, vector<8x96xf32> -> vector<8x96xf32>
    %108 = vector.broadcast %9 : vector<1x96xf32> to vector<8x96xf32>
    %109 = arith.addf %107, %108 : vector<8x96xf32>
    %110 = vector.extract_strided_slice %106 {offsets = [0, 0], sizes = [8, 32], strides = [1, 1]} : vector<8x96xf32> to vector<8x32xf32>
    %111 = vector.extract_strided_slice %109 {offsets = [0, 0], sizes = [8, 32], strides = [1, 1]} : vector<8x96xf32> to vector<8x32xf32>
    %112 = arith.addf %110, %111 : vector<8x32xf32>
    %113 = arith.negf %112 : vector<8x32xf32>
    %114 = math.exp %113 : vector<8x32xf32>
    %cst_34 = arith.constant 1.000000e+00 : f32
    %115 = vector.broadcast %cst_34 : f32 to vector<8x32xf32>
    %116 = arith.addf %115, %114 : vector<8x32xf32>
    %117 = arith.divf %115, %116 : vector<8x32xf32>
    %118 = vector.extract_strided_slice %106 {offsets = [0, 32], sizes = [8, 32], strides = [1, 1]} : vector<8x96xf32> to vector<8x32xf32>
    %119 = vector.extract_strided_slice %109 {offsets = [0, 32], sizes = [8, 32], strides = [1, 1]} : vector<8x96xf32> to vector<8x32xf32>
    %120 = arith.addf %118, %119 : vector<8x32xf32>
    %121 = arith.negf %120 : vector<8x32xf32>
    %122 = math.exp %121 : vector<8x32xf32>
    %cst_35 = arith.constant 1.000000e+00 : f32
    %123 = vector.broadcast %cst_35 : f32 to vector<8x32xf32>
    %124 = arith.addf %123, %122 : vector<8x32xf32>
    %125 = arith.divf %123, %124 : vector<8x32xf32>
    %126 = vector.extract_strided_slice %106 {offsets = [0, 64], sizes = [8, 32], strides = [1, 1]} : vector<8x96xf32> to vector<8x32xf32>
    %127 = vector.extract_strided_slice %109 {offsets = [0, 64], sizes = [8, 32], strides = [1, 1]} : vector<8x96xf32> to vector<8x32xf32>
    %128 = arith.mulf %117, %127 : vector<8x32xf32>
    %129 = arith.addf %126, %128 : vector<8x32xf32>
    %130 = math.tanh %129 : vector<8x32xf32>
    %cst_36 = arith.constant 1.000000e+00 : f32
    %131 = vector.broadcast %cst_36 : f32 to vector<8x32xf32>
    %132 = arith.subf %131, %125 : vector<8x32xf32>
    %133 = arith.mulf %132, %130 : vector<8x32xf32>
    %134 = arith.mulf %125, %73 : vector<8x32xf32>
    %135 = arith.addf %133, %134 : vector<8x32xf32>
    %c8 = arith.constant 8 : index
    %c0_37 = arith.constant 0 : index
    %136 = vector.load %arg17[%c8, %c0_37] : memref<64x32xf32, #tpu.memory_space<vmem>>, vector<8x32xf32>
    tpu.vector_store %arg17[%c8, %c0_37], %105 {strides = array<i32>} : memref<64x32xf32, #tpu.memory_space<vmem>>, vector<8x32xf32>,
    %c48 = arith.constant 48 : index
    %c0_38 = arith.constant 0 : index
    %137 = vector.load %arg18[%c48, %c0_38] : memref<64x32xf32, #tpu.memory_space<vmem>>, vector<8x32xf32>
    tpu.vector_store %arg18[%c48, %c0_38], %135 {strides = array<i32>} : memref<64x32xf32, #tpu.memory_space<vmem>>, vector<8x32xf32>,
    %138 = vector.extract_strided_slice %5 {offsets = [16, 0], sizes = [8, 96], strides = [1, 1]} : vector<64x256xf32> to vector<8x96xf32>
    %cst_39 = arith.constant dense<0.000000e+00> : vector<8x96xf32>
    %139 = tpu.matmul %105, %6, %cst_39 {dimension_numbers = #tpu.dot_dimension_numbers<[1], [0], [0], [1], [0, 0, 1, 1], [], []>} : vector<8x32xf32>, vector<32x96xf32>, vector<8x96xf32> -> vector<8x96xf32>
    %140 = vector.broadcast %7 : vector<1x96xf32> to vector<8x96xf32>
    %141 = arith.addf %139, %140 : vector<8x96xf32>
    %142 = vector.extract_strided_slice %138 {offsets = [0, 0], sizes = [8, 32], strides = [1, 1]} : vector<8x96xf32> to vector<8x32xf32>
    %143 = vector.extract_strided_slice %141 {offsets = [0, 0], sizes = [8, 32], strides = [1, 1]} : vector<8x96xf32> to vector<8x32xf32>
    %144 = arith.addf %142, %143 : vector<8x32xf32>
    %145 = arith.negf %144 : vector<8x32xf32>
    %146 = math.exp %145 : vector<8x32xf32>
    %cst_40 = arith.constant 1.000000e+00 : f32
    %147 = vector.broadcast %cst_40 : f32 to vector<8x32xf32>
    %148 = arith.addf %147, %146 : vector<8x32xf32>
    %149 = arith.divf %147, %148 : vector<8x32xf32>
    %150 = vector.extract_strided_slice %138 {offsets = [0, 32], sizes = [8, 32], strides = [1, 1]} : vector<8x96xf32> to vector<8x32xf32>
    %151 = vector.extract_strided_slice %141 {offsets = [0, 32], sizes = [8, 32], strides = [1, 1]} : vector<8x96xf32> to vector<8x32xf32>
    %152 = arith.addf %150, %151 : vector<8x32xf32>
    %153 = arith.negf %152 : vector<8x32xf32>
    %154 = math.exp %153 : vector<8x32xf32>
    %cst_41 = arith.constant 1.000000e+00 : f32
    %155 = vector.broadcast %cst_41 : f32 to vector<8x32xf32>
    %156 = arith.addf %155, %154 : vector<8x32xf32>
    %157 = arith.divf %155, %156 : vector<8x32xf32>
    %158 = vector.extract_strided_slice %138 {offsets = [0, 64], sizes = [8, 32], strides = [1, 1]} : vector<8x96xf32> to vector<8x32xf32>
    %159 = vector.extract_strided_slice %141 {offsets = [0, 64], sizes = [8, 32], strides = [1, 1]} : vector<8x96xf32> to vector<8x32xf32>
    %160 = arith.mulf %149, %159 : vector<8x32xf32>
    %161 = arith.addf %158, %160 : vector<8x32xf32>
    %162 = math.tanh %161 : vector<8x32xf32>
    %cst_42 = arith.constant 1.000000e+00 : f32
    %163 = vector.broadcast %cst_42 : f32 to vector<8x32xf32>
    %164 = arith.subf %163, %157 : vector<8x32xf32>
    %165 = arith.mulf %164, %162 : vector<8x32xf32>
    %166 = arith.mulf %157, %105 : vector<8x32xf32>
    %167 = arith.addf %165, %166 : vector<8x32xf32>
    %168 = vector.extract_strided_slice %5 {offsets = [40, 128], sizes = [8, 96], strides = [1, 1]} : vector<64x256xf32> to vector<8x96xf32>
    %cst_43 = arith.constant dense<0.000000e+00> : vector<8x96xf32>
    %169 = tpu.matmul %135, %8, %cst_43 {dimension_numbers = #tpu.dot_dimension_numbers<[1], [0], [0], [1], [0, 0, 1, 1], [], []>} : vector<8x32xf32>, vector<32x96xf32>, vector<8x96xf32> -> vector<8x96xf32>
    %170 = vector.broadcast %9 : vector<1x96xf32> to vector<8x96xf32>
    %171 = arith.addf %169, %170 : vector<8x96xf32>
    %172 = vector.extract_strided_slice %168 {offsets = [0, 0], sizes = [8, 32], strides = [1, 1]} : vector<8x96xf32> to vector<8x32xf32>
    %173 = vector.extract_strided_slice %171 {offsets = [0, 0], sizes = [8, 32], strides = [1, 1]} : vector<8x96xf32> to vector<8x32xf32>
    %174 = arith.addf %172, %173 : vector<8x32xf32>
    %175 = arith.negf %174 : vector<8x32xf32>
    %176 = math.exp %175 : vector<8x32xf32>
    %cst_44 = arith.constant 1.000000e+00 : f32
    %177 = vector.broadcast %cst_44 : f32 to vector<8x32xf32>
    %178 = arith.addf %177, %176 : vector<8x32xf32>
    %179 = arith.divf %177, %178 : vector<8x32xf32>
    %180 = vector.extract_strided_slice %168 {offsets = [0, 32], sizes = [8, 32], strides = [1, 1]} : vector<8x96xf32> to vector<8x32xf32>
    %181 = vector.extract_strided_slice %171 {offsets = [0, 32], sizes = [8, 32], strides = [1, 1]} : vector<8x96xf32> to vector<8x32xf32>
    %182 = arith.addf %180, %181 : vector<8x32xf32>
    %183 = arith.negf %182 : vector<8x32xf32>
    %184 = math.exp %183 : vector<8x32xf32>
    %cst_45 = arith.constant 1.000000e+00 : f32
    %185 = vector.broadcast %cst_45 : f32 to vector<8x32xf32>
    %186 = arith.addf %185, %184 : vector<8x32xf32>
    %187 = arith.divf %185, %186 : vector<8x32xf32>
    %188 = vector.extract_strided_slice %168 {offsets = [0, 64], sizes = [8, 32], strides = [1, 1]} : vector<8x96xf32> to vector<8x32xf32>
    %189 = vector.extract_strided_slice %171 {offsets = [0, 64], sizes = [8, 32], strides = [1, 1]} : vector<8x96xf32> to vector<8x32xf32>
    %190 = arith.mulf %179, %189 : vector<8x32xf32>
    %191 = arith.addf %188, %190 : vector<8x32xf32>
    %192 = math.tanh %191 : vector<8x32xf32>
    %cst_46 = arith.constant 1.000000e+00 : f32
    %193 = vector.broadcast %cst_46 : f32 to vector<8x32xf32>
    %194 = arith.subf %193, %187 : vector<8x32xf32>
    %195 = arith.mulf %194, %192 : vector<8x32xf32>
    %196 = arith.mulf %187, %135 : vector<8x32xf32>
    %197 = arith.addf %195, %196 : vector<8x32xf32>
    %c16 = arith.constant 16 : index
    %c0_47 = arith.constant 0 : index
    %198 = vector.load %arg17[%c16, %c0_47] : memref<64x32xf32, #tpu.memory_space<vmem>>, vector<8x32xf32>
    tpu.vector_store %arg17[%c16, %c0_47], %167 {strides = array<i32>} : memref<64x32xf32, #tpu.memory_space<vmem>>, vector<8x32xf32>,
    %c40 = arith.constant 40 : index
    %c0_48 = arith.constant 0 : index
    %199 = vector.load %arg18[%c40, %c0_48] : memref<64x32xf32, #tpu.memory_space<vmem>>, vector<8x32xf32>
    tpu.vector_store %arg18[%c40, %c0_48], %197 {strides = array<i32>} : memref<64x32xf32, #tpu.memory_space<vmem>>, vector<8x32xf32>,
    %200 = vector.extract_strided_slice %5 {offsets = [24, 0], sizes = [8, 96], strides = [1, 1]} : vector<64x256xf32> to vector<8x96xf32>
    %cst_49 = arith.constant dense<0.000000e+00> : vector<8x96xf32>
    %201 = tpu.matmul %167, %6, %cst_49 {dimension_numbers = #tpu.dot_dimension_numbers<[1], [0], [0], [1], [0, 0, 1, 1], [], []>} : vector<8x32xf32>, vector<32x96xf32>, vector<8x96xf32> -> vector<8x96xf32>
    %202 = vector.broadcast %7 : vector<1x96xf32> to vector<8x96xf32>
    %203 = arith.addf %201, %202 : vector<8x96xf32>
    %204 = vector.extract_strided_slice %200 {offsets = [0, 0], sizes = [8, 32], strides = [1, 1]} : vector<8x96xf32> to vector<8x32xf32>
    %205 = vector.extract_strided_slice %203 {offsets = [0, 0], sizes = [8, 32], strides = [1, 1]} : vector<8x96xf32> to vector<8x32xf32>
    %206 = arith.addf %204, %205 : vector<8x32xf32>
    %207 = arith.negf %206 : vector<8x32xf32>
    %208 = math.exp %207 : vector<8x32xf32>
    %cst_50 = arith.constant 1.000000e+00 : f32
    %209 = vector.broadcast %cst_50 : f32 to vector<8x32xf32>
    %210 = arith.addf %209, %208 : vector<8x32xf32>
    %211 = arith.divf %209, %210 : vector<8x32xf32>
    %212 = vector.extract_strided_slice %200 {offsets = [0, 32], sizes = [8, 32], strides = [1, 1]} : vector<8x96xf32> to vector<8x32xf32>
    %213 = vector.extract_strided_slice %203 {offsets = [0, 32], sizes = [8, 32], strides = [1, 1]} : vector<8x96xf32> to vector<8x32xf32>
    %214 = arith.addf %212, %213 : vector<8x32xf32>
    %215 = arith.negf %214 : vector<8x32xf32>
    %216 = math.exp %215 : vector<8x32xf32>
    %cst_51 = arith.constant 1.000000e+00 : f32
    %217 = vector.broadcast %cst_51 : f32 to vector<8x32xf32>
    %218 = arith.addf %217, %216 : vector<8x32xf32>
    %219 = arith.divf %217, %218 : vector<8x32xf32>
    %220 = vector.extract_strided_slice %200 {offsets = [0, 64], sizes = [8, 32], strides = [1, 1]} : vector<8x96xf32> to vector<8x32xf32>
    %221 = vector.extract_strided_slice %203 {offsets = [0, 64], sizes = [8, 32], strides = [1, 1]} : vector<8x96xf32> to vector<8x32xf32>
    %222 = arith.mulf %211, %221 : vector<8x32xf32>
    %223 = arith.addf %220, %222 : vector<8x32xf32>
    %224 = math.tanh %223 : vector<8x32xf32>
    %cst_52 = arith.constant 1.000000e+00 : f32
    %225 = vector.broadcast %cst_52 : f32 to vector<8x32xf32>
    %226 = arith.subf %225, %219 : vector<8x32xf32>
    %227 = arith.mulf %226, %224 : vector<8x32xf32>
    %228 = arith.mulf %219, %167 : vector<8x32xf32>
    %229 = arith.addf %227, %228 : vector<8x32xf32>
    %230 = vector.extract_strided_slice %5 {offsets = [32, 128], sizes = [8, 96], strides = [1, 1]} : vector<64x256xf32> to vector<8x96xf32>
    %cst_53 = arith.constant dense<0.000000e+00> : vector<8x96xf32>
    %231 = tpu.matmul %197, %8, %cst_53 {dimension_numbers = #tpu.dot_dimension_numbers<[1], [0], [0], [1], [0, 0, 1, 1], [], []>} : vector<8x32xf32>, vector<32x96xf32>, vector<8x96xf32> -> vector<8x96xf32>
    %232 = vector.broadcast %9 : vector<1x96xf32> to vector<8x96xf32>
    %233 = arith.addf %231, %232 : vector<8x96xf32>
    %234 = vector.extract_strided_slice %230 {offsets = [0, 0], sizes = [8, 32], strides = [1, 1]} : vector<8x96xf32> to vector<8x32xf32>
    %235 = vector.extract_strided_slice %233 {offsets = [0, 0], sizes = [8, 32], strides = [1, 1]} : vector<8x96xf32> to vector<8x32xf32>
    %236 = arith.addf %234, %235 : vector<8x32xf32>
    %237 = arith.negf %236 : vector<8x32xf32>
    %238 = math.exp %237 : vector<8x32xf32>
    %cst_54 = arith.constant 1.000000e+00 : f32
    %239 = vector.broadcast %cst_54 : f32 to vector<8x32xf32>
    %240 = arith.addf %239, %238 : vector<8x32xf32>
    %241 = arith.divf %239, %240 : vector<8x32xf32>
    %242 = vector.extract_strided_slice %230 {offsets = [0, 32], sizes = [8, 32], strides = [1, 1]} : vector<8x96xf32> to vector<8x32xf32>
    %243 = vector.extract_strided_slice %233 {offsets = [0, 32], sizes = [8, 32], strides = [1, 1]} : vector<8x96xf32> to vector<8x32xf32>
    %244 = arith.addf %242, %243 : vector<8x32xf32>
    %245 = arith.negf %244 : vector<8x32xf32>
    %246 = math.exp %245 : vector<8x32xf32>
    %cst_55 = arith.constant 1.000000e+00 : f32
    %247 = vector.broadcast %cst_55 : f32 to vector<8x32xf32>
    %248 = arith.addf %247, %246 : vector<8x32xf32>
    %249 = arith.divf %247, %248 : vector<8x32xf32>
    %250 = vector.extract_strided_slice %230 {offsets = [0, 64], sizes = [8, 32], strides = [1, 1]} : vector<8x96xf32> to vector<8x32xf32>
    %251 = vector.extract_strided_slice %233 {offsets = [0, 64], sizes = [8, 32], strides = [1, 1]} : vector<8x96xf32> to vector<8x32xf32>
    %252 = arith.mulf %241, %251 : vector<8x32xf32>
    %253 = arith.addf %250, %252 : vector<8x32xf32>
    %254 = math.tanh %253 : vector<8x32xf32>
    %cst_56 = arith.constant 1.000000e+00 : f32
    %255 = vector.broadcast %cst_56 : f32 to vector<8x32xf32>
    %256 = arith.subf %255, %249 : vector<8x32xf32>
    %257 = arith.mulf %256, %254 : vector<8x32xf32>
    %258 = arith.mulf %249, %197 : vector<8x32xf32>
    %259 = arith.addf %257, %258 : vector<8x32xf32>
    %c24 = arith.constant 24 : index
    %c0_57 = arith.constant 0 : index
    %260 = vector.load %arg17[%c24, %c0_57] : memref<64x32xf32, #tpu.memory_space<vmem>>, vector<8x32xf32>
    tpu.vector_store %arg17[%c24, %c0_57], %229 {strides = array<i32>} : memref<64x32xf32, #tpu.memory_space<vmem>>, vector<8x32xf32>,
    %c32 = arith.constant 32 : index
    %c0_58 = arith.constant 0 : index
    %261 = vector.load %arg18[%c32, %c0_58] : memref<64x32xf32, #tpu.memory_space<vmem>>, vector<8x32xf32>
    tpu.vector_store %arg18[%c32, %c0_58], %259 {strides = array<i32>} : memref<64x32xf32, #tpu.memory_space<vmem>>, vector<8x32xf32>,
    %262 = vector.extract_strided_slice %5 {offsets = [32, 0], sizes = [8, 96], strides = [1, 1]} : vector<64x256xf32> to vector<8x96xf32>
    %cst_59 = arith.constant dense<0.000000e+00> : vector<8x96xf32>
    %263 = tpu.matmul %229, %6, %cst_59 {dimension_numbers = #tpu.dot_dimension_numbers<[1], [0], [0], [1], [0, 0, 1, 1], [], []>} : vector<8x32xf32>, vector<32x96xf32>, vector<8x96xf32> -> vector<8x96xf32>
    %264 = vector.broadcast %7 : vector<1x96xf32> to vector<8x96xf32>
    %265 = arith.addf %263, %264 : vector<8x96xf32>
    %266 = vector.extract_strided_slice %262 {offsets = [0, 0], sizes = [8, 32], strides = [1, 1]} : vector<8x96xf32> to vector<8x32xf32>
    %267 = vector.extract_strided_slice %265 {offsets = [0, 0], sizes = [8, 32], strides = [1, 1]} : vector<8x96xf32> to vector<8x32xf32>
    %268 = arith.addf %266, %267 : vector<8x32xf32>
    %269 = arith.negf %268 : vector<8x32xf32>
    %270 = math.exp %269 : vector<8x32xf32>
    %cst_60 = arith.constant 1.000000e+00 : f32
    %271 = vector.broadcast %cst_60 : f32 to vector<8x32xf32>
    %272 = arith.addf %271, %270 : vector<8x32xf32>
    %273 = arith.divf %271, %272 : vector<8x32xf32>
    %274 = vector.extract_strided_slice %262 {offsets = [0, 32], sizes = [8, 32], strides = [1, 1]} : vector<8x96xf32> to vector<8x32xf32>
    %275 = vector.extract_strided_slice %265 {offsets = [0, 32], sizes = [8, 32], strides = [1, 1]} : vector<8x96xf32> to vector<8x32xf32>
    %276 = arith.addf %274, %275 : vector<8x32xf32>
    %277 = arith.negf %276 : vector<8x32xf32>
    %278 = math.exp %277 : vector<8x32xf32>
    %cst_61 = arith.constant 1.000000e+00 : f32
    %279 = vector.broadcast %cst_61 : f32 to vector<8x32xf32>
    %280 = arith.addf %279, %278 : vector<8x32xf32>
    %281 = arith.divf %279, %280 : vector<8x32xf32>
    %282 = vector.extract_strided_slice %262 {offsets = [0, 64], sizes = [8, 32], strides = [1, 1]} : vector<8x96xf32> to vector<8x32xf32>
    %283 = vector.extract_strided_slice %265 {offsets = [0, 64], sizes = [8, 32], strides = [1, 1]} : vector<8x96xf32> to vector<8x32xf32>
    %284 = arith.mulf %273, %283 : vector<8x32xf32>
    %285 = arith.addf %282, %284 : vector<8x32xf32>
    %286 = math.tanh %285 : vector<8x32xf32>
    %cst_62 = arith.constant 1.000000e+00 : f32
    %287 = vector.broadcast %cst_62 : f32 to vector<8x32xf32>
    %288 = arith.subf %287, %281 : vector<8x32xf32>
    %289 = arith.mulf %288, %286 : vector<8x32xf32>
    %290 = arith.mulf %281, %229 : vector<8x32xf32>
    %291 = arith.addf %289, %290 : vector<8x32xf32>
    %292 = vector.extract_strided_slice %5 {offsets = [24, 128], sizes = [8, 96], strides = [1, 1]} : vector<64x256xf32> to vector<8x96xf32>
    %cst_63 = arith.constant dense<0.000000e+00> : vector<8x96xf32>
    %293 = tpu.matmul %259, %8, %cst_63 {dimension_numbers = #tpu.dot_dimension_numbers<[1], [0], [0], [1], [0, 0, 1, 1], [], []>} : vector<8x32xf32>, vector<32x96xf32>, vector<8x96xf32> -> vector<8x96xf32>
    %294 = vector.broadcast %9 : vector<1x96xf32> to vector<8x96xf32>
    %295 = arith.addf %293, %294 : vector<8x96xf32>
    %296 = vector.extract_strided_slice %292 {offsets = [0, 0], sizes = [8, 32], strides = [1, 1]} : vector<8x96xf32> to vector<8x32xf32>
    %297 = vector.extract_strided_slice %295 {offsets = [0, 0], sizes = [8, 32], strides = [1, 1]} : vector<8x96xf32> to vector<8x32xf32>
    %298 = arith.addf %296, %297 : vector<8x32xf32>
    %299 = arith.negf %298 : vector<8x32xf32>
    %300 = math.exp %299 : vector<8x32xf32>
    %cst_64 = arith.constant 1.000000e+00 : f32
    %301 = vector.broadcast %cst_64 : f32 to vector<8x32xf32>
    %302 = arith.addf %301, %300 : vector<8x32xf32>
    %303 = arith.divf %301, %302 : vector<8x32xf32>
    %304 = vector.extract_strided_slice %292 {offsets = [0, 32], sizes = [8, 32], strides = [1, 1]} : vector<8x96xf32> to vector<8x32xf32>
    %305 = vector.extract_strided_slice %295 {offsets = [0, 32], sizes = [8, 32], strides = [1, 1]} : vector<8x96xf32> to vector<8x32xf32>
    %306 = arith.addf %304, %305 : vector<8x32xf32>
    %307 = arith.negf %306 : vector<8x32xf32>
    %308 = math.exp %307 : vector<8x32xf32>
    %cst_65 = arith.constant 1.000000e+00 : f32
    %309 = vector.broadcast %cst_65 : f32 to vector<8x32xf32>
    %310 = arith.addf %309, %308 : vector<8x32xf32>
    %311 = arith.divf %309, %310 : vector<8x32xf32>
    %312 = vector.extract_strided_slice %292 {offsets = [0, 64], sizes = [8, 32], strides = [1, 1]} : vector<8x96xf32> to vector<8x32xf32>
    %313 = vector.extract_strided_slice %295 {offsets = [0, 64], sizes = [8, 32], strides = [1, 1]} : vector<8x96xf32> to vector<8x32xf32>
    %314 = arith.mulf %303, %313 : vector<8x32xf32>
    %315 = arith.addf %312, %314 : vector<8x32xf32>
    %316 = math.tanh %315 : vector<8x32xf32>
    %cst_66 = arith.constant 1.000000e+00 : f32
    %317 = vector.broadcast %cst_66 : f32 to vector<8x32xf32>
    %318 = arith.subf %317, %311 : vector<8x32xf32>
    %319 = arith.mulf %318, %316 : vector<8x32xf32>
    %320 = arith.mulf %311, %259 : vector<8x32xf32>
    %321 = arith.addf %319, %320 : vector<8x32xf32>
    %c32_67 = arith.constant 32 : index
    %c0_68 = arith.constant 0 : index
    %322 = vector.load %arg17[%c32_67, %c0_68] : memref<64x32xf32, #tpu.memory_space<vmem>>, vector<8x32xf32>
    tpu.vector_store %arg17[%c32_67, %c0_68], %291 {strides = array<i32>} : memref<64x32xf32, #tpu.memory_space<vmem>>, vector<8x32xf32>,
    %c24_69 = arith.constant 24 : index
    %c0_70 = arith.constant 0 : index
    %323 = vector.load %arg18[%c24_69, %c0_70] : memref<64x32xf32, #tpu.memory_space<vmem>>, vector<8x32xf32>
    tpu.vector_store %arg18[%c24_69, %c0_70], %321 {strides = array<i32>} : memref<64x32xf32, #tpu.memory_space<vmem>>, vector<8x32xf32>,
    %324 = vector.extract_strided_slice %5 {offsets = [40, 0], sizes = [8, 96], strides = [1, 1]} : vector<64x256xf32> to vector<8x96xf32>
    %cst_71 = arith.constant dense<0.000000e+00> : vector<8x96xf32>
    %325 = tpu.matmul %291, %6, %cst_71 {dimension_numbers = #tpu.dot_dimension_numbers<[1], [0], [0], [1], [0, 0, 1, 1], [], []>} : vector<8x32xf32>, vector<32x96xf32>, vector<8x96xf32> -> vector<8x96xf32>
    %326 = vector.broadcast %7 : vector<1x96xf32> to vector<8x96xf32>
    %327 = arith.addf %325, %326 : vector<8x96xf32>
    %328 = vector.extract_strided_slice %324 {offsets = [0, 0], sizes = [8, 32], strides = [1, 1]} : vector<8x96xf32> to vector<8x32xf32>
    %329 = vector.extract_strided_slice %327 {offsets = [0, 0], sizes = [8, 32], strides = [1, 1]} : vector<8x96xf32> to vector<8x32xf32>
    %330 = arith.addf %328, %329 : vector<8x32xf32>
    %331 = arith.negf %330 : vector<8x32xf32>
    %332 = math.exp %331 : vector<8x32xf32>
    %cst_72 = arith.constant 1.000000e+00 : f32
    %333 = vector.broadcast %cst_72 : f32 to vector<8x32xf32>
    %334 = arith.addf %333, %332 : vector<8x32xf32>
    %335 = arith.divf %333, %334 : vector<8x32xf32>
    %336 = vector.extract_strided_slice %324 {offsets = [0, 32], sizes = [8, 32], strides = [1, 1]} : vector<8x96xf32> to vector<8x32xf32>
    %337 = vector.extract_strided_slice %327 {offsets = [0, 32], sizes = [8, 32], strides = [1, 1]} : vector<8x96xf32> to vector<8x32xf32>
    %338 = arith.addf %336, %337 : vector<8x32xf32>
    %339 = arith.negf %338 : vector<8x32xf32>
    %340 = math.exp %339 : vector<8x32xf32>
    %cst_73 = arith.constant 1.000000e+00 : f32
    %341 = vector.broadcast %cst_73 : f32 to vector<8x32xf32>
    %342 = arith.addf %341, %340 : vector<8x32xf32>
    %343 = arith.divf %341, %342 : vector<8x32xf32>
    %344 = vector.extract_strided_slice %324 {offsets = [0, 64], sizes = [8, 32], strides = [1, 1]} : vector<8x96xf32> to vector<8x32xf32>
    %345 = vector.extract_strided_slice %327 {offsets = [0, 64], sizes = [8, 32], strides = [1, 1]} : vector<8x96xf32> to vector<8x32xf32>
    %346 = arith.mulf %335, %345 : vector<8x32xf32>
    %347 = arith.addf %344, %346 : vector<8x32xf32>
    %348 = math.tanh %347 : vector<8x32xf32>
    %cst_74 = arith.constant 1.000000e+00 : f32
    %349 = vector.broadcast %cst_74 : f32 to vector<8x32xf32>
    %350 = arith.subf %349, %343 : vector<8x32xf32>
    %351 = arith.mulf %350, %348 : vector<8x32xf32>
    %352 = arith.mulf %343, %291 : vector<8x32xf32>
    %353 = arith.addf %351, %352 : vector<8x32xf32>
    %354 = vector.extract_strided_slice %5 {offsets = [16, 128], sizes = [8, 96], strides = [1, 1]} : vector<64x256xf32> to vector<8x96xf32>
    %cst_75 = arith.constant dense<0.000000e+00> : vector<8x96xf32>
    %355 = tpu.matmul %321, %8, %cst_75 {dimension_numbers = #tpu.dot_dimension_numbers<[1], [0], [0], [1], [0, 0, 1, 1], [], []>} : vector<8x32xf32>, vector<32x96xf32>, vector<8x96xf32> -> vector<8x96xf32>
    %356 = vector.broadcast %9 : vector<1x96xf32> to vector<8x96xf32>
    %357 = arith.addf %355, %356 : vector<8x96xf32>
    %358 = vector.extract_strided_slice %354 {offsets = [0, 0], sizes = [8, 32], strides = [1, 1]} : vector<8x96xf32> to vector<8x32xf32>
    %359 = vector.extract_strided_slice %357 {offsets = [0, 0], sizes = [8, 32], strides = [1, 1]} : vector<8x96xf32> to vector<8x32xf32>
    %360 = arith.addf %358, %359 : vector<8x32xf32>
    %361 = arith.negf %360 : vector<8x32xf32>
    %362 = math.exp %361 : vector<8x32xf32>
    %cst_76 = arith.constant 1.000000e+00 : f32
    %363 = vector.broadcast %cst_76 : f32 to vector<8x32xf32>
    %364 = arith.addf %363, %362 : vector<8x32xf32>
    %365 = arith.divf %363, %364 : vector<8x32xf32>
    %366 = vector.extract_strided_slice %354 {offsets = [0, 32], sizes = [8, 32], strides = [1, 1]} : vector<8x96xf32> to vector<8x32xf32>
    %367 = vector.extract_strided_slice %357 {offsets = [0, 32], sizes = [8, 32], strides = [1, 1]} : vector<8x96xf32> to vector<8x32xf32>
    %368 = arith.addf %366, %367 : vector<8x32xf32>
    %369 = arith.negf %368 : vector<8x32xf32>
    %370 = math.exp %369 : vector<8x32xf32>
    %cst_77 = arith.constant 1.000000e+00 : f32
    %371 = vector.broadcast %cst_77 : f32 to vector<8x32xf32>
    %372 = arith.addf %371, %370 : vector<8x32xf32>
    %373 = arith.divf %371, %372 : vector<8x32xf32>
    %374 = vector.extract_strided_slice %354 {offsets = [0, 64], sizes = [8, 32], strides = [1, 1]} : vector<8x96xf32> to vector<8x32xf32>
    %375 = vector.extract_strided_slice %357 {offsets = [0, 64], sizes = [8, 32], strides = [1, 1]} : vector<8x96xf32> to vector<8x32xf32>
    %376 = arith.mulf %365, %375 : vector<8x32xf32>
    %377 = arith.addf %374, %376 : vector<8x32xf32>
    %378 = math.tanh %377 : vector<8x32xf32>
    %cst_78 = arith.constant 1.000000e+00 : f32
    %379 = vector.broadcast %cst_78 : f32 to vector<8x32xf32>
    %380 = arith.subf %379, %373 : vector<8x32xf32>
    %381 = arith.mulf %380, %378 : vector<8x32xf32>
    %382 = arith.mulf %373, %321 : vector<8x32xf32>
    %383 = arith.addf %381, %382 : vector<8x32xf32>
    %c40_79 = arith.constant 40 : index
    %c0_80 = arith.constant 0 : index
    %384 = vector.load %arg17[%c40_79, %c0_80] : memref<64x32xf32, #tpu.memory_space<vmem>>, vector<8x32xf32>
    tpu.vector_store %arg17[%c40_79, %c0_80], %353 {strides = array<i32>} : memref<64x32xf32, #tpu.memory_space<vmem>>, vector<8x32xf32>,
    %c16_81 = arith.constant 16 : index
    %c0_82 = arith.constant 0 : index
    %385 = vector.load %arg18[%c16_81, %c0_82] : memref<64x32xf32, #tpu.memory_space<vmem>>, vector<8x32xf32>
    tpu.vector_store %arg18[%c16_81, %c0_82], %383 {strides = array<i32>} : memref<64x32xf32, #tpu.memory_space<vmem>>, vector<8x32xf32>,
    %386 = vector.extract_strided_slice %5 {offsets = [48, 0], sizes = [8, 96], strides = [1, 1]} : vector<64x256xf32> to vector<8x96xf32>
    %cst_83 = arith.constant dense<0.000000e+00> : vector<8x96xf32>
    %387 = tpu.matmul %353, %6, %cst_83 {dimension_numbers = #tpu.dot_dimension_numbers<[1], [0], [0], [1], [0, 0, 1, 1], [], []>} : vector<8x32xf32>, vector<32x96xf32>, vector<8x96xf32> -> vector<8x96xf32>
    %388 = vector.broadcast %7 : vector<1x96xf32> to vector<8x96xf32>
    %389 = arith.addf %387, %388 : vector<8x96xf32>
    %390 = vector.extract_strided_slice %386 {offsets = [0, 0], sizes = [8, 32], strides = [1, 1]} : vector<8x96xf32> to vector<8x32xf32>
    %391 = vector.extract_strided_slice %389 {offsets = [0, 0], sizes = [8, 32], strides = [1, 1]} : vector<8x96xf32> to vector<8x32xf32>
    %392 = arith.addf %390, %391 : vector<8x32xf32>
    %393 = arith.negf %392 : vector<8x32xf32>
    %394 = math.exp %393 : vector<8x32xf32>
    %cst_84 = arith.constant 1.000000e+00 : f32
    %395 = vector.broadcast %cst_84 : f32 to vector<8x32xf32>
    %396 = arith.addf %395, %394 : vector<8x32xf32>
    %397 = arith.divf %395, %396 : vector<8x32xf32>
    %398 = vector.extract_strided_slice %386 {offsets = [0, 32], sizes = [8, 32], strides = [1, 1]} : vector<8x96xf32> to vector<8x32xf32>
    %399 = vector.extract_strided_slice %389 {offsets = [0, 32], sizes = [8, 32], strides = [1, 1]} : vector<8x96xf32> to vector<8x32xf32>
    %400 = arith.addf %398, %399 : vector<8x32xf32>
    %401 = arith.negf %400 : vector<8x32xf32>
    %402 = math.exp %401 : vector<8x32xf32>
    %cst_85 = arith.constant 1.000000e+00 : f32
    %403 = vector.broadcast %cst_85 : f32 to vector<8x32xf32>
    %404 = arith.addf %403, %402 : vector<8x32xf32>
    %405 = arith.divf %403, %404 : vector<8x32xf32>
    %406 = vector.extract_strided_slice %386 {offsets = [0, 64], sizes = [8, 32], strides = [1, 1]} : vector<8x96xf32> to vector<8x32xf32>
    %407 = vector.extract_strided_slice %389 {offsets = [0, 64], sizes = [8, 32], strides = [1, 1]} : vector<8x96xf32> to vector<8x32xf32>
    %408 = arith.mulf %397, %407 : vector<8x32xf32>
    %409 = arith.addf %406, %408 : vector<8x32xf32>
    %410 = math.tanh %409 : vector<8x32xf32>
    %cst_86 = arith.constant 1.000000e+00 : f32
    %411 = vector.broadcast %cst_86 : f32 to vector<8x32xf32>
    %412 = arith.subf %411, %405 : vector<8x32xf32>
    %413 = arith.mulf %412, %410 : vector<8x32xf32>
    %414 = arith.mulf %405, %353 : vector<8x32xf32>
    %415 = arith.addf %413, %414 : vector<8x32xf32>
    %416 = vector.extract_strided_slice %5 {offsets = [8, 128], sizes = [8, 96], strides = [1, 1]} : vector<64x256xf32> to vector<8x96xf32>
    %cst_87 = arith.constant dense<0.000000e+00> : vector<8x96xf32>
    %417 = tpu.matmul %383, %8, %cst_87 {dimension_numbers = #tpu.dot_dimension_numbers<[1], [0], [0], [1], [0, 0, 1, 1], [], []>} : vector<8x32xf32>, vector<32x96xf32>, vector<8x96xf32> -> vector<8x96xf32>
    %418 = vector.broadcast %9 : vector<1x96xf32> to vector<8x96xf32>
    %419 = arith.addf %417, %418 : vector<8x96xf32>
    %420 = vector.extract_strided_slice %416 {offsets = [0, 0], sizes = [8, 32], strides = [1, 1]} : vector<8x96xf32> to vector<8x32xf32>
    %421 = vector.extract_strided_slice %419 {offsets = [0, 0], sizes = [8, 32], strides = [1, 1]} : vector<8x96xf32> to vector<8x32xf32>
    %422 = arith.addf %420, %421 : vector<8x32xf32>
    %423 = arith.negf %422 : vector<8x32xf32>
    %424 = math.exp %423 : vector<8x32xf32>
    %cst_88 = arith.constant 1.000000e+00 : f32
    %425 = vector.broadcast %cst_88 : f32 to vector<8x32xf32>
    %426 = arith.addf %425, %424 : vector<8x32xf32>
    %427 = arith.divf %425, %426 : vector<8x32xf32>
    %428 = vector.extract_strided_slice %416 {offsets = [0, 32], sizes = [8, 32], strides = [1, 1]} : vector<8x96xf32> to vector<8x32xf32>
    %429 = vector.extract_strided_slice %419 {offsets = [0, 32], sizes = [8, 32], strides = [1, 1]} : vector<8x96xf32> to vector<8x32xf32>
    %430 = arith.addf %428, %429 : vector<8x32xf32>
    %431 = arith.negf %430 : vector<8x32xf32>
    %432 = math.exp %431 : vector<8x32xf32>
    %cst_89 = arith.constant 1.000000e+00 : f32
    %433 = vector.broadcast %cst_89 : f32 to vector<8x32xf32>
    %434 = arith.addf %433, %432 : vector<8x32xf32>
    %435 = arith.divf %433, %434 : vector<8x32xf32>
    %436 = vector.extract_strided_slice %416 {offsets = [0, 64], sizes = [8, 32], strides = [1, 1]} : vector<8x96xf32> to vector<8x32xf32>
    %437 = vector.extract_strided_slice %419 {offsets = [0, 64], sizes = [8, 32], strides = [1, 1]} : vector<8x96xf32> to vector<8x32xf32>
    %438 = arith.mulf %427, %437 : vector<8x32xf32>
    %439 = arith.addf %436, %438 : vector<8x32xf32>
    %440 = math.tanh %439 : vector<8x32xf32>
    %cst_90 = arith.constant 1.000000e+00 : f32
    %441 = vector.broadcast %cst_90 : f32 to vector<8x32xf32>
    %442 = arith.subf %441, %435 : vector<8x32xf32>
    %443 = arith.mulf %442, %440 : vector<8x32xf32>
    %444 = arith.mulf %435, %383 : vector<8x32xf32>
    %445 = arith.addf %443, %444 : vector<8x32xf32>
    %c48_91 = arith.constant 48 : index
    %c0_92 = arith.constant 0 : index
    %446 = vector.load %arg17[%c48_91, %c0_92] : memref<64x32xf32, #tpu.memory_space<vmem>>, vector<8x32xf32>
    tpu.vector_store %arg17[%c48_91, %c0_92], %415 {strides = array<i32>} : memref<64x32xf32, #tpu.memory_space<vmem>>, vector<8x32xf32>,
    %c8_93 = arith.constant 8 : index
    %c0_94 = arith.constant 0 : index
    %447 = vector.load %arg18[%c8_93, %c0_94] : memref<64x32xf32, #tpu.memory_space<vmem>>, vector<8x32xf32>
    tpu.vector_store %arg18[%c8_93, %c0_94], %445 {strides = array<i32>} : memref<64x32xf32, #tpu.memory_space<vmem>>, vector<8x32xf32>,
    %448 = vector.extract_strided_slice %5 {offsets = [56, 0], sizes = [8, 96], strides = [1, 1]} : vector<64x256xf32> to vector<8x96xf32>
    %cst_95 = arith.constant dense<0.000000e+00> : vector<8x96xf32>
    %449 = tpu.matmul %415, %6, %cst_95 {dimension_numbers = #tpu.dot_dimension_numbers<[1], [0], [0], [1], [0, 0, 1, 1], [], []>} : vector<8x32xf32>, vector<32x96xf32>, vector<8x96xf32> -> vector<8x96xf32>
    %450 = vector.broadcast %7 : vector<1x96xf32> to vector<8x96xf32>
    %451 = arith.addf %449, %450 : vector<8x96xf32>
    %452 = vector.extract_strided_slice %448 {offsets = [0, 0], sizes = [8, 32], strides = [1, 1]} : vector<8x96xf32> to vector<8x32xf32>
    %453 = vector.extract_strided_slice %451 {offsets = [0, 0], sizes = [8, 32], strides = [1, 1]} : vector<8x96xf32> to vector<8x32xf32>
    %454 = arith.addf %452, %453 : vector<8x32xf32>
    %455 = arith.negf %454 : vector<8x32xf32>
    %456 = math.exp %455 : vector<8x32xf32>
    %cst_96 = arith.constant 1.000000e+00 : f32
    %457 = vector.broadcast %cst_96 : f32 to vector<8x32xf32>
    %458 = arith.addf %457, %456 : vector<8x32xf32>
    %459 = arith.divf %457, %458 : vector<8x32xf32>
    %460 = vector.extract_strided_slice %448 {offsets = [0, 32], sizes = [8, 32], strides = [1, 1]} : vector<8x96xf32> to vector<8x32xf32>
    %461 = vector.extract_strided_slice %451 {offsets = [0, 32], sizes = [8, 32], strides = [1, 1]} : vector<8x96xf32> to vector<8x32xf32>
    %462 = arith.addf %460, %461 : vector<8x32xf32>
    %463 = arith.negf %462 : vector<8x32xf32>
    %464 = math.exp %463 : vector<8x32xf32>
    %cst_97 = arith.constant 1.000000e+00 : f32
    %465 = vector.broadcast %cst_97 : f32 to vector<8x32xf32>
    %466 = arith.addf %465, %464 : vector<8x32xf32>
    %467 = arith.divf %465, %466 : vector<8x32xf32>
    %468 = vector.extract_strided_slice %448 {offsets = [0, 64], sizes = [8, 32], strides = [1, 1]} : vector<8x96xf32> to vector<8x32xf32>
    %469 = vector.extract_strided_slice %451 {offsets = [0, 64], sizes = [8, 32], strides = [1, 1]} : vector<8x96xf32> to vector<8x32xf32>
    %470 = arith.mulf %459, %469 : vector<8x32xf32>
    %471 = arith.addf %468, %470 : vector<8x32xf32>
    %472 = math.tanh %471 : vector<8x32xf32>
    %cst_98 = arith.constant 1.000000e+00 : f32
    %473 = vector.broadcast %cst_98 : f32 to vector<8x32xf32>
    %474 = arith.subf %473, %467 : vector<8x32xf32>
    %475 = arith.mulf %474, %472 : vector<8x32xf32>
    %476 = arith.mulf %467, %415 : vector<8x32xf32>
    %477 = arith.addf %475, %476 : vector<8x32xf32>
    %478 = vector.extract_strided_slice %5 {offsets = [0, 128], sizes = [8, 96], strides = [1, 1]} : vector<64x256xf32> to vector<8x96xf32>
    %cst_99 = arith.constant dense<0.000000e+00> : vector<8x96xf32>
    %479 = tpu.matmul %445, %8, %cst_99 {dimension_numbers = #tpu.dot_dimension_numbers<[1], [0], [0], [1], [0, 0, 1, 1], [], []>} : vector<8x32xf32>, vector<32x96xf32>, vector<8x96xf32> -> vector<8x96xf32>
    %480 = vector.broadcast %9 : vector<1x96xf32> to vector<8x96xf32>
    %481 = arith.addf %479, %480 : vector<8x96xf32>
    %482 = vector.extract_strided_slice %478 {offsets = [0, 0], sizes = [8, 32], strides = [1, 1]} : vector<8x96xf32> to vector<8x32xf32>
    %483 = vector.extract_strided_slice %481 {offsets = [0, 0], sizes = [8, 32], strides = [1, 1]} : vector<8x96xf32> to vector<8x32xf32>
    %484 = arith.addf %482, %483 : vector<8x32xf32>
    %485 = arith.negf %484 : vector<8x32xf32>
    %486 = math.exp %485 : vector<8x32xf32>
    %cst_100 = arith.constant 1.000000e+00 : f32
    %487 = vector.broadcast %cst_100 : f32 to vector<8x32xf32>
    %488 = arith.addf %487, %486 : vector<8x32xf32>
    %489 = arith.divf %487, %488 : vector<8x32xf32>
    %490 = vector.extract_strided_slice %478 {offsets = [0, 32], sizes = [8, 32], strides = [1, 1]} : vector<8x96xf32> to vector<8x32xf32>
    %491 = vector.extract_strided_slice %481 {offsets = [0, 32], sizes = [8, 32], strides = [1, 1]} : vector<8x96xf32> to vector<8x32xf32>
    %492 = arith.addf %490, %491 : vector<8x32xf32>
    %493 = arith.negf %492 : vector<8x32xf32>
    %494 = math.exp %493 : vector<8x32xf32>
    %cst_101 = arith.constant 1.000000e+00 : f32
    %495 = vector.broadcast %cst_101 : f32 to vector<8x32xf32>
    %496 = arith.addf %495, %494 : vector<8x32xf32>
    %497 = arith.divf %495, %496 : vector<8x32xf32>
    %498 = vector.extract_strided_slice %478 {offsets = [0, 64], sizes = [8, 32], strides = [1, 1]} : vector<8x96xf32> to vector<8x32xf32>
    %499 = vector.extract_strided_slice %481 {offsets = [0, 64], sizes = [8, 32], strides = [1, 1]} : vector<8x96xf32> to vector<8x32xf32>
    %500 = arith.mulf %489, %499 : vector<8x32xf32>
    %501 = arith.addf %498, %500 : vector<8x32xf32>
    %502 = math.tanh %501 : vector<8x32xf32>
    %cst_102 = arith.constant 1.000000e+00 : f32
    %503 = vector.broadcast %cst_102 : f32 to vector<8x32xf32>
    %504 = arith.subf %503, %497 : vector<8x32xf32>
    %505 = arith.mulf %504, %502 : vector<8x32xf32>
    %506 = arith.mulf %497, %445 : vector<8x32xf32>
    %507 = arith.addf %505, %506 : vector<8x32xf32>
    %c56_103 = arith.constant 56 : index
    %c0_104 = arith.constant 0 : index
    %508 = vector.load %arg17[%c56_103, %c0_104] : memref<64x32xf32, #tpu.memory_space<vmem>>, vector<8x32xf32>
    tpu.vector_store %arg17[%c56_103, %c0_104], %477 {strides = array<i32>} : memref<64x32xf32, #tpu.memory_space<vmem>>, vector<8x32xf32>,
    %c0_105 = arith.constant 0 : index
    %c0_106 = arith.constant 0 : index
    %509 = vector.load %arg18[%c0_105, %c0_106] : memref<64x32xf32, #tpu.memory_space<vmem>>, vector<8x32xf32>
    tpu.vector_store %arg18[%c0_105, %c0_106], %507 {strides = array<i32>} : memref<64x32xf32, #tpu.memory_space<vmem>>, vector<8x32xf32>,
    %c0_107 = arith.constant 0 : index
    %c0_108 = arith.constant 0 : index
    %c0_109 = arith.constant 0 : index
    %510 = vector.load %arg15[%c0_107, %c0_108, %c0_109] : memref<2x8x32xf32, #tpu.memory_space<vmem>>, vector<1x8x32xf32>
    %511 = vector.shape_cast %510 : vector<1x8x32xf32> to vector<8x32xf32>
    %512 = vector.shape_cast %477 : vector<8x32xf32> to vector<1x8x32xf32>
    tpu.vector_store %arg15[%c0_107, %c0_108, %c0_109], %512 {strides = array<i32>} : memref<2x8x32xf32, #tpu.memory_space<vmem>>, vector<1x8x32xf32>,
    %c1_110 = arith.constant 1 : index
    %c0_111 = arith.constant 0 : index
    %c0_112 = arith.constant 0 : index
    %513 = vector.load %arg15[%c1_110, %c0_111, %c0_112] : memref<2x8x32xf32, #tpu.memory_space<vmem>>, vector<1x8x32xf32>
    %514 = vector.shape_cast %513 : vector<1x8x32xf32> to vector<8x32xf32>
    %515 = vector.shape_cast %507 : vector<8x32xf32> to vector<1x8x32xf32>
    tpu.vector_store %arg15[%c1_110, %c0_111, %c0_112], %515 {strides = array<i32>} : memref<2x8x32xf32, #tpu.memory_space<vmem>>, vector<1x8x32xf32>,
    %c0_113 = arith.constant 0 : index
    %c0_114 = arith.constant 0 : index
    %516 = vector.load %arg17[%c0_113, %c0_114] : memref<64x32xf32, #tpu.memory_space<vmem>>, vector<64x32xf32>
    %c0_115 = arith.constant 0 : index
    %c0_116 = arith.constant 0 : index
    %517 = vector.load %arg18[%c0_115, %c0_116] : memref<64x32xf32, #tpu.memory_space<vmem>>, vector<64x32xf32>
    %518 = tpu.concatenate %516, %517 in 1 : vector<64x32xf32>, vector<64x32xf32> -> vector<64x64xf32>
    %c0_117 = arith.constant 0 : index
    %c0_118 = arith.constant 0 : index
    %519 = vector.load %arg9[%c0_117, %c0_118] : memref<64x64xf32, #tpu.memory_space<vmem>>, vector<64x64xf32>
    %cst_119 = arith.constant dense<0.000000e+00> : vector<64x64xf32>
    %520 = tpu.matmul %518, %519, %cst_119 {dimension_numbers = #tpu.dot_dimension_numbers<[1], [0], [0], [1], [0, 0, 1, 1], [], []>} : vector<64x64xf32>, vector<64x64xf32>, vector<64x64xf32> -> vector<64x64xf32>
    %c0_120 = arith.constant 0 : index
    %c0_121 = arith.constant 0 : index
    %521 = vector.load %arg10[%c0_120, %c0_121] : memref<1x64xf32, #tpu.memory_space<vmem>>, vector<1x64xf32>
    %522 = vector.broadcast %521 : vector<1x64xf32> to vector<64x64xf32>
    %523 = arith.addf %520, %522 : vector<64x64xf32>
    %524 = math.tanh %523 : vector<64x64xf32>
    %c0_122 = arith.constant 0 : index
    %c0_123 = arith.constant 0 : index
    %525 = vector.load %arg11[%c0_122, %c0_123] : memref<1x64xf32, #tpu.memory_space<vmem>>, vector<1x64xf32>
    %526 = vector.broadcast %525 : vector<1x64xf32> to vector<64x64xf32>
    %527 = arith.mulf %524, %526 : vector<64x64xf32>
    %528 = vector.extract_strided_slice %527 {offsets = [0, 0], sizes = [8, 64], strides = [1, 1]} : vector<64x64xf32> to vector<8x64xf32>
    %cst_124 = arith.constant dense<0.000000e+00> : vector<8xf32>
    %529 = vector.multi_reduction <add>, %528, %cst_124 [1] : vector<8x64xf32> to vector<8xf32>
    %530 = vector.shape_cast %529 : vector<8xf32> to vector<8x1xf32>
    %531 = vector.extract_strided_slice %527 {offsets = [8, 0], sizes = [8, 64], strides = [1, 1]} : vector<64x64xf32> to vector<8x64xf32>
    %cst_125 = arith.constant dense<0.000000e+00> : vector<8xf32>
    %532 = vector.multi_reduction <add>, %531, %cst_125 [1] : vector<8x64xf32> to vector<8xf32>
    %533 = vector.shape_cast %532 : vector<8xf32> to vector<8x1xf32>
    %534 = vector.extract_strided_slice %527 {offsets = [16, 0], sizes = [8, 64], strides = [1, 1]} : vector<64x64xf32> to vector<8x64xf32>
    %cst_126 = arith.constant dense<0.000000e+00> : vector<8xf32>
    %535 = vector.multi_reduction <add>, %534, %cst_126 [1] : vector<8x64xf32> to vector<8xf32>
    %536 = vector.shape_cast %535 : vector<8xf32> to vector<8x1xf32>
    %537 = vector.extract_strided_slice %527 {offsets = [24, 0], sizes = [8, 64], strides = [1, 1]} : vector<64x64xf32> to vector<8x64xf32>
    %cst_127 = arith.constant dense<0.000000e+00> : vector<8xf32>
    %538 = vector.multi_reduction <add>, %537, %cst_127 [1] : vector<8x64xf32> to vector<8xf32>
    %539 = vector.shape_cast %538 : vector<8xf32> to vector<8x1xf32>
    %540 = vector.extract_strided_slice %527 {offsets = [32, 0], sizes = [8, 64], strides = [1, 1]} : vector<64x64xf32> to vector<8x64xf32>
    %cst_128 = arith.constant dense<0.000000e+00> : vector<8xf32>
    %541 = vector.multi_reduction <add>, %540, %cst_128 [1] : vector<8x64xf32> to vector<8xf32>
    %542 = vector.shape_cast %541 : vector<8xf32> to vector<8x1xf32>
    %543 = vector.extract_strided_slice %527 {offsets = [40, 0], sizes = [8, 64], strides = [1, 1]} : vector<64x64xf32> to vector<8x64xf32>
    %cst_129 = arith.constant dense<0.000000e+00> : vector<8xf32>
    %544 = vector.multi_reduction <add>, %543, %cst_129 [1] : vector<8x64xf32> to vector<8xf32>
    %545 = vector.shape_cast %544 : vector<8xf32> to vector<8x1xf32>
    %546 = vector.extract_strided_slice %527 {offsets = [48, 0], sizes = [8, 64], strides = [1, 1]} : vector<64x64xf32> to vector<8x64xf32>
    %cst_130 = arith.constant dense<0.000000e+00> : vector<8xf32>
    %547 = vector.multi_reduction <add>, %546, %cst_130 [1] : vector<8x64xf32> to vector<8xf32>
    %548 = vector.shape_cast %547 : vector<8xf32> to vector<8x1xf32>
    %549 = vector.extract_strided_slice %527 {offsets = [56, 0], sizes = [8, 64], strides = [1, 1]} : vector<64x64xf32> to vector<8x64xf32>
    %cst_131 = arith.constant dense<0.000000e+00> : vector<8xf32>
    %550 = vector.multi_reduction <add>, %549, %cst_131 [1] : vector<8x64xf32> to vector<8xf32>
    %551 = vector.shape_cast %550 : vector<8xf32> to vector<8x1xf32>
    %552 = tpu.concatenate %530, %533, %536, %539, %542, %545, %548, %551 in 1 : vector<8x1xf32>, vector<8x1xf32>, vector<8x1xf32>, vector<8x1xf32>, vector<8x1xf32>, vector<8x1xf32>, vector<8x1xf32>, vector<8x1xf32> -> vector<8x8xf32>
    %cst_132 = arith.constant dense<0xFF800000> : vector<8xf32>
    %553 = vector.multi_reduction <maximumf>, %552, %cst_132 [1] : vector<8x8xf32> to vector<8xf32>
    %554 = vector.shape_cast %553 : vector<8xf32> to vector<8x1xf32>
    %555 = vector.broadcast %554 : vector<8x1xf32> to vector<8x8xf32>
    %556 = arith.subf %552, %555 : vector<8x8xf32>
    %557 = math.exp %556 : vector<8x8xf32>
    %cst_133 = arith.constant dense<0.000000e+00> : vector<8xf32>
    %558 = vector.multi_reduction <add>, %557, %cst_133 [1] : vector<8x8xf32> to vector<8xf32>
    %559 = vector.shape_cast %558 : vector<8xf32> to vector<8x1xf32>
    %560 = vector.broadcast %559 : vector<8x1xf32> to vector<8x8xf32>
    %561 = arith.divf %557, %560 : vector<8x8xf32>
    %c0_134 = arith.constant 0 : index
    %c0_135 = arith.constant 0 : index
    %562 = vector.load %arg2[%c0_134, %c0_135] : memref<8x8xf32, #tpu.memory_space<vmem>>, vector<8x8xf32>
    %563 = arith.mulf %561, %562 : vector<8x8xf32>
    %564 = math.absf %563 : vector<8x8xf32>
    %cst_136 = arith.constant dense<0.000000e+00> : vector<8xf32>
    %565 = vector.multi_reduction <add>, %564, %cst_136 [1] : vector<8x8xf32> to vector<8xf32>
    %566 = vector.shape_cast %565 : vector<8xf32> to vector<8x1xf32>
    %cst_137 = arith.constant 9.99999996E-13 : f32
    %567 = vector.broadcast %cst_137 : f32 to vector<8x1xf32>
    %568 = arith.maximumf %566, %567 : vector<8x1xf32>
    %569 = vector.broadcast %568 : vector<8x1xf32> to vector<8x8xf32>
    %570 = arith.divf %563, %569 : vector<8x8xf32>
    %c0_138 = arith.constant 0 : index
    %c0_139 = arith.constant 0 : index
    %571 = vector.load %arg16[%c0_138, %c0_139] : memref<8x8xf32, #tpu.memory_space<vmem>>, vector<8x8xf32>
    tpu.vector_store %arg16[%c0_138, %c0_139], %570 {strides = array<i32>} : memref<8x8xf32, #tpu.memory_space<vmem>>, vector<8x8xf32>,
    %572 = vector.extract_strided_slice %570 {offsets = [0, 0], sizes = [8, 1], strides = [1, 1]} : vector<8x8xf32> to vector<8x1xf32>
    %573 = vector.extract_strided_slice %518 {offsets = [0, 0], sizes = [8, 64], strides = [1, 1]} : vector<64x64xf32> to vector<8x64xf32>
    %574 = vector.broadcast %572 : vector<8x1xf32> to vector<8x64xf32>
    %575 = arith.mulf %574, %573 : vector<8x64xf32>
    %576 = vector.extract_strided_slice %570 {offsets = [0, 1], sizes = [8, 1], strides = [1, 1]} : vector<8x8xf32> to vector<8x1xf32>
    %577 = vector.extract_strided_slice %518 {offsets = [8, 0], sizes = [8, 64], strides = [1, 1]} : vector<64x64xf32> to vector<8x64xf32>
    %578 = vector.broadcast %576 : vector<8x1xf32> to vector<8x64xf32>
    %579 = arith.mulf %578, %577 : vector<8x64xf32>
    %580 = arith.addf %575, %579 : vector<8x64xf32>
    %581 = vector.extract_strided_slice %570 {offsets = [0, 2], sizes = [8, 1], strides = [1, 1]} : vector<8x8xf32> to vector<8x1xf32>
    %582 = vector.extract_strided_slice %518 {offsets = [16, 0], sizes = [8, 64], strides = [1, 1]} : vector<64x64xf32> to vector<8x64xf32>
    %583 = vector.broadcast %581 : vector<8x1xf32> to vector<8x64xf32>
    %584 = arith.mulf %583, %582 : vector<8x64xf32>
    %585 = arith.addf %580, %584 : vector<8x64xf32>
    %586 = vector.extract_strided_slice %570 {offsets = [0, 3], sizes = [8, 1], strides = [1, 1]} : vector<8x8xf32> to vector<8x1xf32>
    %587 = vector.extract_strided_slice %518 {offsets = [24, 0], sizes = [8, 64], strides = [1, 1]} : vector<64x64xf32> to vector<8x64xf32>
    %588 = vector.broadcast %586 : vector<8x1xf32> to vector<8x64xf32>
    %589 = arith.mulf %588, %587 : vector<8x64xf32>
    %590 = arith.addf %585, %589 : vector<8x64xf32>
    %591 = vector.extract_strided_slice %570 {offsets = [0, 4], sizes = [8, 1], strides = [1, 1]} : vector<8x8xf32> to vector<8x1xf32>
    %592 = vector.extract_strided_slice %518 {offsets = [32, 0], sizes = [8, 64], strides = [1, 1]} : vector<64x64xf32> to vector<8x64xf32>
    %593 = vector.broadcast %591 : vector<8x1xf32> to vector<8x64xf32>
    %594 = arith.mulf %593, %592 : vector<8x64xf32>
    %595 = arith.addf %590, %594 : vector<8x64xf32>
    %596 = vector.extract_strided_slice %570 {offsets = [0, 5], sizes = [8, 1], strides = [1, 1]} : vector<8x8xf32> to vector<8x1xf32>
    %597 = vector.extract_strided_slice %518 {offsets = [40, 0], sizes = [8, 64], strides = [1, 1]} : vector<64x64xf32> to vector<8x64xf32>
    %598 = vector.broadcast %596 : vector<8x1xf32> to vector<8x64xf32>
    %599 = arith.mulf %598, %597 : vector<8x64xf32>
    %600 = arith.addf %595, %599 : vector<8x64xf32>
    %601 = vector.extract_strided_slice %570 {offsets = [0, 6], sizes = [8, 1], strides = [1, 1]} : vector<8x8xf32> to vector<8x1xf32>
    %602 = vector.extract_strided_slice %518 {offsets = [48, 0], sizes = [8, 64], strides = [1, 1]} : vector<64x64xf32> to vector<8x64xf32>
    %603 = vector.broadcast %601 : vector<8x1xf32> to vector<8x64xf32>
    %604 = arith.mulf %603, %602 : vector<8x64xf32>
    %605 = arith.addf %600, %604 : vector<8x64xf32>
    %606 = vector.extract_strided_slice %570 {offsets = [0, 7], sizes = [8, 1], strides = [1, 1]} : vector<8x8xf32> to vector<8x1xf32>
    %607 = vector.extract_strided_slice %518 {offsets = [56, 0], sizes = [8, 64], strides = [1, 1]} : vector<64x64xf32> to vector<8x64xf32>
    %608 = vector.broadcast %606 : vector<8x1xf32> to vector<8x64xf32>
    %609 = arith.mulf %608, %607 : vector<8x64xf32>
    %610 = arith.addf %605, %609 : vector<8x64xf32>
    %c0_140 = arith.constant 0 : index
    %c0_141 = arith.constant 0 : index
    %611 = vector.load %arg12[%c0_140, %c0_141] : memref<64x128xf32, #tpu.memory_space<vmem>>, vector<64x128xf32>
    %cst_142 = arith.constant dense<0.000000e+00> : vector<8x128xf32>
    %612 = tpu.matmul %610, %611, %cst_142 {dimension_numbers = #tpu.dot_dimension_numbers<[1], [0], [0], [1], [0, 0, 1, 1], [], []>} : vector<8x64xf32>, vector<64x128xf32>, vector<8x128xf32> -> vector<8x128xf32>
    %c0_143 = arith.constant 0 : index
    %c0_144 = arith.constant 0 : index
    %613 = vector.load %arg13[%c0_143, %c0_144] : memref<1x128xf32, #tpu.memory_space<vmem>>, vector<1x128xf32>
    %614 = vector.broadcast %613 : vector<1x128xf32> to vector<8x128xf32>
    %615 = arith.addf %612, %614 : vector<8x128xf32>
    %cst_145 = arith.constant dense<0xFF800000> : vector<8xf32>
    %616 = vector.multi_reduction <maximumf>, %615, %cst_145 [1] : vector<8x128xf32> to vector<8xf32>
    %617 = vector.shape_cast %616 : vector<8xf32> to vector<8x1xf32>
    %618 = vector.broadcast %617 : vector<8x1xf32> to vector<8x128xf32>
    %619 = arith.subf %615, %618 : vector<8x128xf32>
    %620 = math.exp %619 : vector<8x128xf32>
    %cst_146 = arith.constant dense<0.000000e+00> : vector<8xf32>
    %621 = vector.multi_reduction <add>, %620, %cst_146 [1] : vector<8x128xf32> to vector<8xf32>
    %622 = vector.shape_cast %621 : vector<8xf32> to vector<8x1xf32>
    %623 = math.log %622 : vector<8x1xf32>
    %624 = vector.broadcast %623 : vector<8x1xf32> to vector<8x128xf32>
    %625 = arith.subf %619, %624 : vector<8x128xf32>
    %c0_147 = arith.constant 0 : index
    %c0_148 = arith.constant 0 : index
    %626 = vector.load %arg14[%c0_147, %c0_148] : memref<8x128xf32, #tpu.memory_space<vmem>>, vector<8x128xf32>
    tpu.vector_store %arg14[%c0_147, %c0_148], %625 {strides = array<i32>} : memref<8x128xf32, #tpu.memory_space<vmem>>, vector<8x128xf32>,
    return
  }
}

</mosaic_0001>

<llo_original>
// kernel: attention_sent_rnn_pallas.1
$region0: #{attention_sent_rnn_pallas.1}
  #allocation0 [shape = 'u32[]', space=smem, size = 0x4, offset = 0x4, fixed_abs, tag = 'smem constant byte address 0x4 - core index']
  #allocation1 [shape = 'u32[144,128]{1,0:T(1,128)}', space=vmem, size = 0x12000, scoped, tag = 'internal scratch']
  #allocation2 [shape = 'f32[64,32]{1,0:T(8,128)}', space=vmem, size = 0x8000, scoped, tag = 'scratch operand']
  #allocation3 [shape = 'f32[64,32]{1,0:T(8,128)}', space=vmem, size = 0x8000, scoped, tag = 'scratch operand']
  %s0 = inlined_call_operand.vmem [shape: f32[64,64], index: 0, kind: input, shape index: {}]
  %s1 = inlined_call_operand.vmem [shape: f32[2,8,32], index: 1, kind: input, shape index: {}]
  %s2 = inlined_call_operand.vmem [shape: f32[8,8], index: 2, kind: input, shape index: {}]
  %s3 = inlined_call_operand.vmem [shape: f32[64,256], index: 3, kind: input, shape index: {}]
  %s4 = inlined_call_operand.vmem [shape: f32[1,256], index: 4, kind: input, shape index: {}]
  %s5 = inlined_call_operand.vmem [shape: f32[32,96], index: 5, kind: input, shape index: {}]
  %s6 = inlined_call_operand.vmem [shape: f32[1,96], index: 6, kind: input, shape index: {}]
  %s7 = inlined_call_operand.vmem [shape: f32[32,96], index: 7, kind: input, shape index: {}]
  %s8 = inlined_call_operand.vmem [shape: f32[1,96], index: 8, kind: input, shape index: {}]
  %s9 = inlined_call_operand.vmem [shape: f32[64,64], index: 9, kind: input, shape index: {}]
  %s10 = inlined_call_operand.vmem [shape: f32[1,64], index: 10, kind: input, shape index: {}]
  %s11 = inlined_call_operand.vmem [shape: f32[1,64], index: 11, kind: input, shape index: {}]
  %s12 = inlined_call_operand.vmem [shape: f32[64,128], index: 12, kind: input, shape index: {}]
  %s13 = inlined_call_operand.vmem [shape: f32[1,128], index: 13, kind: input, shape index: {}]
  %s14 = inlined_call_operand.vmem [shape: f32[8,128], index: 14, kind: output, shape index: {0}]
  %s15 = inlined_call_operand.vmem [shape: f32[2,8,32], index: 15, kind: output, shape index: {1}]
  %s16 = inlined_call_operand.vmem [shape: f32[8,8], index: 16, kind: output, shape index: {2}]
  %17 = xla_tuple %s14, %s15, %s16
  %s18 = sld [smem:[#allocation0]]
  $region82: #{attention_sent_rnn_pallas.1} parent=0
    _
  %s20 = ssub.s32 1, %s18
  %s21 = scalar_select 0, %s20, %s18
  // Predicated region
  $region2: #{attention_sent_rnn_pallas.1} parent=0 // pred_check
    _
  $region3: #{attention_sent_rnn_pallas.1} parent=0 // pred_check_branch
    %23 = sbr.rel (0) target = $region5
  $region4: #{attention_sent_rnn_pallas.1} parent=0 // pred_region
    _
  $region5: #{attention_sent_rnn_pallas.1} parent=0 // pred_fallthru
    _
  // Predicated region
  $region6: #{attention_sent_rnn_pallas.1} parent=0 // pred_check
    _
  $region7: #{attention_sent_rnn_pallas.1} parent=0 // pred_check_branch
    %25 = sbr.rel (0) target = $region9
  $region8: #{attention_sent_rnn_pallas.1} parent=0 // pred_region
    _
  $region9: #{attention_sent_rnn_pallas.1} parent=0 // pred_fallthru
    _
  // Predicated region
  $region10: #{attention_sent_rnn_pallas.1} parent=0 // pred_check
    _
  $region11: #{attention_sent_rnn_pallas.1} parent=0 // pred_check_branch
    %27 = sbr.rel (0) target = $region13
  $region12: #{attention_sent_rnn_pallas.1} parent=0 // pred_region
    _
  $region13: #{attention_sent_rnn_pallas.1} parent=0 // pred_fallthru
    _
  // Predicated region
  $region14: #{attention_sent_rnn_pallas.1} parent=0 // pred_check
    _
  $region15: #{attention_sent_rnn_pallas.1} parent=0 // pred_check_branch
    %29 = sbr.rel (0) target = $region17
  $region16: #{attention_sent_rnn_pallas.1} parent=0 // pred_region
    _
  $region17: #{attention_sent_rnn_pallas.1} parent=0 // pred_fallthru
    _
  // Predicated region
  $region18: #{attention_sent_rnn_pallas.1} parent=0 // pred_check
    _
  $region19: #{attention_sent_rnn_pallas.1} parent=0 // pred_check_branch
    %31 = sbr.rel (0) target = $region21
  $region20: #{attention_sent_rnn_pallas.1} parent=0 // pred_region
    _
  $region21: #{attention_sent_rnn_pallas.1} parent=0 // pred_fallthru
    _
  // Predicated region
  $region22: #{attention_sent_rnn_pallas.1} parent=0 // pred_check
    _
  $region23: #{attention_sent_rnn_pallas.1} parent=0 // pred_check_branch
    %33 = sbr.rel (0) target = $region25
  $region24: #{attention_sent_rnn_pallas.1} parent=0 // pred_region
    _
  $region25: #{attention_sent_rnn_pallas.1} parent=0 // pred_fallthru
    _
  // Predicated region
  $region26: #{attention_sent_rnn_pallas.1} parent=0 // pred_check
    _
  $region27: #{attention_sent_rnn_pallas.1} parent=0 // pred_check_branch
    %35 = sbr.rel (0) target = $region29
  $region28: #{attention_sent_rnn_pallas.1} parent=0 // pred_region
    _
  $region29: #{attention_sent_rnn_pallas.1} parent=0 // pred_fallthru
    _
  // Predicated region
  $region30: #{attention_sent_rnn_pallas.1} parent=0 // pred_check
    _
  $region31: #{attention_sent_rnn_pallas.1} parent=0 // pred_check_branch
    %37 = sbr.rel (0) target = $region33
  $region32: #{attention_sent_rnn_pallas.1} parent=0 // pred_region
    _
  $region33: #{attention_sent_rnn_pallas.1} parent=0 // pred_fallthru
    _
  // Predicated region
  $region34: #{attention_sent_rnn_pallas.1} parent=0 // pred_check
    _
  $region35: #{attention_sent_rnn_pallas.1} parent=0 // pred_check_branch
    %39 = sbr.rel (0) target = $region37
  $region36: #{attention_sent_rnn_pallas.1} parent=0 // pred_region
    _
  $region37: #{attention_sent_rnn_pallas.1} parent=0 // pred_fallthru
    _
  // Predicated region
  $region38: #{attention_sent_rnn_pallas.1} parent=0 // pred_check
    _
  $region39: #{attention_sent_rnn_pallas.1} parent=0 // pred_check_branch
    %41 = sbr.rel (0) target = $region41
  $region40: #{attention_sent_rnn_pallas.1} parent=0 // pred_region
    _
  $region41: #{attention_sent_rnn_pallas.1} parent=0 // pred_fallthru
    _
  // Predicated region
  $region42: #{attention_sent_rnn_pallas.1} parent=0 // pred_check
    _
  $region43: #{attention_sent_rnn_pallas.1} parent=0 // pred_check_branch
    %43 = sbr.rel (0) target = $region45
  $region44: #{attention_sent_rnn_pallas.1} parent=0 // pred_region
    _
  $region45: #{attention_sent_rnn_pallas.1} parent=0 // pred_fallthru
    _
  // Predicated region
  $region46: #{attention_sent_rnn_pallas.1} parent=0 // pred_check
    _
  $region47: #{attention_sent_rnn_pallas.1} parent=0 // pred_check_branch
    %45 = sbr.rel (0) target = $region49
  $region48: #{attention_sent_rnn_pallas.1} parent=0 // pred_region
    _
  $region49: #{attention_sent_rnn_pallas.1} parent=0 // pred_fallthru
    _
  // Predicated region
  $region50: #{attention_sent_rnn_pallas.1} parent=0 // pred_check
    _
  $region51: #{attention_sent_rnn_pallas.1} parent=0 // pred_check_branch
    %47 = sbr.rel (0) target = $region53
  $region52: #{attention_sent_rnn_pallas.1} parent=0 // pred_region
    _
  $region53: #{attention_sent_rnn_pallas.1} parent=0 // pred_fallthru
    _
  // Predicated region
  $region54: #{attention_sent_rnn_pallas.1} parent=0 // pred_check
    _
  $region55: #{attention_sent_rnn_pallas.1} parent=0 // pred_check_branch
    %49 = sbr.rel (0) target = $region57
  $region56: #{attention_sent_rnn_pallas.1} parent=0 // pred_region
    _
  $region57: #{attention_sent_rnn_pallas.1} parent=0 // pred_fallthru
    _
  %v50 = vld [vmem:[%s0] sm:$0xff]
  %v51 = vld [vmem:[%s0 + $0x8] sm:$0xff]
  %v52 = vld [vmem:[%s0 + $0x10] sm:$0xff]
  %v53 = vld [vmem:[%s0 + $0x18] sm:$0xff]
  %v54 = vld [vmem:[%s0 + $0x20] sm:$0xff]
  %v55 = vld [vmem:[%s0 + $0x28] sm:$0xff]
  %v56 = vld [vmem:[%s0 + $0x30] sm:$0xff]
  %v57 = vld [vmem:[%s0 + $0x38] sm:$0xff]
  %v58 = vld [vmem:[%s3] sm:$0xff]
  %v59 = vld [vmem:[%s3 + $0x8] sm:$0xff]
  %v60 = vld [vmem:[%s3 + $0x10] sm:$0xff]
  %v61 = vld [vmem:[%s3 + $0x18] sm:$0xff]
  %v62 = vld [vmem:[%s3 + $0x20] sm:$0xff]
  %v63 = vld [vmem:[%s3 + $0x28] sm:$0xff]
  %v64 = vld [vmem:[%s3 + $0x30] sm:$0xff]
  %v65 = vld [vmem:[%s3 + $0x38] sm:$0xff]
  %v66 = vld [vmem:[%s3 + $0x40] sm:$0xff]
  %v67 = vld [vmem:[%s3 + $0x48] sm:$0xff]
  %v68 = vld [vmem:[%s3 + $0x50] sm:$0xff]
  %v69 = vld [vmem:[%s3 + $0x58] sm:$0xff]
  %v70 = vld [vmem:[%s3 + $0x60] sm:$0xff]
  %v71 = vld [vmem:[%s3 + $0x68] sm:$0xff]
  %v72 = vld [vmem:[%s3 + $0x70] sm:$0xff]
  %v73 = vld [vmem:[%s3 + $0x78] sm:$0xff]
  %v74 = vld [vmem:[%s4] sm:$0x3]
  %v76 = vlaneseq
  %v77 = vshrl.u32 %v76, 7
  %v78 = vsub.s32 0, %v77
  %v79 = vrot.slane %v74, %v78
  %v80 = vlaneseq
  %v81 = vshrl.u32 %v80, 7
  %v82 = vsub.s32 1, %v81
  %v83 = vrot.slane %v74, %v82
  %vm86 = vcmask 523264
  %v88 = vsel %vm86, %v50, 0
  %v91 = vsel %vm86, %v51, 0
  %v94 = vsel %vm86, %v52, 0
  %v97 = vsel %vm86, %v53, 0
  %v100 = vsel %vm86, %v54, 0
  %v103 = vsel %vm86, %v55, 0
  %v106 = vsel %vm86, %v56, 0
  %v109 = vsel %vm86, %v57, 0
  %111 = vmatprep.subr.mxu0 0.0
  %112 = vmatpush1.msra.mxu0 0.0
  %113 = vmatprep.subr.mxu0 0.0
  %114 = vmatpush1.msra.mxu0 0.0
  %115 = vmatprep.subr.mxu0 0.0
  %116 = vmatpush1.msra.mxu0 0.0
  %117 = vmatprep.subr.mxu0 0.0
  %118 = vmatpush1.msra.mxu0 0.0
  %119 = vmatprep.subr.mxu0 0.0
  %120 = vmatpush1.msra.mxu0 0.0
  %121 = vmatprep.subr.mxu0 0.0
  %122 = vmatpush1.msra.mxu0 0.0
  %123 = vmatprep.subr.mxu0 0.0
  %124 = vmatpush1.msra.mxu0 0.0
  %125 = vmatprep.subr.mxu0 0.0
  %126 = vmatpush1.msra.mxu0 0.0
  %127 = vmatprep.subr.mxu0 %v73
  %128 = vmatpush1.msra.mxu0 %v72
  %129 = vmatprep.subr.mxu0 %v71
  %130 = vmatpush1.msra.mxu0 %v70
  %131 = vmatprep.subr.mxu0 %v69
  %132 = vmatpush1.msra.mxu0 %v68
  %133 = vmatprep.subr.mxu0 %v67
  %134 = vmatpush1.msra.mxu0 %v66
  %135 = vmatprep.subr.mxu0 %v65
  %136 = vmatpush1.msra.mxu0 %v64
  %137 = vmatprep.subr.mxu0 %v63
  %138 = vmatpush1.msra.mxu0 %v62
  %139 = vmatprep.subr.mxu0 %v61
  %140 = vmatpush1.msra.mxu0 %v60
  %141 = vmatprep.subr.mxu0 %v59
  %142 = vmatpush1.msra.mxu0 %v58
  %143 = vmatprep.subr.mxu0 0.0
  %144 = vmatpush2.msra.mxu0 0.0
  %145 = vmatprep.subr.mxu0 0.0
  %146 = vmatpush2.msra.mxu0 0.0
  %147 = vmatprep.subr.mxu0 0.0
  %148 = vmatpush2.msra.mxu0 0.0
  %149 = vmatprep.subr.mxu0 0.0
  %150 = vmatpush2.msra.mxu0 0.0
  %151 = vmatprep.subr.mxu0 0.0
  %152 = vmatpush2.msra.mxu0 0.0
  %153 = vmatprep.subr.mxu0 0.0
  %154 = vmatpush2.msra.mxu0 0.0
  %155 = vmatprep.subr.mxu0 0.0
  %156 = vmatpush2.msra.mxu0 0.0
  %157 = vmatprep.subr.mxu0 0.0
  %158 = vmatpush2.msra.mxu0 0.0
  %159 = vmatprep.subr.mxu0 0.0
  %160 = vmatpush2.msra.mxu0 0.0
  %161 = vmatprep.subr.mxu0 0.0
  %162 = vmatpush2.msra.mxu0 0.0
  %163 = vmatprep.subr.mxu0 0.0
  %164 = vmatpush2.msra.mxu0 0.0
  %165 = vmatprep.subr.mxu0 0.0
  %166 = vmatpush2.msra.mxu0 0.0
  %167 = vmatprep.subr.mxu0 0.0
  %168 = vmatpush2.msra.mxu0 0.0
  %169 = vmatprep.subr.mxu0 0.0
  %170 = vmatpush2.msra.mxu0 0.0
  %171 = vmatprep.subr.mxu0 0.0
  %172 = vmatpush2.msra.mxu0 0.0
  %173 = vmatprep.subr.mxu0 0.0
  %174 = vmatpush2.msra.mxu0 0.0
  %175 = vmatprep.mubr.f32.mxu0 0.0
  %176 = vmatmul.mubr.f32.gmra.mxu0 %v88
  %v177 = vpop.f32.mrf.mxu0
  %v178 = vadd.f32 %v79, %v177
  %v179 = vpop.f32.mrf.mxu0
  %v180 = vadd.f32 %v83, %v179
  %181 = vmatprep.mubr.f32.mxu0 0.0
  %182 = vmatmul.mubr.f32.gmra.mxu0 %v91
  %v183 = vpop.f32.mrf.mxu0
  %v184 = vadd.f32 %v79, %v183
  %v185 = vpop.f32.mrf.mxu0
  %v186 = vadd.f32 %v83, %v185
  %187 = vmatprep.mubr.f32.mxu0 0.0
  %188 = vmatmul.mubr.f32.gmra.mxu0 %v94
  %v189 = vpop.f32.mrf.mxu0
  %v190 = vadd.f32 %v79, %v189
  %v191 = vpop.f32.mrf.mxu0
  %v192 = vadd.f32 %v83, %v191
  %193 = vmatprep.mubr.f32.mxu0 0.0
  %194 = vmatmul.mubr.f32.gmra.mxu0 %v97
  %v195 = vpop.f32.mrf.mxu0
  %v196 = vadd.f32 %v79, %v195
  %v197 = vpop.f32.mrf.mxu0
  %v198 = vadd.f32 %v83, %v197
  %199 = vmatprep.mubr.f32.mxu0 0.0
  %200 = vmatmul.mubr.f32.gmra.mxu0 %v100
  %v201 = vpop.f32.mrf.mxu0
  %v202 = vadd.f32 %v79, %v201
  %v203 = vpop.f32.mrf.mxu0
  %v204 = vadd.f32 %v83, %v203
  %205 = vmatprep.mubr.f32.mxu0 0.0
  %206 = vmatmul.mubr.f32.gmra.mxu0 %v103
  %v207 = vpop.f32.mrf.mxu0
  %v208 = vadd.f32 %v79, %v207
  %v209 = vpop.f32.mrf.mxu0
  %v210 = vadd.f32 %v83, %v209
  %211 = vmatprep.mubr.f32.mxu0 0.0
  %212 = vmatmul.mubr.f32.gmra.mxu0 %v106
  %v213 = vpop.f32.mrf.mxu0
  %v214 = vadd.f32 %v79, %v213
  %v215 = vpop.f32.mrf.mxu0
  %v216 = vadd.f32 %v83, %v215
  %217 = vmatprep.mubr.f32.mxu0 0.0
  %218 = vmatmul.mubr.f32.gmra.mxu0 %v109
  %v219 = vpop.f32.mrf.mxu0
  %v220 = vadd.f32 %v79, %v219
  %v221 = vpop.f32.mrf.mxu0
  %v222 = vadd.f32 %v83, %v221
  %223 = vdwg.mxu0
  %v224 = vld [vmem:[%s5] sm:$0xff]
  %v225 = vld [vmem:[%s5 + $0x8] sm:$0xff]
  %v226 = vld [vmem:[%s5 + $0x10] sm:$0xff]
  %v227 = vld [vmem:[%s5 + $0x18] sm:$0xff]
  %v228 = vld [vmem:[%s6] sm:$0x1]
  %v229 = vld [vmem:[%s7] sm:$0xff]
  %v230 = vld [vmem:[%s7 + $0x8] sm:$0xff]
  %v231 = vld [vmem:[%s7 + $0x10] sm:$0xff]
  %v232 = vld [vmem:[%s7 + $0x18] sm:$0xff]
  %v233 = vld [vmem:[%s8] sm:$0x1]
  %v234 = vld [vmem:[%s1] sm:$0xff]
  %s235 = scalar_lea.vmem %s1, 8
  %v236 = vld [vmem:[%s235] sm:$0xff]
  %v238 = vlaneseq
  %v239 = vshrl.u32 %v238, 7
  %v240 = vsub.s32 0, %v239
  %v241 = vrot.slane %v228, %v240
  %vm243 = vcmask 261120
  %v245 = vsel %vm243, %v234, 0
  %247 = vmatprep.subr.mxu0 0.0
  %248 = vmatpush1.msra.mxu0 0.0
  %249 = vmatprep.subr.mxu0 0.0
  %250 = vmatpush1.msra.mxu0 0.0
  %251 = vmatprep.subr.mxu0 0.0
  %252 = vmatpush1.msra.mxu0 0.0
  %253 = vmatprep.subr.mxu0 0.0
  %254 = vmatpush1.msra.mxu0 0.0
  %255 = vmatprep.subr.mxu0 0.0
  %256 = vmatpush1.msra.mxu0 0.0
  %257 = vmatprep.subr.mxu0 0.0
  %258 = vmatpush1.msra.mxu0 0.0
  %259 = vmatprep.subr.mxu0 0.0
  %260 = vmatpush1.msra.mxu0 0.0
  %261 = vmatprep.subr.mxu0 0.0
  %262 = vmatpush1.msra.mxu0 0.0
  %263 = vmatprep.subr.mxu0 0.0
  %264 = vmatpush1.msra.mxu0 0.0
  %265 = vmatprep.subr.mxu0 0.0
  %266 = vmatpush1.msra.mxu0 0.0
  %267 = vmatprep.subr.mxu0 0.0
  %268 = vmatpush1.msra.mxu0 0.0
  %269 = vmatprep.subr.mxu0 0.0
  %270 = vmatpush1.msra.mxu0 0.0
  %271 = vmatprep.subr.mxu0 0.0
  %272 = vmatpush1.msra.mxu0 %v227
  %273 = vmatprep.subr.mxu0 0.0
  %274 = vmatpush1.msra.mxu0 %v226
  %275 = vmatprep.subr.mxu0 0.0
  %276 = vmatpush1.msra.mxu0 %v225
  %277 = vmatprep.subr.mxu0 0.0
  %278 = vmatpush1.msra.mxu0 %v224
  %279 = vmatprep.subr.mxu0 0.0
  %280 = vmatpush2.msra.mxu0 0.0
  %281 = vmatprep.subr.mxu0 0.0
  %282 = vmatpush2.msra.mxu0 0.0
  %283 = vmatprep.subr.mxu0 0.0
  %284 = vmatpush2.msra.mxu0 0.0
  %285 = vmatprep.subr.mxu0 0.0
  %286 = vmatpush2.msra.mxu0 0.0
  %287 = vmatprep.subr.mxu0 0.0
  %288 = vmatpush2.msra.mxu0 0.0
  %289 = vmatprep.subr.mxu0 0.0
  %290 = vmatpush2.msra.mxu0 0.0
  %291 = vmatprep.subr.mxu0 0.0
  %292 = vmatpush2.msra.mxu0 0.0
  %293 = vmatprep.subr.mxu0 0.0
  %294 = vmatpush2.msra.mxu0 0.0
  %295 = vmatprep.subr.mxu0 0.0
  %296 = vmatpush2.msra.mxu0 0.0
  %297 = vmatprep.subr.mxu0 0.0
  %298 = vmatpush2.msra.mxu0 0.0
  %299 = vmatprep.subr.mxu0 0.0
  %300 = vmatpush2.msra.mxu0 0.0
  %301 = vmatprep.subr.mxu0 0.0
  %302 = vmatpush2.msra.mxu0 0.0
  %303 = vmatprep.subr.mxu0 0.0
  %304 = vmatpush2.msra.mxu0 0.0
  %305 = vmatprep.subr.mxu0 0.0
  %306 = vmatpush2.msra.mxu0 0.0
  %307 = vmatprep.subr.mxu0 0.0
  %308 = vmatpush2.msra.mxu0 0.0
  %309 = vmatprep.subr.mxu0 0.0
  %310 = vmatpush2.msra.mxu0 0.0
  %311 = vmatprep.mubr.f32.mxu0 0.0
  %312 = vmatmul.mubr.f32.gmra.mxu0 %v245
  %v313 = vpop.f32.mrf.mxu0
  %v314 = vadd.f32 %v241, %v313
  %v315 = vpop.f32.mrf.mxu0
  %316 = vdwg.mxu0
  %v317 = vadd.f32 %v178, %v314
  %v318 = vxor.u32 %v317, 2147483648
  %v319 = vmul.f32 %v318, 1.442695
  %v320 = vpow.pop %v319
  %v321 = vadd.f32 %v320, 1.0
  %v322 = vrcp.pop %v321
  %v323 = vmul.f32 1.0, %v322
  %325 = vrot.lane.b32.xlu0 %v314, 64
  %v326 = vpop.permute.xlu0 %325
  %v328 = vmul.f32 %v323, %v326
  %330 = vrot.lane.b32.xlu0 %v328, 64
  %v331 = vpop.permute.xlu0 %330
  %v333 = vadd.f32 %v178, %v331
  %v334 = vtanh.pop %v333
  %v335 = vsub.f32 1.0, %v323
  %337 = vrot.lane.b32.xlu0 %v334, 96
  %v338 = vpop.permute.xlu0 %337
  %v340 = vmul.f32 %v335, %v338
  %341 = vrot.lane.b32.xlu0 %v234, 32
  %v342 = vpop.permute.xlu0 %341
  %v344 = vmul.f32 %v323, %v342
  %v345 = vadd.f32 %v340, %v344
  %v347 = vlaneseq
  %v348 = vshrl.u32 %v347, 7
  %v349 = vsub.s32 0, %v348
  %v350 = vrot.slane %v233, %v349
  %v353 = vsel %vm243, %v236, 0
  %355 = vmatprep.subr.mxu0 0.0
  %356 = vmatpush1.msra.mxu0 0.0
  %357 = vmatprep.subr.mxu0 0.0
  %358 = vmatpush1.msra.mxu0 0.0
  %359 = vmatprep.subr.mxu0 0.0
  %360 = vmatpush1.msra.mxu0 0.0
  %361 = vmatprep.subr.mxu0 0.0
  %362 = vmatpush1.msra.mxu0 0.0
  %363 = vmatprep.subr.mxu0 0.0
  %364 = vmatpush1.msra.mxu0 0.0
  %365 = vmatprep.subr.mxu0 0.0
  %366 = vmatpush1.msra.mxu0 0.0
  %367 = vmatprep.subr.mxu0 0.0
  %368 = vmatpush1.msra.mxu0 0.0
  %369 = vmatprep.subr.mxu0 0.0
  %370 = vmatpush1.msra.mxu0 0.0
  %371 = vmatprep.subr.mxu0 0.0
  %372 = vmatpush1.msra.mxu0 0.0
  %373 = vmatprep.subr.mxu0 0.0
  %374 = vmatpush1.msra.mxu0 0.0
  %375 = vmatprep.subr.mxu0 0.0
  %376 = vmatpush1.msra.mxu0 0.0
  %377 = vmatprep.subr.mxu0 0.0
  %378 = vmatpush1.msra.mxu0 0.0
  %379 = vmatprep.subr.mxu0 0.0
  %380 = vmatpush1.msra.mxu0 %v232
  %381 = vmatprep.subr.mxu0 0.0
  %382 = vmatpush1.msra.mxu0 %v231
  %383 = vmatprep.subr.mxu0 0.0
  %384 = vmatpush1.msra.mxu0 %v230
  %385 = vmatprep.subr.mxu0 0.0
  %386 = vmatpush1.msra.mxu0 %v229
  %387 = vmatprep.subr.mxu0 0.0
  %388 = vmatpush2.msra.mxu0 0.0
  %389 = vmatprep.subr.mxu0 0.0
  %390 = vmatpush2.msra.mxu0 0.0
  %391 = vmatprep.subr.mxu0 0.0
  %392 = vmatpush2.msra.mxu0 0.0
  %393 = vmatprep.subr.mxu0 0.0
  %394 = vmatpush2.msra.mxu0 0.0
  %395 = vmatprep.subr.mxu0 0.0
  %396 = vmatpush2.msra.mxu0 0.0
  %397 = vmatprep.subr.mxu0 0.0
  %398 = vmatpush2.msra.mxu0 0.0
  %399 = vmatprep.subr.mxu0 0.0
  %400 = vmatpush2.msra.mxu0 0.0
  %401 = vmatprep.subr.mxu0 0.0
  %402 = vmatpush2.msra.mxu0 0.0
  %403 = vmatprep.subr.mxu0 0.0
  %404 = vmatpush2.msra.mxu0 0.0
  %405 = vmatprep.subr.mxu0 0.0
  %406 = vmatpush2.msra.mxu0 0.0
  %407 = vmatprep.subr.mxu0 0.0
  %408 = vmatpush2.msra.mxu0 0.0
  %409 = vmatprep.subr.mxu0 0.0
  %410 = vmatpush2.msra.mxu0 0.0
  %411 = vmatprep.subr.mxu0 0.0
  %412 = vmatpush2.msra.mxu0 0.0
  %413 = vmatprep.subr.mxu0 0.0
  %414 = vmatpush2.msra.mxu0 0.0
  %415 = vmatprep.subr.mxu0 0.0
  %416 = vmatpush2.msra.mxu0 0.0
  %417 = vmatprep.subr.mxu0 0.0
  %418 = vmatpush2.msra.mxu0 0.0
  %419 = vmatprep.mubr.f32.mxu0 0.0
  %420 = vmatmul.mubr.f32.gmra.mxu0 %v353
  %v421 = vpop.f32.mrf.mxu0
  %v422 = vadd.f32 %v350, %v421
  %v423 = vpop.f32.mrf.mxu0
  %424 = vdwg.mxu0
  %v425 = vadd.f32 %v222, %v422
  %v426 = vxor.u32 %v425, 2147483648
  %v427 = vmul.f32 %v426, 1.442695
  %v428 = vpow.pop %v427
  %v429 = vadd.f32 %v428, 1.0
  %v430 = vrcp.pop %v429
  %v431 = vmul.f32 1.0, %v430
  %433 = vrot.lane.b32.xlu0 %v422, 64
  %v434 = vpop.permute.xlu0 %433
  %v436 = vmul.f32 %v431, %v434
  %438 = vrot.lane.b32.xlu0 %v436, 64
  %v439 = vpop.permute.xlu0 %438
  %v441 = vadd.f32 %v222, %v439
  %v442 = vtanh.pop %v441
  %v443 = vsub.f32 1.0, %v431
  %445 = vrot.lane.b32.xlu0 %v442, 96
  %v446 = vpop.permute.xlu0 %445
  %v448 = vmul.f32 %v443, %v446
  %449 = vrot.lane.b32.xlu0 %v236, 32
  %v450 = vpop.permute.xlu0 %449
  %v452 = vmul.f32 %v431, %v450
  %v453 = vadd.f32 %v448, %v452
  %455 = vrot.lane.b32.xlu0 %v345, 96
  %v456 = vpop.permute.xlu0 %455
  %458 = vst.msk [vmem:[#allocation2] sm:$0xff] %vm243, %v456
  %460 = vrot.lane.b32.xlu0 %v453, 96
  %v461 = vpop.permute.xlu0 %460
  %463 = vst.msk [vmem:[#allocation3 + $0x38] sm:$0xff] %vm243, %v461
  %v464 = vsel %vm243, %v456, 0
  %466 = vmatprep.subr.mxu0 0.0
  %467 = vmatpush1.msra.mxu0 0.0
  %468 = vmatprep.subr.mxu0 0.0
  %469 = vmatpush1.msra.mxu0 0.0
  %470 = vmatprep.subr.mxu0 0.0
  %471 = vmatpush1.msra.mxu0 0.0
  %472 = vmatprep.subr.mxu0 0.0
  %473 = vmatpush1.msra.mxu0 0.0
  %474 = vmatprep.subr.mxu0 0.0
  %475 = vmatpush1.msra.mxu0 0.0
  %476 = vmatprep.subr.mxu0 0.0
  %477 = vmatpush1.msra.mxu0 0.0
  %478 = vmatprep.subr.mxu0 0.0
  %479 = vmatpush1.msra.mxu0 0.0
  %480 = vmatprep.subr.mxu0 0.0
  %481 = vmatpush1.msra.mxu0 0.0
  %482 = vmatprep.subr.mxu0 0.0
  %483 = vmatpush1.msra.mxu0 0.0
  %484 = vmatprep.subr.mxu0 0.0
  %485 = vmatpush1.msra.mxu0 0.0
  %486 = vmatprep.subr.mxu0 0.0
  %487 = vmatpush1.msra.mxu0 0.0
  %488 = vmatprep.subr.mxu0 0.0
  %489 = vmatpush1.msra.mxu0 0.0
  %490 = vmatprep.subr.mxu0 0.0
  %491 = vmatpush1.msra.mxu0 %v227
  %492 = vmatprep.subr.mxu0 0.0
  %493 = vmatpush1.msra.mxu0 %v226
  %494 = vmatprep.subr.mxu0 0.0
  %495 = vmatpush1.msra.mxu0 %v225
  %496 = vmatprep.subr.mxu0 0.0
  %497 = vmatpush1.msra.mxu0 %v224
  %498 = vmatprep.subr.mxu0 0.0
  %499 = vmatpush2.msra.mxu0 0.0
  %500 = vmatprep.subr.mxu0 0.0
  %501 = vmatpush2.msra.mxu0 0.0
  %502 = vmatprep.subr.mxu0 0.0
  %503 = vmatpush2.msra.mxu0 0.0
  %504 = vmatprep.subr.mxu0 0.0
  %505 = vmatpush2.msra.mxu0 0.0
  %506 = vmatprep.subr.mxu0 0.0
  %507 = vmatpush2.msra.mxu0 0.0
  %508 = vmatprep.subr.mxu0 0.0
  %509 = vmatpush2.msra.mxu0 0.0
  %510 = vmatprep.subr.mxu0 0.0
  %511 = vmatpush2.msra.mxu0 0.0
  %512 = vmatprep.subr.mxu0 0.0
  %513 = vmatpush2.msra.mxu0 0.0
  %514 = vmatprep.subr.mxu0 0.0
  %515 = vmatpush2.msra.mxu0 0.0
  %516 = vmatprep.subr.mxu0 0.0
  %517 = vmatpush2.msra.mxu0 0.0
  %518 = vmatprep.subr.mxu0 0.0
  %519 = vmatpush2.msra.mxu0 0.0
  %520 = vmatprep.subr.mxu0 0.0
  %521 = vmatpush2.msra.mxu0 0.0
  %522 = vmatprep.subr.mxu0 0.0
  %523 = vmatpush2.msra.mxu0 0.0
  %524 = vmatprep.subr.mxu0 0.0
  %525 = vmatpush2.msra.mxu0 0.0
  %526 = vmatprep.subr.mxu0 0.0
  %527 = vmatpush2.msra.mxu0 0.0
  %528 = vmatprep.subr.mxu0 0.0
  %529 = vmatpush2.msra.mxu0 0.0
  %530 = vmatprep.mubr.f32.mxu0 0.0
  %531 = vmatmul.mubr.f32.gmra.mxu0 %v464
  %v532 = vpop.f32.mrf.mxu0
  %v533 = vadd.f32 %v241, %v532
  %v534 = vpop.f32.mrf.mxu0
  %535 = vdwg.mxu0
  %v536 = vadd.f32 %v184, %v533
  %v537 = vxor.u32 %v536, 2147483648
  %v538 = vmul.f32 %v537, 1.442695
  %v539 = vpow.pop %v538
  %v540 = vadd.f32 %v539, 1.0
  %v541 = vrcp.pop %v540
  %v542 = vmul.f32 1.0, %v541
  %544 = vrot.lane.b32.xlu0 %v533, 64
  %v545 = vpop.permute.xlu0 %544
  %v547 = vmul.f32 %v542, %v545
  %549 = vrot.lane.b32.xlu0 %v547, 64
  %v550 = vpop.permute.xlu0 %549
  %v552 = vadd.f32 %v184, %v550
  %v553 = vtanh.pop %v552
  %v554 = vsub.f32 1.0, %v542
  %556 = vrot.lane.b32.xlu0 %v553, 96
  %v557 = vpop.permute.xlu0 %556
  %v559 = vmul.f32 %v554, %v557
  %v560 = vmul.f32 %v542, %v345
  %v561 = vadd.f32 %v559, %v560
  %v562 = vsel %vm243, %v461, 0
  %564 = vmatprep.subr.mxu0 0.0
  %565 = vmatpush1.msra.mxu0 0.0
  %566 = vmatprep.subr.mxu0 0.0
  %567 = vmatpush1.msra.mxu0 0.0
  %568 = vmatprep.subr.mxu0 0.0
  %569 = vmatpush1.msra.mxu0 0.0
  %570 = vmatprep.subr.mxu0 0.0
  %571 = vmatpush1.msra.mxu0 0.0
  %572 = vmatprep.subr.mxu0 0.0
  %573 = vmatpush1.msra.mxu0 0.0
  %574 = vmatprep.subr.mxu0 0.0
  %575 = vmatpush1.msra.mxu0 0.0
  %576 = vmatprep.subr.mxu0 0.0
  %577 = vmatpush1.msra.mxu0 0.0
  %578 = vmatprep.subr.mxu0 0.0
  %579 = vmatpush1.msra.mxu0 0.0
  %580 = vmatprep.subr.mxu0 0.0
  %581 = vmatpush1.msra.mxu0 0.0
  %582 = vmatprep.subr.mxu0 0.0
  %583 = vmatpush1.msra.mxu0 0.0
  %584 = vmatprep.subr.mxu0 0.0
  %585 = vmatpush1.msra.mxu0 0.0
  %586 = vmatprep.subr.mxu0 0.0
  %587 = vmatpush1.msra.mxu0 0.0
  %588 = vmatprep.subr.mxu0 0.0
  %589 = vmatpush1.msra.mxu0 %v232
  %590 = vmatprep.subr.mxu0 0.0
  %591 = vmatpush1.msra.mxu0 %v231
  %592 = vmatprep.subr.mxu0 0.0
  %593 = vmatpush1.msra.mxu0 %v230
  %594 = vmatprep.subr.mxu0 0.0
  %595 = vmatpush1.msra.mxu0 %v229
  %596 = vmatprep.subr.mxu0 0.0
  %597 = vmatpush2.msra.mxu0 0.0
  %598 = vmatprep.subr.mxu0 0.0
  %599 = vmatpush2.msra.mxu0 0.0
  %600 = vmatprep.subr.mxu0 0.0
  %601 = vmatpush2.msra.mxu0 0.0
  %602 = vmatprep.subr.mxu0 0.0
  %603 = vmatpush2.msra.mxu0 0.0
  %604 = vmatprep.subr.mxu0 0.0
  %605 = vmatpush2.msra.mxu0 0.0
  %606 = vmatprep.subr.mxu0 0.0
  %607 = vmatpush2.msra.mxu0 0.0
  %608 = vmatprep.subr.mxu0 0.0
  %609 = vmatpush2.msra.mxu0 0.0
  %610 = vmatprep.subr.mxu0 0.0
  %611 = vmatpush2.msra.mxu0 0.0
  %612 = vmatprep.subr.mxu0 0.0
  %613 = vmatpush2.msra.mxu0 0.0
  %614 = vmatprep.subr.mxu0 0.0
  %615 = vmatpush2.msra.mxu0 0.0
  %616 = vmatprep.subr.mxu0 0.0
  %617 = vmatpush2.msra.mxu0 0.0
  %618 = vmatprep.subr.mxu0 0.0
  %619 = vmatpush2.msra.mxu0 0.0
  %620 = vmatprep.subr.mxu0 0.0
  %621 = vmatpush2.msra.mxu0 0.0
  %622 = vmatprep.subr.mxu0 0.0
  %623 = vmatpush2.msra.mxu0 0.0
  %624 = vmatprep.subr.mxu0 0.0
  %625 = vmatpush2.msra.mxu0 0.0
  %626 = vmatprep.subr.mxu0 0.0
  %627 = vmatpush2.msra.mxu0 0.0
  %628 = vmatprep.mubr.f32.mxu0 0.0
  %629 = vmatmul.mubr.f32.gmra.mxu0 %v562
  %v630 = vpop.f32.mrf.mxu0
  %v631 = vadd.f32 %v350, %v630
  %v632 = vpop.f32.mrf.mxu0
  %633 = vdwg.mxu0
  %v634 = vadd.f32 %v216, %v631
  %v635 = vxor.u32 %v634, 2147483648
  %v636 = vmul.f32 %v635, 1.442695
  %v637 = vpow.pop %v636
  %v638 = vadd.f32 %v637, 1.0
  %v639 = vrcp.pop %v638
  %v640 = vmul.f32 1.0, %v639
  %642 = vrot.lane.b32.xlu0 %v631, 64
  %v643 = vpop.permute.xlu0 %642
  %v645 = vmul.f32 %v640, %v643
  %647 = vrot.lane.b32.xlu0 %v645, 64
  %v648 = vpop.permute.xlu0 %647
  %v650 = vadd.f32 %v216, %v648
  %v651 = vtanh.pop %v650
  %v652 = vsub.f32 1.0, %v640
  %654 = vrot.lane.b32.xlu0 %v651, 96
  %v655 = vpop.permute.xlu0 %654
  %v657 = vmul.f32 %v652, %v655
  %v658 = vmul.f32 %v640, %v453
  %v659 = vadd.f32 %v657, %v658
  %661 = vrot.lane.b32.xlu0 %v561, 96
  %v662 = vpop.permute.xlu0 %661
  %664 = vst.msk [vmem:[#allocation2 + $0x8] sm:$0xff] %vm243, %v662
  %666 = vrot.lane.b32.xlu0 %v659, 96
  %v667 = vpop.permute.xlu0 %666
  %669 = vst.msk [vmem:[#allocation3 + $0x30] sm:$0xff] %vm243, %v667
  %v670 = vsel %vm243, %v662, 0
  %672 = vmatprep.subr.mxu0 0.0
  %673 = vmatpush1.msra.mxu0 0.0
  %674 = vmatprep.subr.mxu0 0.0
  %675 = vmatpush1.msra.mxu0 0.0
  %676 = vmatprep.subr.mxu0 0.0
  %677 = vmatpush1.msra.mxu0 0.0
  %678 = vmatprep.subr.mxu0 0.0
  %679 = vmatpush1.msra.mxu0 0.0
  %680 = vmatprep.subr.mxu0 0.0
  %681 = vmatpush1.msra.mxu0 0.0
  %682 = vmatprep.subr.mxu0 0.0
  %683 = vmatpush1.msra.mxu0 0.0
  %684 = vmatprep.subr.mxu0 0.0
  %685 = vmatpush1.msra.mxu0 0.0
  %686 = vmatprep.subr.mxu0 0.0
  %687 = vmatpush1.msra.mxu0 0.0
  %688 = vmatprep.subr.mxu0 0.0
  %689 = vmatpush1.msra.mxu0 0.0
  %690 = vmatprep.subr.mxu0 0.0
  %691 = vmatpush1.msra.mxu0 0.0
  %692 = vmatprep.subr.mxu0 0.0
  %693 = vmatpush1.msra.mxu0 0.0
  %694 = vmatprep.subr.mxu0 0.0
  %695 = vmatpush1.msra.mxu0 0.0
  %696 = vmatprep.subr.mxu0 0.0
  %697 = vmatpush1.msra.mxu0 %v227
  %698 = vmatprep.subr.mxu0 0.0
  %699 = vmatpush1.msra.mxu0 %v226
  %700 = vmatprep.subr.mxu0 0.0
  %701 = vmatpush1.msra.mxu0 %v225
  %702 = vmatprep.subr.mxu0 0.0
  %703 = vmatpush1.msra.mxu0 %v224
  %704 = vmatprep.subr.mxu0 0.0
  %705 = vmatpush2.msra.mxu0 0.0
  %706 = vmatprep.subr.mxu0 0.0
  %707 = vmatpush2.msra.mxu0 0.0
  %708 = vmatprep.subr.mxu0 0.0
  %709 = vmatpush2.msra.mxu0 0.0
  %710 = vmatprep.subr.mxu0 0.0
  %711 = vmatpush2.msra.mxu0 0.0
  %712 = vmatprep.subr.mxu0 0.0
  %713 = vmatpush2.msra.mxu0 0.0
  %714 = vmatprep.subr.mxu0 0.0
  %715 = vmatpush2.msra.mxu0 0.0
  %716 = vmatprep.subr.mxu0 0.0
  %717 = vmatpush2.msra.mxu0 0.0
  %718 = vmatprep.subr.mxu0 0.0
  %719 = vmatpush2.msra.mxu0 0.0
  %720 = vmatprep.subr.mxu0 0.0
  %721 = vmatpush2.msra.mxu0 0.0
  %722 = vmatprep.subr.mxu0 0.0
  %723 = vmatpush2.msra.mxu0 0.0
  %724 = vmatprep.subr.mxu0 0.0
  %725 = vmatpush2.msra.mxu0 0.0
  %726 = vmatprep.subr.mxu0 0.0
  %727 = vmatpush2.msra.mxu0 0.0
  %728 = vmatprep.subr.mxu0 0.0
  %729 = vmatpush2.msra.mxu0 0.0
  %730 = vmatprep.subr.mxu0 0.0
  %731 = vmatpush2.msra.mxu0 0.0
  %732 = vmatprep.subr.mxu0 0.0
  %733 = vmatpush2.msra.mxu0 0.0
  %734 = vmatprep.subr.mxu0 0.0
  %735 = vmatpush2.msra.mxu0 0.0
  %736 = vmatprep.mubr.f32.mxu0 0.0
  %737 = vmatmul.mubr.f32.gmra.mxu0 %v670
  %v738 = vpop.f32.mrf.mxu0
  %v739 = vadd.f32 %v241, %v738
  %v740 = vpop.f32.mrf.mxu0
  %741 = vdwg.mxu0
  %v742 = vadd.f32 %v190, %v739
  %v743 = vxor.u32 %v742, 2147483648
  %v744 = vmul.f32 %v743, 1.442695
  %v745 = vpow.pop %v744
  %v746 = vadd.f32 %v745, 1.0
  %v747 = vrcp.pop %v746
  %v748 = vmul.f32 1.0, %v747
  %750 = vrot.lane.b32.xlu0 %v739, 64
  %v751 = vpop.permute.xlu0 %750
  %v753 = vmul.f32 %v748, %v751
  %755 = vrot.lane.b32.xlu0 %v753, 64
  %v756 = vpop.permute.xlu0 %755
  %v758 = vadd.f32 %v190, %v756
  %v759 = vtanh.pop %v758
  %v760 = vsub.f32 1.0, %v748
  %762 = vrot.lane.b32.xlu0 %v759, 96
  %v763 = vpop.permute.xlu0 %762
  %v765 = vmul.f32 %v760, %v763
  %v766 = vmul.f32 %v748, %v561
  %v767 = vadd.f32 %v765, %v766
  %v768 = vsel %vm243, %v667, 0
  %770 = vmatprep.subr.mxu0 0.0
  %771 = vmatpush1.msra.mxu0 0.0
  %772 = vmatprep.subr.mxu0 0.0
  %773 = vmatpush1.msra.mxu0 0.0
  %774 = vmatprep.subr.mxu0 0.0
  %775 = vmatpush1.msra.mxu0 0.0
  %776 = vmatprep.subr.mxu0 0.0
  %777 = vmatpush1.msra.mxu0 0.0
  %778 = vmatprep.subr.mxu0 0.0
  %779 = vmatpush1.msra.mxu0 0.0
  %780 = vmatprep.subr.mxu0 0.0
  %781 = vmatpush1.msra.mxu0 0.0
  %782 = vmatprep.subr.mxu0 0.0
  %783 = vmatpush1.msra.mxu0 0.0
  %784 = vmatprep.subr.mxu0 0.0
  %785 = vmatpush1.msra.mxu0 0.0
  %786 = vmatprep.subr.mxu0 0.0
  %787 = vmatpush1.msra.mxu0 0.0
  %788 = vmatprep.subr.mxu0 0.0
  %789 = vmatpush1.msra.mxu0 0.0
  %790 = vmatprep.subr.mxu0 0.0
  %791 = vmatpush1.msra.mxu0 0.0
  %792 = vmatprep.subr.mxu0 0.0
  %793 = vmatpush1.msra.mxu0 0.0
  %794 = vmatprep.subr.mxu0 0.0
  %795 = vmatpush1.msra.mxu0 %v232
  %796 = vmatprep.subr.mxu0 0.0
  %797 = vmatpush1.msra.mxu0 %v231
  %798 = vmatprep.subr.mxu0 0.0
  %799 = vmatpush1.msra.mxu0 %v230
  %800 = vmatprep.subr.mxu0 0.0
  %801 = vmatpush1.msra.mxu0 %v229
  %802 = vmatprep.subr.mxu0 0.0
  %803 = vmatpush2.msra.mxu0 0.0
  %804 = vmatprep.subr.mxu0 0.0
  %805 = vmatpush2.msra.mxu0 0.0
  %806 = vmatprep.subr.mxu0 0.0
  %807 = vmatpush2.msra.mxu0 0.0
  %808 = vmatprep.subr.mxu0 0.0
  %809 = vmatpush2.msra.mxu0 0.0
  %810 = vmatprep.subr.mxu0 0.0
  %811 = vmatpush2.msra.mxu0 0.0
  %812 = vmatprep.subr.mxu0 0.0
  %813 = vmatpush2.msra.mxu0 0.0
  %814 = vmatprep.subr.mxu0 0.0
  %815 = vmatpush2.msra.mxu0 0.0
  %816 = vmatprep.subr.mxu0 0.0
  %817 = vmatpush2.msra.mxu0 0.0
  %818 = vmatprep.subr.mxu0 0.0
  %819 = vmatpush2.msra.mxu0 0.0
  %820 = vmatprep.subr.mxu0 0.0
  %821 = vmatpush2.msra.mxu0 0.0
  %822 = vmatprep.subr.mxu0 0.0
  %823 = vmatpush2.msra.mxu0 0.0
  %824 = vmatprep.subr.mxu0 0.0
  %825 = vmatpush2.msra.mxu0 0.0
  %826 = vmatprep.subr.mxu0 0.0
  %827 = vmatpush2.msra.mxu0 0.0
  %828 = vmatprep.subr.mxu0 0.0
  %829 = vmatpush2.msra.mxu0 0.0
  %830 = vmatprep.subr.mxu0 0.0
  %831 = vmatpush2.msra.mxu0 0.0
  %832 = vmatprep.subr.mxu0 0.0
  %833 = vmatpush2.msra.mxu0 0.0
  %834 = vmatprep.mubr.f32.mxu0 0.0
  %835 = vmatmul.mubr.f32.gmra.mxu0 %v768
  %v836 = vpop.f32.mrf.mxu0
  %v837 = vadd.f32 %v350, %v836
  %v838 = vpop.f32.mrf.mxu0
  %839 = vdwg.mxu0
  %v840 = vadd.f32 %v210, %v837
  %v841 = vxor.u32 %v840, 2147483648
  %v842 = vmul.f32 %v841, 1.442695
  %v843 = vpow.pop %v842
  %v844 = vadd.f32 %v843, 1.0
  %v845 = vrcp.pop %v844
  %v846 = vmul.f32 1.0, %v845
  %848 = vrot.lane.b32.xlu0 %v837, 64
  %v849 = vpop.permute.xlu0 %848
  %v851 = vmul.f32 %v846, %v849
  %853 = vrot.lane.b32.xlu0 %v851, 64
  %v854 = vpop.permute.xlu0 %853
  %v856 = vadd.f32 %v210, %v854
  %v857 = vtanh.pop %v856
  %v858 = vsub.f32 1.0, %v846
  %860 = vrot.lane.b32.xlu0 %v857, 96
  %v861 = vpop.permute.xlu0 %860
  %v863 = vmul.f32 %v858, %v861
  %v864 = vmul.f32 %v846, %v659
  %v865 = vadd.f32 %v863, %v864
  %867 = vrot.lane.b32.xlu0 %v767, 96
  %v868 = vpop.permute.xlu0 %867
  %870 = vst.msk [vmem:[#allocation2 + $0x10] sm:$0xff] %vm243, %v868
  %872 = vrot.lane.b32.xlu0 %v865, 96
  %v873 = vpop.permute.xlu0 %872
  %875 = vst.msk [vmem:[#allocation3 + $0x28] sm:$0xff] %vm243, %v873
  %v876 = vsel %vm243, %v868, 0
  %878 = vmatprep.subr.mxu0 0.0
  %879 = vmatpush1.msra.mxu0 0.0
  %880 = vmatprep.subr.mxu0 0.0
  %881 = vmatpush1.msra.mxu0 0.0
  %882 = vmatprep.subr.mxu0 0.0
  %883 = vmatpush1.msra.mxu0 0.0
  %884 = vmatprep.subr.mxu0 0.0
  %885 = vmatpush1.msra.mxu0 0.0
  %886 = vmatprep.subr.mxu0 0.0
  %887 = vmatpush1.msra.mxu0 0.0
  %888 = vmatprep.subr.mxu0 0.0
  %889 = vmatpush1.msra.mxu0 0.0
  %890 = vmatprep.subr.mxu0 0.0
  %891 = vmatpush1.msra.mxu0 0.0
  %892 = vmatprep.subr.mxu0 0.0
  %893 = vmatpush1.msra.mxu0 0.0
  %894 = vmatprep.subr.mxu0 0.0
  %895 = vmatpush1.msra.mxu0 0.0
  %896 = vmatprep.subr.mxu0 0.0
  %897 = vmatpush1.msra.mxu0 0.0
  %898 = vmatprep.subr.mxu0 0.0
  %899 = vmatpush1.msra.mxu0 0.0
  %900 = vmatprep.subr.mxu0 0.0
  %901 = vmatpush1.msra.mxu0 0.0
  %902 = vmatprep.subr.mxu0 0.0
  %903 = vmatpush1.msra.mxu0 %v227
  %904 = vmatprep.subr.mxu0 0.0
  %905 = vmatpush1.msra.mxu0 %v226
  %906 = vmatprep.subr.mxu0 0.0
  %907 = vmatpush1.msra.mxu0 %v225
  %908 = vmatprep.subr.mxu0 0.0
  %909 = vmatpush1.msra.mxu0 %v224
  %910 = vmatprep.subr.mxu0 0.0
  %911 = vmatpush2.msra.mxu0 0.0
  %912 = vmatprep.subr.mxu0 0.0
  %913 = vmatpush2.msra.mxu0 0.0
  %914 = vmatprep.subr.mxu0 0.0
  %915 = vmatpush2.msra.mxu0 0.0
  %916 = vmatprep.subr.mxu0 0.0
  %917 = vmatpush2.msra.mxu0 0.0
  %918 = vmatprep.subr.mxu0 0.0
  %919 = vmatpush2.msra.mxu0 0.0
  %920 = vmatprep.subr.mxu0 0.0
  %921 = vmatpush2.msra.mxu0 0.0
  %922 = vmatprep.subr.mxu0 0.0
  %923 = vmatpush2.msra.mxu0 0.0
  %924 = vmatprep.subr.mxu0 0.0
  %925 = vmatpush2.msra.mxu0 0.0
  %926 = vmatprep.subr.mxu0 0.0
  %927 = vmatpush2.msra.mxu0 0.0
  %928 = vmatprep.subr.mxu0 0.0
  %929 = vmatpush2.msra.mxu0 0.0
  %930 = vmatprep.subr.mxu0 0.0
  %931 = vmatpush2.msra.mxu0 0.0
  %932 = vmatprep.subr.mxu0 0.0
  %933 = vmatpush2.msra.mxu0 0.0
  %934 = vmatprep.subr.mxu0 0.0
  %935 = vmatpush2.msra.mxu0 0.0
  %936 = vmatprep.subr.mxu0 0.0
  %937 = vmatpush2.msra.mxu0 0.0
  %938 = vmatprep.subr.mxu0 0.0
  %939 = vmatpush2.msra.mxu0 0.0
  %940 = vmatprep.subr.mxu0 0.0
  %941 = vmatpush2.msra.mxu0 0.0
  %942 = vmatprep.mubr.f32.mxu0 0.0
  %943 = vmatmul.mubr.f32.gmra.mxu0 %v876
  %v944 = vpop.f32.mrf.mxu0
  %v945 = vadd.f32 %v241, %v944
  %v946 = vpop.f32.mrf.mxu0
  %947 = vdwg.mxu0
  %v948 = vadd.f32 %v196, %v945
  %v949 = vxor.u32 %v948, 2147483648
  %v950 = vmul.f32 %v949, 1.442695
  %v951 = vpow.pop %v950
  %v952 = vadd.f32 %v951, 1.0
  %v953 = vrcp.pop %v952
  %v954 = vmul.f32 1.0, %v953
  %956 = vrot.lane.b32.xlu0 %v945, 64
  %v957 = vpop.permute.xlu0 %956
  %v959 = vmul.f32 %v954, %v957
  %961 = vrot.lane.b32.xlu0 %v959, 64
  %v962 = vpop.permute.xlu0 %961
  %v964 = vadd.f32 %v196, %v962
  %v965 = vtanh.pop %v964
  %v966 = vsub.f32 1.0, %v954
  %968 = vrot.lane.b32.xlu0 %v965, 96
  %v969 = vpop.permute.xlu0 %968
  %v971 = vmul.f32 %v966, %v969
  %v972 = vmul.f32 %v954, %v767
  %v973 = vadd.f32 %v971, %v972
  %v974 = vsel %vm243, %v873, 0
  %976 = vmatprep.subr.mxu0 0.0
  %977 = vmatpush1.msra.mxu0 0.0
  %978 = vmatprep.subr.mxu0 0.0
  %979 = vmatpush1.msra.mxu0 0.0
  %980 = vmatprep.subr.mxu0 0.0
  %981 = vmatpush1.msra.mxu0 0.0
  %982 = vmatprep.subr.mxu0 0.0
  %983 = vmatpush1.msra.mxu0 0.0
  %984 = vmatprep.subr.mxu0 0.0
  %985 = vmatpush1.msra.mxu0 0.0
  %986 = vmatprep.subr.mxu0 0.0
  %987 = vmatpush1.msra.mxu0 0.0
  %988 = vmatprep.subr.mxu0 0.0
  %989 = vmatpush1.msra.mxu0 0.0
  %990 = vmatprep.subr.mxu0 0.0
  %991 = vmatpush1.msra.mxu0 0.0
  %992 = vmatprep.subr.mxu0 0.0
  %993 = vmatpush1.msra.mxu0 0.0
  %994 = vmatprep.subr.mxu0 0.0
  %995 = vmatpush1.msra.mxu0 0.0
  %996 = vmatprep.subr.mxu0 0.0
  %997 = vmatpush1.msra.mxu0 0.0
  %998 = vmatprep.subr.mxu0 0.0
  %999 = vmatpush1.msra.mxu0 0.0
  %1000 = vmatprep.subr.mxu0 0.0
  %1001 = vmatpush1.msra.mxu0 %v232
  %1002 = vmatprep.subr.mxu0 0.0
  %1003 = vmatpush1.msra.mxu0 %v231
  %1004 = vmatprep.subr.mxu0 0.0
  %1005 = vmatpush1.msra.mxu0 %v230
  %1006 = vmatprep.subr.mxu0 0.0
  %1007 = vmatpush1.msra.mxu0 %v229
  %1008 = vmatprep.subr.mxu0 0.0
  %1009 = vmatpush2.msra.mxu0 0.0
  %1010 = vmatprep.subr.mxu0 0.0
  %1011 = vmatpush2.msra.mxu0 0.0
  %1012 = vmatprep.subr.mxu0 0.0
  %1013 = vmatpush2.msra.mxu0 0.0
  %1014 = vmatprep.subr.mxu0 0.0
  %1015 = vmatpush2.msra.mxu0 0.0
  %1016 = vmatprep.subr.mxu0 0.0
  %1017 = vmatpush2.msra.mxu0 0.0
  %1018 = vmatprep.subr.mxu0 0.0
  %1019 = vmatpush2.msra.mxu0 0.0
  %1020 = vmatprep.subr.mxu0 0.0
  %1021 = vmatpush2.msra.mxu0 0.0
  %1022 = vmatprep.subr.mxu0 0.0
  %1023 = vmatpush2.msra.mxu0 0.0
  %1024 = vmatprep.subr.mxu0 0.0
  %1025 = vmatpush2.msra.mxu0 0.0
  %1026 = vmatprep.subr.mxu0 0.0
  %1027 = vmatpush2.msra.mxu0 0.0
  %1028 = vmatprep.subr.mxu0 0.0
  %1029 = vmatpush2.msra.mxu0 0.0
  %1030 = vmatprep.subr.mxu0 0.0
  %1031 = vmatpush2.msra.mxu0 0.0
  %1032 = vmatprep.subr.mxu0 0.0
  %1033 = vmatpush2.msra.mxu0 0.0
  %1034 = vmatprep.subr.mxu0 0.0
  %1035 = vmatpush2.msra.mxu0 0.0
  %1036 = vmatprep.subr.mxu0 0.0
  %1037 = vmatpush2.msra.mxu0 0.0
  %1038 = vmatprep.subr.mxu0 0.0
  %1039 = vmatpush2.msra.mxu0 0.0
  %1040 = vmatprep.mubr.f32.mxu0 0.0
  %1041 = vmatmul.mubr.f32.gmra.mxu0 %v974
  %v1042 = vpop.f32.mrf.mxu0
  %v1043 = vadd.f32 %v350, %v1042
  %v1044 = vpop.f32.mrf.mxu0
  %1045 = vdwg.mxu0
  %v1046 = vadd.f32 %v204, %v1043
  %v1047 = vxor.u32 %v1046, 2147483648
  %v1048 = vmul.f32 %v1047, 1.442695
  %v1049 = vpow.pop %v1048
  %v1050 = vadd.f32 %v1049, 1.0
  %v1051 = vrcp.pop %v1050
  %v1052 = vmul.f32 1.0, %v1051
  %1054 = vrot.lane.b32.xlu0 %v1043, 64
  %v1055 = vpop.permute.xlu0 %1054
  %v1057 = vmul.f32 %v1052, %v1055
  %1059 = vrot.lane.b32.xlu0 %v1057, 64
  %v1060 = vpop.permute.xlu0 %1059
  %v1062 = vadd.f32 %v204, %v1060
  %v1063 = vtanh.pop %v1062
  %v1064 = vsub.f32 1.0, %v1052
  %1066 = vrot.lane.b32.xlu0 %v1063, 96
  %v1067 = vpop.permute.xlu0 %1066
  %v1069 = vmul.f32 %v1064, %v1067
  %v1070 = vmul.f32 %v1052, %v865
  %v1071 = vadd.f32 %v1069, %v1070
  %1073 = vrot.lane.b32.xlu0 %v973, 96
  %v1074 = vpop.permute.xlu0 %1073
  %1076 = vst.msk [vmem:[#allocation2 + $0x18] sm:$0xff] %vm243, %v1074
  %1078 = vrot.lane.b32.xlu0 %v1071, 96
  %v1079 = vpop.permute.xlu0 %1078
  %1081 = vst.msk [vmem:[#allocation3 + $0x20] sm:$0xff] %vm243, %v1079
  %v1082 = vsel %vm243, %v1074, 0
  %1084 = vmatprep.subr.mxu0 0.0
  %1085 = vmatpush1.msra.mxu0 0.0
  %1086 = vmatprep.subr.mxu0 0.0
  %1087 = vmatpush1.msra.mxu0 0.0
  %1088 = vmatprep.subr.mxu0 0.0
  %1089 = vmatpush1.msra.mxu0 0.0
  %1090 = vmatprep.subr.mxu0 0.0
  %1091 = vmatpush1.msra.mxu0 0.0
  %1092 = vmatprep.subr.mxu0 0.0
  %1093 = vmatpush1.msra.mxu0 0.0
  %1094 = vmatprep.subr.mxu0 0.0
  %1095 = vmatpush1.msra.mxu0 0.0
  %1096 = vmatprep.subr.mxu0 0.0
  %1097 = vmatpush1.msra.mxu0 0.0
  %1098 = vmatprep.subr.mxu0 0.0
  %1099 = vmatpush1.msra.mxu0 0.0
  %1100 = vmatprep.subr.mxu0 0.0
  %1101 = vmatpush1.msra.mxu0 0.0
  %1102 = vmatprep.subr.mxu0 0.0
  %1103 = vmatpush1.msra.mxu0 0.0
  %1104 = vmatprep.subr.mxu0 0.0
  %1105 = vmatpush1.msra.mxu0 0.0
  %1106 = vmatprep.subr.mxu0 0.0
  %1107 = vmatpush1.msra.mxu0 0.0
  %1108 = vmatprep.subr.mxu0 0.0
  %1109 = vmatpush1.msra.mxu0 %v227
  %1110 = vmatprep.subr.mxu0 0.0
  %1111 = vmatpush1.msra.mxu0 %v226
  %1112 = vmatprep.subr.mxu0 0.0
  %1113 = vmatpush1.msra.mxu0 %v225
  %1114 = vmatprep.subr.mxu0 0.0
  %1115 = vmatpush1.msra.mxu0 %v224
  %1116 = vmatprep.subr.mxu0 0.0
  %1117 = vmatpush2.msra.mxu0 0.0
  %1118 = vmatprep.subr.mxu0 0.0
  %1119 = vmatpush2.msra.mxu0 0.0
  %1120 = vmatprep.subr.mxu0 0.0
  %1121 = vmatpush2.msra.mxu0 0.0
  %1122 = vmatprep.subr.mxu0 0.0
  %1123 = vmatpush2.msra.mxu0 0.0
  %1124 = vmatprep.subr.mxu0 0.0
  %1125 = vmatpush2.msra.mxu0 0.0
  %1126 = vmatprep.subr.mxu0 0.0
  %1127 = vmatpush2.msra.mxu0 0.0
  %1128 = vmatprep.subr.mxu0 0.0
  %1129 = vmatpush2.msra.mxu0 0.0
  %1130 = vmatprep.subr.mxu0 0.0
  %1131 = vmatpush2.msra.mxu0 0.0
  %1132 = vmatprep.subr.mxu0 0.0
  %1133 = vmatpush2.msra.mxu0 0.0
  %1134 = vmatprep.subr.mxu0 0.0
  %1135 = vmatpush2.msra.mxu0 0.0
  %1136 = vmatprep.subr.mxu0 0.0
  %1137 = vmatpush2.msra.mxu0 0.0
  %1138 = vmatprep.subr.mxu0 0.0
  %1139 = vmatpush2.msra.mxu0 0.0
  %1140 = vmatprep.subr.mxu0 0.0
  %1141 = vmatpush2.msra.mxu0 0.0
  %1142 = vmatprep.subr.mxu0 0.0
  %1143 = vmatpush2.msra.mxu0 0.0
  %1144 = vmatprep.subr.mxu0 0.0
  %1145 = vmatpush2.msra.mxu0 0.0
  %1146 = vmatprep.subr.mxu0 0.0
  %1147 = vmatpush2.msra.mxu0 0.0
  %1148 = vmatprep.mubr.f32.mxu0 0.0
  %1149 = vmatmul.mubr.f32.gmra.mxu0 %v1082
  %v1150 = vpop.f32.mrf.mxu0
  %v1151 = vadd.f32 %v241, %v1150
  %v1152 = vpop.f32.mrf.mxu0
  %1153 = vdwg.mxu0
  %v1154 = vadd.f32 %v202, %v1151
  %v1155 = vxor.u32 %v1154, 2147483648
  %v1156 = vmul.f32 %v1155, 1.442695
  %v1157 = vpow.pop %v1156
  %v1158 = vadd.f32 %v1157, 1.0
  %v1159 = vrcp.pop %v1158
  %v1160 = vmul.f32 1.0, %v1159
  %1162 = vrot.lane.b32.xlu0 %v1151, 64
  %v1163 = vpop.permute.xlu0 %1162
  %v1165 = vmul.f32 %v1160, %v1163
  %1167 = vrot.lane.b32.xlu0 %v1165, 64
  %v1168 = vpop.permute.xlu0 %1167
  %v1170 = vadd.f32 %v202, %v1168
  %v1171 = vtanh.pop %v1170
  %v1172 = vsub.f32 1.0, %v1160
  %1174 = vrot.lane.b32.xlu0 %v1171, 96
  %v1175 = vpop.permute.xlu0 %1174
  %v1177 = vmul.f32 %v1172, %v1175
  %v1178 = vmul.f32 %v1160, %v973
  %v1179 = vadd.f32 %v1177, %v1178
  %v1180 = vsel %vm243, %v1079, 0
  %1182 = vmatprep.subr.mxu0 0.0
  %1183 = vmatpush1.msra.mxu0 0.0
  %1184 = vmatprep.subr.mxu0 0.0
  %1185 = vmatpush1.msra.mxu0 0.0
  %1186 = vmatprep.subr.mxu0 0.0
  %1187 = vmatpush1.msra.mxu0 0.0
  %1188 = vmatprep.subr.mxu0 0.0
  %1189 = vmatpush1.msra.mxu0 0.0
  %1190 = vmatprep.subr.mxu0 0.0
  %1191 = vmatpush1.msra.mxu0 0.0
  %1192 = vmatprep.subr.mxu0 0.0
  %1193 = vmatpush1.msra.mxu0 0.0
  %1194 = vmatprep.subr.mxu0 0.0
  %1195 = vmatpush1.msra.mxu0 0.0
  %1196 = vmatprep.subr.mxu0 0.0
  %1197 = vmatpush1.msra.mxu0 0.0
  %1198 = vmatprep.subr.mxu0 0.0
  %1199 = vmatpush1.msra.mxu0 0.0
  %1200 = vmatprep.subr.mxu0 0.0
  %1201 = vmatpush1.msra.mxu0 0.0
  %1202 = vmatprep.subr.mxu0 0.0
  %1203 = vmatpush1.msra.mxu0 0.0
  %1204 = vmatprep.subr.mxu0 0.0
  %1205 = vmatpush1.msra.mxu0 0.0
  %1206 = vmatprep.subr.mxu0 0.0
  %1207 = vmatpush1.msra.mxu0 %v232
  %1208 = vmatprep.subr.mxu0 0.0
  %1209 = vmatpush1.msra.mxu0 %v231
  %1210 = vmatprep.subr.mxu0 0.0
  %1211 = vmatpush1.msra.mxu0 %v230
  %1212 = vmatprep.subr.mxu0 0.0
  %1213 = vmatpush1.msra.mxu0 %v229
  %1214 = vmatprep.subr.mxu0 0.0
  %1215 = vmatpush2.msra.mxu0 0.0
  %1216 = vmatprep.subr.mxu0 0.0
  %1217 = vmatpush2.msra.mxu0 0.0
  %1218 = vmatprep.subr.mxu0 0.0
  %1219 = vmatpush2.msra.mxu0 0.0
  %1220 = vmatprep.subr.mxu0 0.0
  %1221 = vmatpush2.msra.mxu0 0.0
  %1222 = vmatprep.subr.mxu0 0.0
  %1223 = vmatpush2.msra.mxu0 0.0
  %1224 = vmatprep.subr.mxu0 0.0
  %1225 = vmatpush2.msra.mxu0 0.0
  %1226 = vmatprep.subr.mxu0 0.0
  %1227 = vmatpush2.msra.mxu0 0.0
  %1228 = vmatprep.subr.mxu0 0.0
  %1229 = vmatpush2.msra.mxu0 0.0
  %1230 = vmatprep.subr.mxu0 0.0
  %1231 = vmatpush2.msra.mxu0 0.0
  %1232 = vmatprep.subr.mxu0 0.0
  %1233 = vmatpush2.msra.mxu0 0.0
  %1234 = vmatprep.subr.mxu0 0.0
  %1235 = vmatpush2.msra.mxu0 0.0
  %1236 = vmatprep.subr.mxu0 0.0
  %1237 = vmatpush2.msra.mxu0 0.0
  %1238 = vmatprep.subr.mxu0 0.0
  %1239 = vmatpush2.msra.mxu0 0.0
  %1240 = vmatprep.subr.mxu0 0.0
  %1241 = vmatpush2.msra.mxu0 0.0
  %1242 = vmatprep.subr.mxu0 0.0
  %1243 = vmatpush2.msra.mxu0 0.0
  %1244 = vmatprep.subr.mxu0 0.0
  %1245 = vmatpush2.msra.mxu0 0.0
  %1246 = vmatprep.mubr.f32.mxu0 0.0
  %1247 = vmatmul.mubr.f32.gmra.mxu0 %v1180
  %v1248 = vpop.f32.mrf.mxu0
  %v1249 = vadd.f32 %v350, %v1248
  %v1250 = vpop.f32.mrf.mxu0
  %1251 = vdwg.mxu0
  %v1252 = vadd.f32 %v198, %v1249
  %v1253 = vxor.u32 %v1252, 2147483648
  %v1254 = vmul.f32 %v1253, 1.442695
  %v1255 = vpow.pop %v1254
  %v1256 = vadd.f32 %v1255, 1.0
  %v1257 = vrcp.pop %v1256
  %v1258 = vmul.f32 1.0, %v1257
  %1260 = vrot.lane.b32.xlu0 %v1249, 64
  %v1261 = vpop.permute.xlu0 %1260
  %v1263 = vmul.f32 %v1258, %v1261
  %1265 = vrot.lane.b32.xlu0 %v1263, 64
  %v1266 = vpop.permute.xlu0 %1265
  %v1268 = vadd.f32 %v198, %v1266
  %v1269 = vtanh.pop %v1268
  %v1270 = vsub.f32 1.0, %v1258
  %1272 = vrot.lane.b32.xlu0 %v1269, 96
  %v1273 = vpop.permute.xlu0 %1272
  %v1275 = vmul.f32 %v1270, %v1273
  %v1276 = vmul.f32 %v1258, %v1071
  %v1277 = vadd.f32 %v1275, %v1276
  %1279 = vrot.lane.b32.xlu0 %v1179, 96
  %v1280 = vpop.permute.xlu0 %1279
  %1282 = vst.msk [vmem:[#allocation2 + $0x20] sm:$0xff] %vm243, %v1280
  %1284 = vrot.lane.b32.xlu0 %v1277, 96
  %v1285 = vpop.permute.xlu0 %1284
  %1287 = vst.msk [vmem:[#allocation3 + $0x18] sm:$0xff] %vm243, %v1285
  %v1288 = vsel %vm243, %v1280, 0
  %1290 = vmatprep.subr.mxu0 0.0
  %1291 = vmatpush1.msra.mxu0 0.0
  %1292 = vmatprep.subr.mxu0 0.0
  %1293 = vmatpush1.msra.mxu0 0.0
  %1294 = vmatprep.subr.mxu0 0.0
  %1295 = vmatpush1.msra.mxu0 0.0
  %1296 = vmatprep.subr.mxu0 0.0
  %1297 = vmatpush1.msra.mxu0 0.0
  %1298 = vmatprep.subr.mxu0 0.0
  %1299 = vmatpush1.msra.mxu0 0.0
  %1300 = vmatprep.subr.mxu0 0.0
  %1301 = vmatpush1.msra.mxu0 0.0
  %1302 = vmatprep.subr.mxu0 0.0
  %1303 = vmatpush1.msra.mxu0 0.0
  %1304 = vmatprep.subr.mxu0 0.0
  %1305 = vmatpush1.msra.mxu0 0.0
  %1306 = vmatprep.subr.mxu0 0.0
  %1307 = vmatpush1.msra.mxu0 0.0
  %1308 = vmatprep.subr.mxu0 0.0
  %1309 = vmatpush1.msra.mxu0 0.0
  %1310 = vmatprep.subr.mxu0 0.0
  %1311 = vmatpush1.msra.mxu0 0.0
  %1312 = vmatprep.subr.mxu0 0.0
  %1313 = vmatpush1.msra.mxu0 0.0
  %1314 = vmatprep.subr.mxu0 0.0
  %1315 = vmatpush1.msra.mxu0 %v227
  %1316 = vmatprep.subr.mxu0 0.0
  %1317 = vmatpush1.msra.mxu0 %v226
  %1318 = vmatprep.subr.mxu0 0.0
  %1319 = vmatpush1.msra.mxu0 %v225
  %1320 = vmatprep.subr.mxu0 0.0
  %1321 = vmatpush1.msra.mxu0 %v224
  %1322 = vmatprep.subr.mxu0 0.0
  %1323 = vmatpush2.msra.mxu0 0.0
  %1324 = vmatprep.subr.mxu0 0.0
  %1325 = vmatpush2.msra.mxu0 0.0
  %1326 = vmatprep.subr.mxu0 0.0
  %1327 = vmatpush2.msra.mxu0 0.0
  %1328 = vmatprep.subr.mxu0 0.0
  %1329 = vmatpush2.msra.mxu0 0.0
  %1330 = vmatprep.subr.mxu0 0.0
  %1331 = vmatpush2.msra.mxu0 0.0
  %1332 = vmatprep.subr.mxu0 0.0
  %1333 = vmatpush2.msra.mxu0 0.0
  %1334 = vmatprep.subr.mxu0 0.0
  %1335 = vmatpush2.msra.mxu0 0.0
  %1336 = vmatprep.subr.mxu0 0.0
  %1337 = vmatpush2.msra.mxu0 0.0
  %1338 = vmatprep.subr.mxu0 0.0
  %1339 = vmatpush2.msra.mxu0 0.0
  %1340 = vmatprep.subr.mxu0 0.0
  %1341 = vmatpush2.msra.mxu0 0.0
  %1342 = vmatprep.subr.mxu0 0.0
  %1343 = vmatpush2.msra.mxu0 0.0
  %1344 = vmatprep.subr.mxu0 0.0
  %1345 = vmatpush2.msra.mxu0 0.0
  %1346 = vmatprep.subr.mxu0 0.0
  %1347 = vmatpush2.msra.mxu0 0.0
  %1348 = vmatprep.subr.mxu0 0.0
  %1349 = vmatpush2.msra.mxu0 0.0
  %1350 = vmatprep.subr.mxu0 0.0
  %1351 = vmatpush2.msra.mxu0 0.0
  %1352 = vmatprep.subr.mxu0 0.0
  %1353 = vmatpush2.msra.mxu0 0.0
  %1354 = vmatprep.mubr.f32.mxu0 0.0
  %1355 = vmatmul.mubr.f32.gmra.mxu0 %v1288
  %v1356 = vpop.f32.mrf.mxu0
  %v1357 = vadd.f32 %v241, %v1356
  %v1358 = vpop.f32.mrf.mxu0
  %1359 = vdwg.mxu0
  %v1360 = vadd.f32 %v208, %v1357
  %v1361 = vxor.u32 %v1360, 2147483648
  %v1362 = vmul.f32 %v1361, 1.442695
  %v1363 = vpow.pop %v1362
  %v1364 = vadd.f32 %v1363, 1.0
  %v1365 = vrcp.pop %v1364
  %v1366 = vmul.f32 1.0, %v1365
  %1368 = vrot.lane.b32.xlu0 %v1357, 64
  %v1369 = vpop.permute.xlu0 %1368
  %v1371 = vmul.f32 %v1366, %v1369
  %1373 = vrot.lane.b32.xlu0 %v1371, 64
  %v1374 = vpop.permute.xlu0 %1373
  %v1376 = vadd.f32 %v208, %v1374
  %v1377 = vtanh.pop %v1376
  %v1378 = vsub.f32 1.0, %v1366
  %1380 = vrot.lane.b32.xlu0 %v1377, 96
  %v1381 = vpop.permute.xlu0 %1380
  %v1383 = vmul.f32 %v1378, %v1381
  %v1384 = vmul.f32 %v1366, %v1179
  %v1385 = vadd.f32 %v1383, %v1384
  %v1386 = vsel %vm243, %v1285, 0
  %1388 = vmatprep.subr.mxu0 0.0
  %1389 = vmatpush1.msra.mxu0 0.0
  %1390 = vmatprep.subr.mxu0 0.0
  %1391 = vmatpush1.msra.mxu0 0.0
  %1392 = vmatprep.subr.mxu0 0.0
  %1393 = vmatpush1.msra.mxu0 0.0
  %1394 = vmatprep.subr.mxu0 0.0
  %1395 = vmatpush1.msra.mxu0 0.0
  %1396 = vmatprep.subr.mxu0 0.0
  %1397 = vmatpush1.msra.mxu0 0.0
  %1398 = vmatprep.subr.mxu0 0.0
  %1399 = vmatpush1.msra.mxu0 0.0
  %1400 = vmatprep.subr.mxu0 0.0
  %1401 = vmatpush1.msra.mxu0 0.0
  %1402 = vmatprep.subr.mxu0 0.0
  %1403 = vmatpush1.msra.mxu0 0.0
  %1404 = vmatprep.subr.mxu0 0.0
  %1405 = vmatpush1.msra.mxu0 0.0
  %1406 = vmatprep.subr.mxu0 0.0
  %1407 = vmatpush1.msra.mxu0 0.0
  %1408 = vmatprep.subr.mxu0 0.0
  %1409 = vmatpush1.msra.mxu0 0.0
  %1410 = vmatprep.subr.mxu0 0.0
  %1411 = vmatpush1.msra.mxu0 0.0
  %1412 = vmatprep.subr.mxu0 0.0
  %1413 = vmatpush1.msra.mxu0 %v232
  %1414 = vmatprep.subr.mxu0 0.0
  %1415 = vmatpush1.msra.mxu0 %v231
  %1416 = vmatprep.subr.mxu0 0.0
  %1417 = vmatpush1.msra.mxu0 %v230
  %1418 = vmatprep.subr.mxu0 0.0
  %1419 = vmatpush1.msra.mxu0 %v229
  %1420 = vmatprep.subr.mxu0 0.0
  %1421 = vmatpush2.msra.mxu0 0.0
  %1422 = vmatprep.subr.mxu0 0.0
  %1423 = vmatpush2.msra.mxu0 0.0
  %1424 = vmatprep.subr.mxu0 0.0
  %1425 = vmatpush2.msra.mxu0 0.0
  %1426 = vmatprep.subr.mxu0 0.0
  %1427 = vmatpush2.msra.mxu0 0.0
  %1428 = vmatprep.subr.mxu0 0.0
  %1429 = vmatpush2.msra.mxu0 0.0
  %1430 = vmatprep.subr.mxu0 0.0
  %1431 = vmatpush2.msra.mxu0 0.0
  %1432 = vmatprep.subr.mxu0 0.0
  %1433 = vmatpush2.msra.mxu0 0.0
  %1434 = vmatprep.subr.mxu0 0.0
  %1435 = vmatpush2.msra.mxu0 0.0
  %1436 = vmatprep.subr.mxu0 0.0
  %1437 = vmatpush2.msra.mxu0 0.0
  %1438 = vmatprep.subr.mxu0 0.0
  %1439 = vmatpush2.msra.mxu0 0.0
  %1440 = vmatprep.subr.mxu0 0.0
  %1441 = vmatpush2.msra.mxu0 0.0
  %1442 = vmatprep.subr.mxu0 0.0
  %1443 = vmatpush2.msra.mxu0 0.0
  %1444 = vmatprep.subr.mxu0 0.0
  %1445 = vmatpush2.msra.mxu0 0.0
  %1446 = vmatprep.subr.mxu0 0.0
  %1447 = vmatpush2.msra.mxu0 0.0
  %1448 = vmatprep.subr.mxu0 0.0
  %1449 = vmatpush2.msra.mxu0 0.0
  %1450 = vmatprep.subr.mxu0 0.0
  %1451 = vmatpush2.msra.mxu0 0.0
  %1452 = vmatprep.mubr.f32.mxu0 0.0
  %1453 = vmatmul.mubr.f32.gmra.mxu0 %v1386
  %v1454 = vpop.f32.mrf.mxu0
  %v1455 = vadd.f32 %v350, %v1454
  %v1456 = vpop.f32.mrf.mxu0
  %1457 = vdwg.mxu0
  %v1458 = vadd.f32 %v192, %v1455
  %v1459 = vxor.u32 %v1458, 2147483648
  %v1460 = vmul.f32 %v1459, 1.442695
  %v1461 = vpow.pop %v1460
  %v1462 = vadd.f32 %v1461, 1.0
  %v1463 = vrcp.pop %v1462
  %v1464 = vmul.f32 1.0, %v1463
  %1466 = vrot.lane.b32.xlu0 %v1455, 64
  %v1467 = vpop.permute.xlu0 %1466
  %v1469 = vmul.f32 %v1464, %v1467
  %1471 = vrot.lane.b32.xlu0 %v1469, 64
  %v1472 = vpop.permute.xlu0 %1471
  %v1474 = vadd.f32 %v192, %v1472
  %v1475 = vtanh.pop %v1474
  %v1476 = vsub.f32 1.0, %v1464
  %1478 = vrot.lane.b32.xlu0 %v1475, 96
  %v1479 = vpop.permute.xlu0 %1478
  %v1481 = vmul.f32 %v1476, %v1479
  %v1482 = vmul.f32 %v1464, %v1277
  %v1483 = vadd.f32 %v1481, %v1482
  %1485 = vrot.lane.b32.xlu0 %v1385, 96
  %v1486 = vpop.permute.xlu0 %1485
  %1488 = vst.msk [vmem:[#allocation2 + $0x28] sm:$0xff] %vm243, %v1486
  %1490 = vrot.lane.b32.xlu0 %v1483, 96
  %v1491 = vpop.permute.xlu0 %1490
  %1493 = vst.msk [vmem:[#allocation3 + $0x10] sm:$0xff] %vm243, %v1491
  %v1494 = vsel %vm243, %v1486, 0
  %1496 = vmatprep.subr.mxu0 0.0
  %1497 = vmatpush1.msra.mxu0 0.0
  %1498 = vmatprep.subr.mxu0 0.0
  %1499 = vmatpush1.msra.mxu0 0.0
  %1500 = vmatprep.subr.mxu0 0.0
  %1501 = vmatpush1.msra.mxu0 0.0
  %1502 = vmatprep.subr.mxu0 0.0
  %1503 = vmatpush1.msra.mxu0 0.0
  %1504 = vmatprep.subr.mxu0 0.0
  %1505 = vmatpush1.msra.mxu0 0.0
  %1506 = vmatprep.subr.mxu0 0.0
  %1507 = vmatpush1.msra.mxu0 0.0
  %1508 = vmatprep.subr.mxu0 0.0
  %1509 = vmatpush1.msra.mxu0 0.0
  %1510 = vmatprep.subr.mxu0 0.0
  %1511 = vmatpush1.msra.mxu0 0.0
  %1512 = vmatprep.subr.mxu0 0.0
  %1513 = vmatpush1.msra.mxu0 0.0
  %1514 = vmatprep.subr.mxu0 0.0
  %1515 = vmatpush1.msra.mxu0 0.0
  %1516 = vmatprep.subr.mxu0 0.0
  %1517 = vmatpush1.msra.mxu0 0.0
  %1518 = vmatprep.subr.mxu0 0.0
  %1519 = vmatpush1.msra.mxu0 0.0
  %1520 = vmatprep.subr.mxu0 0.0
  %1521 = vmatpush1.msra.mxu0 %v227
  %1522 = vmatprep.subr.mxu0 0.0
  %1523 = vmatpush1.msra.mxu0 %v226
  %1524 = vmatprep.subr.mxu0 0.0
  %1525 = vmatpush1.msra.mxu0 %v225
  %1526 = vmatprep.subr.mxu0 0.0
  %1527 = vmatpush1.msra.mxu0 %v224
  %1528 = vmatprep.subr.mxu0 0.0
  %1529 = vmatpush2.msra.mxu0 0.0
  %1530 = vmatprep.subr.mxu0 0.0
  %1531 = vmatpush2.msra.mxu0 0.0
  %1532 = vmatprep.subr.mxu0 0.0
  %1533 = vmatpush2.msra.mxu0 0.0
  %1534 = vmatprep.subr.mxu0 0.0
  %1535 = vmatpush2.msra.mxu0 0.0
  %1536 = vmatprep.subr.mxu0 0.0
  %1537 = vmatpush2.msra.mxu0 0.0
  %1538 = vmatprep.subr.mxu0 0.0
  %1539 = vmatpush2.msra.mxu0 0.0
  %1540 = vmatprep.subr.mxu0 0.0
  %1541 = vmatpush2.msra.mxu0 0.0
  %1542 = vmatprep.subr.mxu0 0.0
  %1543 = vmatpush2.msra.mxu0 0.0
  %1544 = vmatprep.subr.mxu0 0.0
  %1545 = vmatpush2.msra.mxu0 0.0
  %1546 = vmatprep.subr.mxu0 0.0
  %1547 = vmatpush2.msra.mxu0 0.0
  %1548 = vmatprep.subr.mxu0 0.0
  %1549 = vmatpush2.msra.mxu0 0.0
  %1550 = vmatprep.subr.mxu0 0.0
  %1551 = vmatpush2.msra.mxu0 0.0
  %1552 = vmatprep.subr.mxu0 0.0
  %1553 = vmatpush2.msra.mxu0 0.0
  %1554 = vmatprep.subr.mxu0 0.0
  %1555 = vmatpush2.msra.mxu0 0.0
  %1556 = vmatprep.subr.mxu0 0.0
  %1557 = vmatpush2.msra.mxu0 0.0
  %1558 = vmatprep.subr.mxu0 0.0
  %1559 = vmatpush2.msra.mxu0 0.0
  %1560 = vmatprep.mubr.f32.mxu0 0.0
  %1561 = vmatmul.mubr.f32.gmra.mxu0 %v1494
  %v1562 = vpop.f32.mrf.mxu0
  %v1563 = vadd.f32 %v241, %v1562
  %v1564 = vpop.f32.mrf.mxu0
  %1565 = vdwg.mxu0
  %v1566 = vadd.f32 %v214, %v1563
  %v1567 = vxor.u32 %v1566, 2147483648
  %v1568 = vmul.f32 %v1567, 1.442695
  %v1569 = vpow.pop %v1568
  %v1570 = vadd.f32 %v1569, 1.0
  %v1571 = vrcp.pop %v1570
  %v1572 = vmul.f32 1.0, %v1571
  %1574 = vrot.lane.b32.xlu0 %v1563, 64
  %v1575 = vpop.permute.xlu0 %1574
  %v1577 = vmul.f32 %v1572, %v1575
  %1579 = vrot.lane.b32.xlu0 %v1577, 64
  %v1580 = vpop.permute.xlu0 %1579
  %v1582 = vadd.f32 %v214, %v1580
  %v1583 = vtanh.pop %v1582
  %v1584 = vsub.f32 1.0, %v1572
  %1586 = vrot.lane.b32.xlu0 %v1583, 96
  %v1587 = vpop.permute.xlu0 %1586
  %v1589 = vmul.f32 %v1584, %v1587
  %v1590 = vmul.f32 %v1572, %v1385
  %v1591 = vadd.f32 %v1589, %v1590
  %v1592 = vsel %vm243, %v1491, 0
  %1594 = vmatprep.subr.mxu0 0.0
  %1595 = vmatpush1.msra.mxu0 0.0
  %1596 = vmatprep.subr.mxu0 0.0
  %1597 = vmatpush1.msra.mxu0 0.0
  %1598 = vmatprep.subr.mxu0 0.0
  %1599 = vmatpush1.msra.mxu0 0.0
  %1600 = vmatprep.subr.mxu0 0.0
  %1601 = vmatpush1.msra.mxu0 0.0
  %1602 = vmatprep.subr.mxu0 0.0
  %1603 = vmatpush1.msra.mxu0 0.0
  %1604 = vmatprep.subr.mxu0 0.0
  %1605 = vmatpush1.msra.mxu0 0.0
  %1606 = vmatprep.subr.mxu0 0.0
  %1607 = vmatpush1.msra.mxu0 0.0
  %1608 = vmatprep.subr.mxu0 0.0
  %1609 = vmatpush1.msra.mxu0 0.0
  %1610 = vmatprep.subr.mxu0 0.0
  %1611 = vmatpush1.msra.mxu0 0.0
  %1612 = vmatprep.subr.mxu0 0.0
  %1613 = vmatpush1.msra.mxu0 0.0
  %1614 = vmatprep.subr.mxu0 0.0
  %1615 = vmatpush1.msra.mxu0 0.0
  %1616 = vmatprep.subr.mxu0 0.0
  %1617 = vmatpush1.msra.mxu0 0.0
  %1618 = vmatprep.subr.mxu0 0.0
  %1619 = vmatpush1.msra.mxu0 %v232
  %1620 = vmatprep.subr.mxu0 0.0
  %1621 = vmatpush1.msra.mxu0 %v231
  %1622 = vmatprep.subr.mxu0 0.0
  %1623 = vmatpush1.msra.mxu0 %v230
  %1624 = vmatprep.subr.mxu0 0.0
  %1625 = vmatpush1.msra.mxu0 %v229
  %1626 = vmatprep.subr.mxu0 0.0
  %1627 = vmatpush2.msra.mxu0 0.0
  %1628 = vmatprep.subr.mxu0 0.0
  %1629 = vmatpush2.msra.mxu0 0.0
  %1630 = vmatprep.subr.mxu0 0.0
  %1631 = vmatpush2.msra.mxu0 0.0
  %1632 = vmatprep.subr.mxu0 0.0
  %1633 = vmatpush2.msra.mxu0 0.0
  %1634 = vmatprep.subr.mxu0 0.0
  %1635 = vmatpush2.msra.mxu0 0.0
  %1636 = vmatprep.subr.mxu0 0.0
  %1637 = vmatpush2.msra.mxu0 0.0
  %1638 = vmatprep.subr.mxu0 0.0
  %1639 = vmatpush2.msra.mxu0 0.0
  %1640 = vmatprep.subr.mxu0 0.0
  %1641 = vmatpush2.msra.mxu0 0.0
  %1642 = vmatprep.subr.mxu0 0.0
  %1643 = vmatpush2.msra.mxu0 0.0
  %1644 = vmatprep.subr.mxu0 0.0
  %1645 = vmatpush2.msra.mxu0 0.0
  %1646 = vmatprep.subr.mxu0 0.0
  %1647 = vmatpush2.msra.mxu0 0.0
  %1648 = vmatprep.subr.mxu0 0.0
  %1649 = vmatpush2.msra.mxu0 0.0
  %1650 = vmatprep.subr.mxu0 0.0
  %1651 = vmatpush2.msra.mxu0 0.0
  %1652 = vmatprep.subr.mxu0 0.0
  %1653 = vmatpush2.msra.mxu0 0.0
  %1654 = vmatprep.subr.mxu0 0.0
  %1655 = vmatpush2.msra.mxu0 0.0
  %1656 = vmatprep.subr.mxu0 0.0
  %1657 = vmatpush2.msra.mxu0 0.0
  %1658 = vmatprep.mubr.f32.mxu0 0.0
  %1659 = vmatmul.mubr.f32.gmra.mxu0 %v1592
  %v1660 = vpop.f32.mrf.mxu0
  %v1661 = vadd.f32 %v350, %v1660
  %v1662 = vpop.f32.mrf.mxu0
  %1663 = vdwg.mxu0
  %v1664 = vadd.f32 %v186, %v1661
  %v1665 = vxor.u32 %v1664, 2147483648
  %v1666 = vmul.f32 %v1665, 1.442695
  %v1667 = vpow.pop %v1666
  %v1668 = vadd.f32 %v1667, 1.0
  %v1669 = vrcp.pop %v1668
  %v1670 = vmul.f32 1.0, %v1669
  %1672 = vrot.lane.b32.xlu0 %v1661, 64
  %v1673 = vpop.permute.xlu0 %1672
  %v1675 = vmul.f32 %v1670, %v1673
  %1677 = vrot.lane.b32.xlu0 %v1675, 64
  %v1678 = vpop.permute.xlu0 %1677
  %v1680 = vadd.f32 %v186, %v1678
  %v1681 = vtanh.pop %v1680
  %v1682 = vsub.f32 1.0, %v1670
  %1684 = vrot.lane.b32.xlu0 %v1681, 96
  %v1685 = vpop.permute.xlu0 %1684
  %v1687 = vmul.f32 %v1682, %v1685
  %v1688 = vmul.f32 %v1670, %v1483
  %v1689 = vadd.f32 %v1687, %v1688
  %1691 = vrot.lane.b32.xlu0 %v1591, 96
  %v1692 = vpop.permute.xlu0 %1691
  %1694 = vst.msk [vmem:[#allocation2 + $0x30] sm:$0xff] %vm243, %v1692
  %1696 = vrot.lane.b32.xlu0 %v1689, 96
  %v1697 = vpop.permute.xlu0 %1696
  %1699 = vst.msk [vmem:[#allocation3 + $0x8] sm:$0xff] %vm243, %v1697
  %v1700 = vsel %vm243, %v1692, 0
  %1702 = vmatprep.subr.mxu0 0.0
  %1703 = vmatpush1.msra.mxu0 0.0
  %1704 = vmatprep.subr.mxu0 0.0
  %1705 = vmatpush1.msra.mxu0 0.0
  %1706 = vmatprep.subr.mxu0 0.0
  %1707 = vmatpush1.msra.mxu0 0.0
  %1708 = vmatprep.subr.mxu0 0.0
  %1709 = vmatpush1.msra.mxu0 0.0
  %1710 = vmatprep.subr.mxu0 0.0
  %1711 = vmatpush1.msra.mxu0 0.0
  %1712 = vmatprep.subr.mxu0 0.0
  %1713 = vmatpush1.msra.mxu0 0.0
  %1714 = vmatprep.subr.mxu0 0.0
  %1715 = vmatpush1.msra.mxu0 0.0
  %1716 = vmatprep.subr.mxu0 0.0
  %1717 = vmatpush1.msra.mxu0 0.0
  %1718 = vmatprep.subr.mxu0 0.0
  %1719 = vmatpush1.msra.mxu0 0.0
  %1720 = vmatprep.subr.mxu0 0.0
  %1721 = vmatpush1.msra.mxu0 0.0
  %1722 = vmatprep.subr.mxu0 0.0
  %1723 = vmatpush1.msra.mxu0 0.0
  %1724 = vmatprep.subr.mxu0 0.0
  %1725 = vmatpush1.msra.mxu0 0.0
  %1726 = vmatprep.subr.mxu0 0.0
  %1727 = vmatpush1.msra.mxu0 %v227
  %1728 = vmatprep.subr.mxu0 0.0
  %1729 = vmatpush1.msra.mxu0 %v226
  %1730 = vmatprep.subr.mxu0 0.0
  %1731 = vmatpush1.msra.mxu0 %v225
  %1732 = vmatprep.subr.mxu0 0.0
  %1733 = vmatpush1.msra.mxu0 %v224
  %1734 = vmatprep.subr.mxu0 0.0
  %1735 = vmatpush2.msra.mxu0 0.0
  %1736 = vmatprep.subr.mxu0 0.0
  %1737 = vmatpush2.msra.mxu0 0.0
  %1738 = vmatprep.subr.mxu0 0.0
  %1739 = vmatpush2.msra.mxu0 0.0
  %1740 = vmatprep.subr.mxu0 0.0
  %1741 = vmatpush2.msra.mxu0 0.0
  %1742 = vmatprep.subr.mxu0 0.0
  %1743 = vmatpush2.msra.mxu0 0.0
  %1744 = vmatprep.subr.mxu0 0.0
  %1745 = vmatpush2.msra.mxu0 0.0
  %1746 = vmatprep.subr.mxu0 0.0
  %1747 = vmatpush2.msra.mxu0 0.0
  %1748 = vmatprep.subr.mxu0 0.0
  %1749 = vmatpush2.msra.mxu0 0.0
  %1750 = vmatprep.subr.mxu0 0.0
  %1751 = vmatpush2.msra.mxu0 0.0
  %1752 = vmatprep.subr.mxu0 0.0
  %1753 = vmatpush2.msra.mxu0 0.0
  %1754 = vmatprep.subr.mxu0 0.0
  %1755 = vmatpush2.msra.mxu0 0.0
  %1756 = vmatprep.subr.mxu0 0.0
  %1757 = vmatpush2.msra.mxu0 0.0
  %1758 = vmatprep.subr.mxu0 0.0
  %1759 = vmatpush2.msra.mxu0 0.0
  %1760 = vmatprep.subr.mxu0 0.0
  %1761 = vmatpush2.msra.mxu0 0.0
  %1762 = vmatprep.subr.mxu0 0.0
  %1763 = vmatpush2.msra.mxu0 0.0
  %1764 = vmatprep.subr.mxu0 0.0
  %1765 = vmatpush2.msra.mxu0 0.0
  %1766 = vmatprep.mubr.f32.mxu0 0.0
  %1767 = vmatmul.mubr.f32.gmra.mxu0 %v1700
  %v1768 = vpop.f32.mrf.mxu0
  %v1769 = vadd.f32 %v241, %v1768
  %v1770 = vpop.f32.mrf.mxu0
  %1771 = vdwg.mxu0
  %v1772 = vadd.f32 %v220, %v1769
  %v1773 = vxor.u32 %v1772, 2147483648
  %v1774 = vmul.f32 %v1773, 1.442695
  %v1775 = vpow.pop %v1774
  %v1776 = vadd.f32 %v1775, 1.0
  %v1777 = vrcp.pop %v1776
  %v1778 = vmul.f32 1.0, %v1777
  %1780 = vrot.lane.b32.xlu0 %v1769, 64
  %v1781 = vpop.permute.xlu0 %1780
  %v1783 = vmul.f32 %v1778, %v1781
  %1785 = vrot.lane.b32.xlu0 %v1783, 64
  %v1786 = vpop.permute.xlu0 %1785
  %v1788 = vadd.f32 %v220, %v1786
  %v1789 = vtanh.pop %v1788
  %v1790 = vsub.f32 1.0, %v1778
  %1792 = vrot.lane.b32.xlu0 %v1789, 96
  %v1793 = vpop.permute.xlu0 %1792
  %v1795 = vmul.f32 %v1790, %v1793
  %v1796 = vmul.f32 %v1778, %v1591
  %v1797 = vadd.f32 %v1795, %v1796
  %v1798 = vsel %vm243, %v1697, 0
  %1800 = vmatprep.subr.mxu0 0.0
  %1801 = vmatpush1.msra.mxu0 0.0
  %1802 = vmatprep.subr.mxu0 0.0
  %1803 = vmatpush1.msra.mxu0 0.0
  %1804 = vmatprep.subr.mxu0 0.0
  %1805 = vmatpush1.msra.mxu0 0.0
  %1806 = vmatprep.subr.mxu0 0.0
  %1807 = vmatpush1.msra.mxu0 0.0
  %1808 = vmatprep.subr.mxu0 0.0
  %1809 = vmatpush1.msra.mxu0 0.0
  %1810 = vmatprep.subr.mxu0 0.0
  %1811 = vmatpush1.msra.mxu0 0.0
  %1812 = vmatprep.subr.mxu0 0.0
  %1813 = vmatpush1.msra.mxu0 0.0
  %1814 = vmatprep.subr.mxu0 0.0
  %1815 = vmatpush1.msra.mxu0 0.0
  %1816 = vmatprep.subr.mxu0 0.0
  %1817 = vmatpush1.msra.mxu0 0.0
  %1818 = vmatprep.subr.mxu0 0.0
  %1819 = vmatpush1.msra.mxu0 0.0
  %1820 = vmatprep.subr.mxu0 0.0
  %1821 = vmatpush1.msra.mxu0 0.0
  %1822 = vmatprep.subr.mxu0 0.0
  %1823 = vmatpush1.msra.mxu0 0.0
  %1824 = vmatprep.subr.mxu0 0.0
  %1825 = vmatpush1.msra.mxu0 %v232
  %1826 = vmatprep.subr.mxu0 0.0
  %1827 = vmatpush1.msra.mxu0 %v231
  %1828 = vmatprep.subr.mxu0 0.0
  %1829 = vmatpush1.msra.mxu0 %v230
  %1830 = vmatprep.subr.mxu0 0.0
  %1831 = vmatpush1.msra.mxu0 %v229
  %1832 = vmatprep.subr.mxu0 0.0
  %1833 = vmatpush2.msra.mxu0 0.0
  %1834 = vmatprep.subr.mxu0 0.0
  %1835 = vmatpush2.msra.mxu0 0.0
  %1836 = vmatprep.subr.mxu0 0.0
  %1837 = vmatpush2.msra.mxu0 0.0
  %1838 = vmatprep.subr.mxu0 0.0
  %1839 = vmatpush2.msra.mxu0 0.0
  %1840 = vmatprep.subr.mxu0 0.0
  %1841 = vmatpush2.msra.mxu0 0.0
  %1842 = vmatprep.subr.mxu0 0.0
  %1843 = vmatpush2.msra.mxu0 0.0
  %1844 = vmatprep.subr.mxu0 0.0
  %1845 = vmatpush2.msra.mxu0 0.0
  %1846 = vmatprep.subr.mxu0 0.0
  %1847 = vmatpush2.msra.mxu0 0.0
  %1848 = vmatprep.subr.mxu0 0.0
  %1849 = vmatpush2.msra.mxu0 0.0
  %1850 = vmatprep.subr.mxu0 0.0
  %1851 = vmatpush2.msra.mxu0 0.0
  %1852 = vmatprep.subr.mxu0 0.0
  %1853 = vmatpush2.msra.mxu0 0.0
  %1854 = vmatprep.subr.mxu0 0.0
  %1855 = vmatpush2.msra.mxu0 0.0
  %1856 = vmatprep.subr.mxu0 0.0
  %1857 = vmatpush2.msra.mxu0 0.0
  %1858 = vmatprep.subr.mxu0 0.0
  %1859 = vmatpush2.msra.mxu0 0.0
  %1860 = vmatprep.subr.mxu0 0.0
  %1861 = vmatpush2.msra.mxu0 0.0
  %1862 = vmatprep.subr.mxu0 0.0
  %1863 = vmatpush2.msra.mxu0 0.0
  %1864 = vmatprep.mubr.f32.mxu0 0.0
  %1865 = vmatmul.mubr.f32.gmra.mxu0 %v1798
  %v1866 = vpop.f32.mrf.mxu0
  %v1867 = vadd.f32 %v350, %v1866
  %v1868 = vpop.f32.mrf.mxu0
  %1869 = vdwg.mxu0
  %v1870 = vadd.f32 %v180, %v1867
  %v1871 = vxor.u32 %v1870, 2147483648
  %v1872 = vmul.f32 %v1871, 1.442695
  %v1873 = vpow.pop %v1872
  %v1874 = vadd.f32 %v1873, 1.0
  %v1875 = vrcp.pop %v1874
  %v1876 = vmul.f32 1.0, %v1875
  %1878 = vrot.lane.b32.xlu0 %v1867, 64
  %v1879 = vpop.permute.xlu0 %1878
  %v1881 = vmul.f32 %v1876, %v1879
  %1883 = vrot.lane.b32.xlu0 %v1881, 64
  %v1884 = vpop.permute.xlu0 %1883
  %v1886 = vadd.f32 %v180, %v1884
  %v1887 = vtanh.pop %v1886
  %v1888 = vsub.f32 1.0, %v1876
  %1890 = vrot.lane.b32.xlu0 %v1887, 96
  %v1891 = vpop.permute.xlu0 %1890
  %v1893 = vmul.f32 %v1888, %v1891
  %v1894 = vmul.f32 %v1876, %v1689
  %v1895 = vadd.f32 %v1893, %v1894
  %1897 = vrot.lane.b32.xlu0 %v1797, 96
  %v1898 = vpop.permute.xlu0 %1897
  %1900 = vst.msk [vmem:[#allocation2 + $0x38] sm:$0xff] %vm243, %v1898
  %1902 = vrot.lane.b32.xlu0 %v1895, 96
  %v1903 = vpop.permute.xlu0 %1902
  %1905 = vst.msk [vmem:[#allocation3] sm:$0xff] %vm243, %v1903
  %1906 = vst.msk [vmem:[%s15] sm:$0xff] %vm243, %v1898
  %s1907 = scalar_lea.vmem %s15, 8
  %1908 = vst.msk [vmem:[%s1907] sm:$0xff] %vm243, %v1903
  %v1909 = vld [vmem:[#allocation2] sm:$0xff]
  %v1910 = vld [vmem:[#allocation2 + $0x8] sm:$0xff]
  %v1911 = vld [vmem:[#allocation2 + $0x10] sm:$0xff]
  %v1912 = vld [vmem:[#allocation2 + $0x18] sm:$0xff]
  %v1913 = vld [vmem:[#allocation2 + $0x20] sm:$0xff]
  %v1914 = vld [vmem:[#allocation2 + $0x28] sm:$0xff]
  %v1915 = vld [vmem:[#allocation2 + $0x30] sm:$0xff]
  %v1916 = vld [vmem:[#allocation2 + $0x38] sm:$0xff]
  %v1917 = vld [vmem:[#allocation3] sm:$0xff]
  %v1918 = vld [vmem:[#allocation3 + $0x8] sm:$0xff]
  %v1919 = vld [vmem:[#allocation3 + $0x10] sm:$0xff]
  %v1920 = vld [vmem:[#allocation3 + $0x18] sm:$0xff]
  %v1921 = vld [vmem:[#allocation3 + $0x20] sm:$0xff]
  %v1922 = vld [vmem:[#allocation3 + $0x28] sm:$0xff]
  %v1923 = vld [vmem:[#allocation3 + $0x30] sm:$0xff]
  %v1924 = vld [vmem:[#allocation3 + $0x38] sm:$0xff]
  %1933 = vrot.lane.b32.xlu0 %v1917, 32
  %v1934 = vpop.permute.xlu0 %1933
  %1935 = vrot.lane.b32.xlu0 %v1918, 32
  %v1936 = vpop.permute.xlu0 %1935
  %1937 = vrot.lane.b32.xlu0 %v1919, 32
  %v1938 = vpop.permute.xlu0 %1937
  %1939 = vrot.lane.b32.xlu0 %v1920, 32
  %v1940 = vpop.permute.xlu0 %1939
  %1941 = vrot.lane.b32.xlu0 %v1921, 32
  %v1942 = vpop.permute.xlu0 %1941
  %1943 = vrot.lane.b32.xlu0 %v1922, 32
  %v1944 = vpop.permute.xlu0 %1943
  %1945 = vrot.lane.b32.xlu0 %v1923, 32
  %v1946 = vpop.permute.xlu0 %1945
  %1947 = vrot.lane.b32.xlu0 %v1924, 32
  %v1948 = vpop.permute.xlu0 %1947
  %v1957 = vsel %vm243, %v1909, %v1934
  %v1958 = vsel %vm243, %v1910, %v1936
  %v1959 = vsel %vm243, %v1911, %v1938
  %v1960 = vsel %vm243, %v1912, %v1940
  %v1961 = vsel %vm243, %v1913, %v1942
  %v1962 = vsel %vm243, %v1914, %v1944
  %v1963 = vsel %vm243, %v1915, %v1946
  %v1964 = vsel %vm243, %v1916, %v1948
  %v1965 = vld [vmem:[%s9] sm:$0xff]
  %v1966 = vld [vmem:[%s9 + $0x8] sm:$0xff]
  %v1967 = vld [vmem:[%s9 + $0x10] sm:$0xff]
  %v1968 = vld [vmem:[%s9 + $0x18] sm:$0xff]
  %v1969 = vld [vmem:[%s9 + $0x20] sm:$0xff]
  %v1970 = vld [vmem:[%s9 + $0x28] sm:$0xff]
  %v1971 = vld [vmem:[%s9 + $0x30] sm:$0xff]
  %v1972 = vld [vmem:[%s9 + $0x38] sm:$0xff]
  %v1973 = vld [vmem:[%s10] sm:$0x1]
  %v1975 = vlaneseq
  %v1976 = vshrl.u32 %v1975, 7
  %v1977 = vsub.s32 0, %v1976
  %v1978 = vrot.slane %v1973, %v1977
  %v1981 = vsel %vm86, %v1957, 0
  %v1984 = vsel %vm86, %v1958, 0
  %v1987 = vsel %vm86, %v1959, 0
  %v1990 = vsel %vm86, %v1960, 0
  %v1993 = vsel %vm86, %v1961, 0
  %v1996 = vsel %vm86, %v1962, 0
  %v1999 = vsel %vm86, %v1963, 0
  %v2002 = vsel %vm86, %v1964, 0
  %2004 = vmatprep.subr.mxu0 0.0
  %2005 = vmatpush1.msra.mxu0 0.0
  %2006 = vmatprep.subr.mxu0 0.0
  %2007 = vmatpush1.msra.mxu0 0.0
  %2008 = vmatprep.subr.mxu0 0.0
  %2009 = vmatpush1.msra.mxu0 0.0
  %2010 = vmatprep.subr.mxu0 0.0
  %2011 = vmatpush1.msra.mxu0 0.0
  %2012 = vmatprep.subr.mxu0 0.0
  %2013 = vmatpush1.msra.mxu0 0.0
  %2014 = vmatprep.subr.mxu0 0.0
  %2015 = vmatpush1.msra.mxu0 0.0
  %2016 = vmatprep.subr.mxu0 0.0
  %2017 = vmatpush1.msra.mxu0 0.0
  %2018 = vmatprep.subr.mxu0 0.0
  %2019 = vmatpush1.msra.mxu0 0.0
  %2020 = vmatprep.subr.mxu0 0.0
  %2021 = vmatpush1.msra.mxu0 %v1972
  %2022 = vmatprep.subr.mxu0 0.0
  %2023 = vmatpush1.msra.mxu0 %v1971
  %2024 = vmatprep.subr.mxu0 0.0
  %2025 = vmatpush1.msra.mxu0 %v1970
  %2026 = vmatprep.subr.mxu0 0.0
  %2027 = vmatpush1.msra.mxu0 %v1969
  %2028 = vmatprep.subr.mxu0 0.0
  %2029 = vmatpush1.msra.mxu0 %v1968
  %2030 = vmatprep.subr.mxu0 0.0
  %2031 = vmatpush1.msra.mxu0 %v1967
  %2032 = vmatprep.subr.mxu0 0.0
  %2033 = vmatpush1.msra.mxu0 %v1966
  %2034 = vmatprep.subr.mxu0 0.0
  %2035 = vmatpush1.msra.mxu0 %v1965
  %2036 = vmatprep.subr.mxu0 0.0
  %2037 = vmatpush2.msra.mxu0 0.0
  %2038 = vmatprep.subr.mxu0 0.0
  %2039 = vmatpush2.msra.mxu0 0.0
  %2040 = vmatprep.subr.mxu0 0.0
  %2041 = vmatpush2.msra.mxu0 0.0
  %2042 = vmatprep.subr.mxu0 0.0
  %2043 = vmatpush2.msra.mxu0 0.0
  %2044 = vmatprep.subr.mxu0 0.0
  %2045 = vmatpush2.msra.mxu0 0.0
  %2046 = vmatprep.subr.mxu0 0.0
  %2047 = vmatpush2.msra.mxu0 0.0
  %2048 = vmatprep.subr.mxu0 0.0
  %2049 = vmatpush2.msra.mxu0 0.0
  %2050 = vmatprep.subr.mxu0 0.0
  %2051 = vmatpush2.msra.mxu0 0.0
  %2052 = vmatprep.subr.mxu0 0.0
  %2053 = vmatpush2.msra.mxu0 0.0
  %2054 = vmatprep.subr.mxu0 0.0
  %2055 = vmatpush2.msra.mxu0 0.0
  %2056 = vmatprep.subr.mxu0 0.0
  %2057 = vmatpush2.msra.mxu0 0.0
  %2058 = vmatprep.subr.mxu0 0.0
  %2059 = vmatpush2.msra.mxu0 0.0
  %2060 = vmatprep.subr.mxu0 0.0
  %2061 = vmatpush2.msra.mxu0 0.0
  %2062 = vmatprep.subr.mxu0 0.0
  %2063 = vmatpush2.msra.mxu0 0.0
  %2064 = vmatprep.subr.mxu0 0.0
  %2065 = vmatpush2.msra.mxu0 0.0
  %2066 = vmatprep.subr.mxu0 0.0
  %2067 = vmatpush2.msra.mxu0 0.0
  %2068 = vmatprep.mubr.f32.mxu0 0.0
  %2069 = vmatmul.mubr.f32.gmra.mxu0 %v1981
  %v2070 = vpop.f32.mrf.mxu0
  %v2071 = vadd.f32 %v1978, %v2070
  %v2072 = vpop.f32.mrf.mxu0
  %2073 = vmatprep.mubr.f32.mxu0 0.0
  %2074 = vmatmul.mubr.f32.gmra.mxu0 %v1984
  %v2075 = vpop.f32.mrf.mxu0
  %v2076 = vadd.f32 %v1978, %v2075
  %v2077 = vpop.f32.mrf.mxu0
  %2078 = vmatprep.mubr.f32.mxu0 0.0
  %2079 = vmatmul.mubr.f32.gmra.mxu0 %v1987
  %v2080 = vpop.f32.mrf.mxu0
  %v2081 = vadd.f32 %v1978, %v2080
  %v2082 = vpop.f32.mrf.mxu0
  %2083 = vmatprep.mubr.f32.mxu0 0.0
  %2084 = vmatmul.mubr.f32.gmra.mxu0 %v1990
  %v2085 = vpop.f32.mrf.mxu0
  %v2086 = vadd.f32 %v1978, %v2085
  %v2087 = vpop.f32.mrf.mxu0
  %2088 = vmatprep.mubr.f32.mxu0 0.0
  %2089 = vmatmul.mubr.f32.gmra.mxu0 %v1993
  %v2090 = vpop.f32.mrf.mxu0
  %v2091 = vadd.f32 %v1978, %v2090
  %v2092 = vpop.f32.mrf.mxu0
  %2093 = vmatprep.mubr.f32.mxu0 0.0
  %2094 = vmatmul.mubr.f32.gmra.mxu0 %v1996
  %v2095 = vpop.f32.mrf.mxu0
  %v2096 = vadd.f32 %v1978, %v2095
  %v2097 = vpop.f32.mrf.mxu0
  %2098 = vmatprep.mubr.f32.mxu0 0.0
  %2099 = vmatmul.mubr.f32.gmra.mxu0 %v1999
  %v2100 = vpop.f32.mrf.mxu0
  %v2101 = vadd.f32 %v1978, %v2100
  %v2102 = vpop.f32.mrf.mxu0
  %2103 = vmatprep.mubr.f32.mxu0 0.0
  %2104 = vmatmul.mubr.f32.gmra.mxu0 %v2002
  %v2105 = vpop.f32.mrf.mxu0
  %v2106 = vadd.f32 %v1978, %v2105
  %v2107 = vpop.f32.mrf.mxu0
  %2108 = vdwg.mxu0
  %v2109 = vtanh.pop %v2071
  %v2110 = vtanh.pop %v2076
  %v2111 = vtanh.pop %v2081
  %v2112 = vtanh.pop %v2086
  %v2113 = vtanh.pop %v2091
  %v2114 = vtanh.pop %v2096
  %v2115 = vtanh.pop %v2101
  %v2116 = vtanh.pop %v2106
  %v2117 = vld [vmem:[%s11] sm:$0x1]
  %v2119 = vlaneseq
  %v2120 = vshrl.u32 %v2119, 7
  %v2121 = vsub.s32 0, %v2120
  %v2122 = vrot.slane %v2117, %v2121
  %v2124 = vmul.f32 %v2109, %v2122
  %v2125 = vmul.f32 %v2110, %v2122
  %v2126 = vmul.f32 %v2111, %v2122
  %v2127 = vmul.f32 %v2112, %v2122
  %v2128 = vmul.f32 %v2113, %v2122
  %v2129 = vmul.f32 %v2114, %v2122
  %v2130 = vmul.f32 %v2115, %v2122
  %v2131 = vmul.f32 %v2116, %v2122
  %v2132 = vsel %vm86, %v2124, 0.0
  %2133 = vadd.xlane.f32.xlu0 %v2132
  %v2134 = vpop.xlane.xlu0 %2133
  %v2135 = vsel %vm86, %v2125, 0.0
  %2136 = vadd.xlane.f32.xlu0 %v2135
  %v2137 = vpop.xlane.xlu0 %2136
  %v2138 = vsel %vm86, %v2126, 0.0
  %2139 = vadd.xlane.f32.xlu0 %v2138
  %v2140 = vpop.xlane.xlu0 %2139
  %v2141 = vsel %vm86, %v2127, 0.0
  %2142 = vadd.xlane.f32.xlu0 %v2141
  %v2143 = vpop.xlane.xlu0 %2142
  %v2144 = vsel %vm86, %v2128, 0.0
  %2145 = vadd.xlane.f32.xlu0 %v2144
  %v2146 = vpop.xlane.xlu0 %2145
  %v2147 = vsel %vm86, %v2129, 0.0
  %2148 = vadd.xlane.f32.xlu0 %v2147
  %v2149 = vpop.xlane.xlu0 %2148
  %v2150 = vsel %vm86, %v2130, 0.0
  %2151 = vadd.xlane.f32.xlu0 %v2150
  %v2152 = vpop.xlane.xlu0 %2151
  %v2153 = vsel %vm86, %v2131, 0.0
  %2154 = vadd.xlane.f32.xlu0 %v2153
  %v2155 = vpop.xlane.xlu0 %2154
  %vm2156 = vcmask 7168
  %v2157 = vsel %vm2156, %v2134, %v2137
  %vm2158 = vcmask 15360
  %v2159 = vsel %vm2158, %v2157, %v2140
  %vm2160 = vcmask 23552
  %v2161 = vsel %vm2160, %v2159, %v2143
  %vm2162 = vcmask 31744
  %v2163 = vsel %vm2162, %v2161, %v2146
  %vm2164 = vcmask 39936
  %v2165 = vsel %vm2164, %v2163, %v2149
  %vm2166 = vcmask 48128
  %v2167 = vsel %vm2166, %v2165, %v2152
  %vm2168 = vcmask 56320
  %v2169 = vsel %vm2168, %v2167, %v2155
  %vm2170 = vcmask 64512
  %v2171 = vsel %vm2170, %v2169, -inf
  %2172 = vmax.xlane.f32.xlu0 %v2171
  %v2173 = vpop.xlane.xlu0 %2172
  %v2174 = vsub.f32 %v2169, %v2173
  %v2175 = vmul.f32 %v2174, 1.442695
  %v2176 = vpow.pop %v2175
  %v2177 = vsel %vm2170, %v2176, 0.0
  %2178 = vadd.xlane.f32.xlu0 %v2177
  %v2179 = vpop.xlane.xlu0 %2178
  %v2180 = vrcp.pop %v2179
  %v2181 = vmul.f32 %v2176, %v2180
  %v2182 = vld [vmem:[%s2] sm:$0xff]
  %v2183 = vmul.f32 %v2181, %v2182
  %v2184 = vand.u32 2147483647, %v2183
  %v2185 = vsel %vm2170, %v2184, 0.0
  %2186 = vadd.xlane.f32.xlu0 %v2185
  %v2187 = vpop.xlane.xlu0 %2186
  %v2188 = vmax.f32 %v2187, 1e-12
  %v2189 = vrcp.pop %v2188
  %v2190 = vmul.f32 %v2183, %v2189
  %2191 = vst.msk [vmem:[%s16] sm:$0xff] %vm2170, %v2190
  %2193 = vset.pattern.permute.xlu0 0
  %2194 = vperm.xlu0 %2193, %v2190
  %v2195 = vpop.permute.xlu0 %2194
  %v2197 = vmul.f32 %v2195, %v1957
  %2198 = vset.pattern.permute.xlu0 1
  %2199 = vperm.xlu0 %2198, %v2190
  %v2200 = vpop.permute.xlu0 %2199
  %v2202 = vmul.f32 %v2200, %v1958
  %v2203 = vadd.f32 %v2197, %v2202
  %2204 = vset.pattern.permute.xlu0 2
  %2205 = vperm.xlu0 %2204, %v2190
  %v2206 = vpop.permute.xlu0 %2205
  %v2208 = vmul.f32 %v2206, %v1959
  %v2209 = vadd.f32 %v2203, %v2208
  %2210 = vset.pattern.permute.xlu0 3
  %2211 = vperm.xlu0 %2210, %v2190
  %v2212 = vpop.permute.xlu0 %2211
  %v2214 = vmul.f32 %v2212, %v1960
  %v2215 = vadd.f32 %v2209, %v2214
  %2216 = vset.pattern.permute.xlu0 4
  %2217 = vperm.xlu0 %2216, %v2190
  %v2218 = vpop.permute.xlu0 %2217
  %v2220 = vmul.f32 %v2218, %v1961
  %v2221 = vadd.f32 %v2215, %v2220
  %2222 = vset.pattern.permute.xlu0 5
  %2223 = vperm.xlu0 %2222, %v2190
  %v2224 = vpop.permute.xlu0 %2223
  %v2226 = vmul.f32 %v2224, %v1962
  %v2227 = vadd.f32 %v2221, %v2226
  %2228 = vset.pattern.permute.xlu0 6
  %2229 = vperm.xlu0 %2228, %v2190
  %v2230 = vpop.permute.xlu0 %2229
  %v2232 = vmul.f32 %v2230, %v1963
  %v2233 = vadd.f32 %v2227, %v2232
  %2234 = vset.pattern.permute.xlu0 7
  %2235 = vperm.xlu0 %2234, %v2190
  %v2236 = vpop.permute.xlu0 %2235
  %v2238 = vmul.f32 %v2236, %v1964
  %v2239 = vadd.f32 %v2233, %v2238
  %v2240 = vld [vmem:[%s12] sm:$0xff]
  %v2241 = vld [vmem:[%s12 + $0x8] sm:$0xff]
  %v2242 = vld [vmem:[%s12 + $0x10] sm:$0xff]
  %v2243 = vld [vmem:[%s12 + $0x18] sm:$0xff]
  %v2244 = vld [vmem:[%s12 + $0x20] sm:$0xff]
  %v2245 = vld [vmem:[%s12 + $0x28] sm:$0xff]
  %v2246 = vld [vmem:[%s12 + $0x30] sm:$0xff]
  %v2247 = vld [vmem:[%s12 + $0x38] sm:$0xff]
  %v2248 = vld [vmem:[%s13] sm:$0x1]
  %v2250 = vlaneseq
  %v2251 = vshrl.u32 %v2250, 7
  %v2252 = vsub.s32 0, %v2251
  %v2253 = vrot.slane %v2248, %v2252
  %v2256 = vsel %vm86, %v2239, 0
  %2258 = vmatprep.subr.mxu0 0.0
  %2259 = vmatpush1.msra.mxu0 0.0
  %2260 = vmatprep.subr.mxu0 0.0
  %2261 = vmatpush1.msra.mxu0 0.0
  %2262 = vmatprep.subr.mxu0 0.0
  %2263 = vmatpush1.msra.mxu0 0.0
  %2264 = vmatprep.subr.mxu0 0.0
  %2265 = vmatpush1.msra.mxu0 0.0
  %2266 = vmatprep.subr.mxu0 0.0
  %2267 = vmatpush1.msra.mxu0 0.0
  %2268 = vmatprep.subr.mxu0 0.0
  %2269 = vmatpush1.msra.mxu0 0.0
  %2270 = vmatprep.subr.mxu0 0.0
  %2271 = vmatpush1.msra.mxu0 0.0
  %2272 = vmatprep.subr.mxu0 0.0
  %2273 = vmatpush1.msra.mxu0 0.0
  %2274 = vmatprep.subr.mxu0 0.0
  %2275 = vmatpush1.msra.mxu0 %v2247
  %2276 = vmatprep.subr.mxu0 0.0
  %2277 = vmatpush1.msra.mxu0 %v2246
  %2278 = vmatprep.subr.mxu0 0.0
  %2279 = vmatpush1.msra.mxu0 %v2245
  %2280 = vmatprep.subr.mxu0 0.0
  %2281 = vmatpush1.msra.mxu0 %v2244
  %2282 = vmatprep.subr.mxu0 0.0
  %2283 = vmatpush1.msra.mxu0 %v2243
  %2284 = vmatprep.subr.mxu0 0.0
  %2285 = vmatpush1.msra.mxu0 %v2242
  %2286 = vmatprep.subr.mxu0 0.0
  %2287 = vmatpush1.msra.mxu0 %v2241
  %2288 = vmatprep.subr.mxu0 0.0
  %2289 = vmatpush1.msra.mxu0 %v2240
  %2290 = vmatprep.subr.mxu0 0.0
  %2291 = vmatpush2.msra.mxu0 0.0
  %2292 = vmatprep.subr.mxu0 0.0
  %2293 = vmatpush2.msra.mxu0 0.0
  %2294 = vmatprep.subr.mxu0 0.0
  %2295 = vmatpush2.msra.mxu0 0.0
  %2296 = vmatprep.subr.mxu0 0.0
  %2297 = vmatpush2.msra.mxu0 0.0
  %2298 = vmatprep.subr.mxu0 0.0
  %2299 = vmatpush2.msra.mxu0 0.0
  %2300 = vmatprep.subr.mxu0 0.0
  %2301 = vmatpush2.msra.mxu0 0.0
  %2302 = vmatprep.subr.mxu0 0.0
  %2303 = vmatpush2.msra.mxu0 0.0
  %2304 = vmatprep.subr.mxu0 0.0
  %2305 = vmatpush2.msra.mxu0 0.0
  %2306 = vmatprep.subr.mxu0 0.0
  %2307 = vmatpush2.msra.mxu0 0.0
  %2308 = vmatprep.subr.mxu0 0.0
  %2309 = vmatpush2.msra.mxu0 0.0
  %2310 = vmatprep.subr.mxu0 0.0
  %2311 = vmatpush2.msra.mxu0 0.0
  %2312 = vmatprep.subr.mxu0 0.0
  %2313 = vmatpush2.msra.mxu0 0.0
  %2314 = vmatprep.subr.mxu0 0.0
  %2315 = vmatpush2.msra.mxu0 0.0
  %2316 = vmatprep.subr.mxu0 0.0
  %2317 = vmatpush2.msra.mxu0 0.0
  %2318 = vmatprep.subr.mxu0 0.0
  %2319 = vmatpush2.msra.mxu0 0.0
  %2320 = vmatprep.subr.mxu0 0.0
  %2321 = vmatpush2.msra.mxu0 0.0
  %2322 = vmatprep.mubr.f32.mxu0 0.0
  %2323 = vmatmul.mubr.f32.gmra.mxu0 %v2256
  %v2324 = vpop.f32.mrf.mxu0
  %v2325 = vadd.f32 %v2253, %v2324
  %v2326 = vpop.f32.mrf.mxu0
  %2327 = vdwg.mxu0
  %2328 = vmax.xlane.f32.xlu0 %v2325
  %v2329 = vpop.xlane.xlu0 %2328
  %v2330 = vsub.f32 %v2325, %v2329
  %v2331 = vmul.f32 %v2330, 1.442695
  %v2332 = vpow.pop %v2331
  %2333 = vadd.xlane.f32.xlu0 %v2332
  %v2334 = vpop.xlane.xlu0 %2333
  %v2335 = vlog2.pop %v2334
  %v2336 = vmul.f32 %v2335, 0.6931472
  %v2337 = vsub.f32 %v2330, %v2336
  %2338 = vst [vmem:[%s14] sm:$0xff] %v2337
  // Predicated region
  $region58: #{attention_sent_rnn_pallas.1} parent=0 // pred_check
    _
  $region59: #{attention_sent_rnn_pallas.1} parent=0 // pred_check_branch
    %2340 = sbr.rel (0) target = $region61
  $region60: #{attention_sent_rnn_pallas.1} parent=0 // pred_region
    _
  $region61: #{attention_sent_rnn_pallas.1} parent=0 // pred_fallthru
    _
  // Predicated region
  $region62: #{attention_sent_rnn_pallas.1} parent=0 // pred_check
    _
  $region63: #{attention_sent_rnn_pallas.1} parent=0 // pred_check_branch
    %2342 = sbr.rel (0) target = $region65
  $region64: #{attention_sent_rnn_pallas.1} parent=0 // pred_region
    _
  $region65: #{attention_sent_rnn_pallas.1} parent=0 // pred_fallthru
    _
  // Predicated region
  $region66: #{attention_sent_rnn_pallas.1} parent=0 // pred_check
    _
  $region67: #{attention_sent_rnn_pallas.1} parent=0 // pred_check_branch
    %2344 = sbr.rel (0) target = $region69
  $region68: #{attention_sent_rnn_pallas.1} parent=0 // pred_region
    _
  $region69: #{attention_sent_rnn_pallas.1} parent=0 // pred_fallthru
    _
  // Predicated region
  $region70: #{attention_sent_rnn_pallas.1} parent=0 // pred_check
    _
  $region71: #{attention_sent_rnn_pallas.1} parent=0 // pred_check_branch
    %2346 = sbr.rel (0) target = $region73
  $region72: #{attention_sent_rnn_pallas.1} parent=0 // pred_region
    _
  $region73: #{attention_sent_rnn_pallas.1} parent=0 // pred_fallthru
    _
  // Predicated region
  $region74: #{attention_sent_rnn_pallas.1} parent=0 // pred_check
    _
  $region75: #{attention_sent_rnn_pallas.1} parent=0 // pred_check_branch
    %2348 = sbr.rel (0) target = $region77
  $region76: #{attention_sent_rnn_pallas.1} parent=0 // pred_region
    _
  $region77: #{attention_sent_rnn_pallas.1} parent=0 // pred_fallthru
    _
  // Predicated region
  $region78: #{attention_sent_rnn_pallas.1} parent=0 // pred_check
    _
  $region79: #{attention_sent_rnn_pallas.1} parent=0 // pred_check_branch
    %2350 = sbr.rel (0) target = $region81
  $region80: #{attention_sent_rnn_pallas.1} parent=0 // pred_region
    _
  $region81: #{attention_sent_rnn_pallas.1} parent=0 // pred_fallthru
    _

</llo_original>
